<compile_context>
chip_gen: v6e
topology: v6e:2x2x1
jax: 0.10.0
libtpu: 0.0.40
codegen_flags: <defaults>
</compile_context>

<pallas_src>
import functools
import numpy as np
import jax
import jax.numpy as jnp
from jax.experimental import pallas as pl
from jax.experimental.pallas import tpu as pltpu

F32 = jnp.float32
BF16 = jnp.bfloat16

IN_DIM = 101          # MappingNetwork input features
HID = 512             # hidden width
N_HIDDEN = 7          # EqualLinear(512,512) layers after the first
LEAK = 0.2            # LeakyReLU negative slope
IN_PAD = 128          # IN_DIM rounded up to the 128-lane width
TM_MAX = 256          # max rows per grid step (good balance for v5e/v6e/v7x)


def _cdiv(a, b):
    return (a + b - 1) // b


def _rup(x, m):
    return ((x + m - 1) // m) * m


# ---------------------------------------------------------------------------
# Fused kernel: L2-normalize + 8x (matmul bf16->f32acc + bias + LeakyReLU)
# ---------------------------------------------------------------------------
def _mapping_kernel(x_ref, w1_ref, ws_ref, b_ref, o_ref):
    # x_ref: [TM, IN_PAD] f32, zero padded beyond IN_DIM. Zero columns don't
    # affect the L2 norm, and the padded rows of w1 are zero, so padding is
    # exact. All-zero padded batch rows stay zero (no NaN from rsqrt's clamp).
    x = x_ref[...]

    # F.normalize(x, dim=1): x / max(||x||_2, 1e-12). rsqrt lowers to the EUP.
    sumsq = jnp.sum(x * x, axis=1, keepdims=True)
    x = x * jax.lax.rsqrt(jnp.maximum(sumsq, 1e-24))

    b_all = b_ref[...]                                   # [8, HID] f32

    # Layer 0: [TM, IN_PAD] @ [IN_PAD, HID], bf16 operands, f32 accumulation.
    acc = jnp.dot(x.astype(BF16), w1_ref[...],
                  preferred_element_type=jnp.float32)
    acc = acc + b_all[0:1, :]
    h = jnp.maximum(acc, LEAK * acc)                     # LeakyReLU(0.2)

    # 7 hidden layers; weights resident in VMEM, loop fully unrolled.
    for l in range(N_HIDDEN):
        acc = jnp.dot(h.astype(BF16), ws_ref[l],
                      preferred_element_type=jnp.float32)
        acc = acc + b_all[l + 1:l + 2, :]
        h = jnp.maximum(acc, LEAK * acc)

    o_ref[...] = h.astype(o_ref.dtype)


@functools.partial(jax.jit, static_argnames=("tm",))
def _mapping_forward_padded(xp, w1, ws, bs, *, tm):
    Bp = xp.shape[0]
    return pl.pallas_call(
        _mapping_kernel,
        out_shape=jax.ShapeDtypeStruct((Bp, HID), F32),
        grid_spec=pltpu.PrefetchScalarGridSpec(
            num_scalar_prefetch=0,
            grid=(Bp // tm,),
            in_specs=[
                # streamed activation tile (default double-buffered)
                pl.BlockSpec((tm, IN_PAD), lambda i: (i, 0)),
                # resident weights/biases: constant index_map -> single buffer
                pl.BlockSpec((IN_PAD, HID), lambda i: (0, 0),
                             pipeline_mode=pl.Buffered(1)),
                pl.BlockSpec((N_HIDDEN, HID, HID), lambda i: (0, 0, 0),
                             pipeline_mode=pl.Buffered(1)),
                pl.BlockSpec((N_HIDDEN + 1, HID), lambda i: (0, 0),
                             pipeline_mode=pl.Buffered(1)),
            ],
            out_specs=pl.BlockSpec((tm, HID), lambda i: (i, 0)),
        ),
        compiler_params=pltpu.CompilerParams(
            dimension_semantics=("parallel",),
            vmem_limit_bytes=32 * 1024 * 1024,
        ),
    )(xp, w1, ws, bs)


# ---------------------------------------------------------------------------
# Tiling: balanced tiles, cap TM_MAX, >= 2 grid steps when Bp >= 16 (v7x TCs)
# ---------------------------------------------------------------------------
def _choose_tiling(B):
    Bp = _rup(max(B, 1), 8)
    n_tiles = _cdiv(Bp, TM_MAX)
    if Bp >= 16:
        n_tiles = max(n_tiles, 2)
    tm = _rup(_cdiv(Bp, n_tiles), 8)       # sublane-aligned, balanced tile
    Bp = tm * _cdiv(Bp, tm)                # round batch up to a tile multiple
    return Bp, tm


# ---------------------------------------------------------------------------
# Parameter init (EqualLR) and host-side wrapper
# ---------------------------------------------------------------------------
def init_params(key):
    ks = jax.random.split(key, 1 + N_HIDDEN)
    # EqualLinear: weight_orig ~ N(0,1), effective weight = w_orig*sqrt(2/fan_in),
    # bias zero-initialized. Weights pre-transposed / padded / bf16-cast ONCE.
    w1 = jax.random.normal(ks[0], (HID, IN_DIM), F32) * np.sqrt(2.0 / IN_DIM)
    w1t = w1.T                                                   # [IN_DIM, HID]
    w1p = jnp.zeros((IN_PAD, HID), F32).at[:IN_DIM, :].set(w1t)  # zero-padded rows

    ws = jnp.stack(
        [(jax.random.normal(ks[1 + i], (HID, HID), F32) * np.sqrt(2.0 / HID)).T
         for i in range(N_HIDDEN)], axis=0)

    bs = jnp.zeros((N_HIDDEN + 1, HID), F32)     # EqualLinear zeroes the bias

    params = {"w1": w1p.astype(BF16), "ws": ws.astype(BF16), "bs": bs}
    ref_weights = {"w1": w1t, "ws": ws, "bs": bs}   # f32 copies for the check
    return params, ref_weights


def mapping_network_forward(params, x):
    """x: [B, 101] float -> [B, 512] float32 (PyTorch MappingNetwork.forward)."""
    B = x.shape[0]
    Bp, tm = _choose_tiling(B)
    xp = jnp.zeros((Bp, IN_PAD), F32).at[:B, :IN_DIM].set(x.astype(F32))
    out = _mapping_forward_padded(xp, params["w1"], params["ws"], params["bs"],
                                  tm=tm)
    return out[:B]


# Pure-JAX f32 reference (PyTorch semantics) for a tolerance check.
def reference_forward(ref, x):
    n = jnp.sqrt(jnp.sum(x * x, axis=1, keepdims=True))
    h = x / jnp.maximum(n, 1e-12)
    h = h @ ref["w1"] + ref["bs"][0]
    h = jnp.where(h >= 0, h, LEAK * h)
    for l in range(N_HIDDEN):
        h = h @ ref["ws"][l] + ref["bs"][l + 1]
        h = jnp.where(h >= 0, h, LEAK * h)
    return h


if __name__ == "__main__":
    key = jax.random.PRNGKey(0)
    kp, kx = jax.random.split(key)
    params, ref_w = init_params(kp)

    B = 8
    x = jax.random.normal(kx, (B, IN_DIM), F32)

    out = jax.block_until_ready(mapping_network_forward(params, x))
    assert out.shape == (B, HID)

    # bf16 weights/activations drift slightly vs. the f32 reference; check
    # with a generous scale-relative tolerance.
    ref = jax.block_until_ready(reference_forward(ref_w, x.astype(F32)))
    scale = float(jnp.max(jnp.abs(ref))) + 1e-6
    max_err = float(jnp.max(jnp.abs(out - ref)))
    assert max_err <= 0.1 * scale, f"max_err={max_err}, scale={scale}"

    print("KERNEL_OK")
</pallas_src>

<mosaic_0001>
module attributes {stable_mosaic.version = 11 : i64} {
  func.func @_mapping_kernel(%arg0: i32, %arg1: memref<8x128xf32, #tpu.memory_space<vmem>>, %arg2: memref<128x512xbf16, #tpu.memory_space<vmem>>, %arg3: memref<7x512x512xbf16, #tpu.memory_space<vmem>>, %arg4: memref<8x512xf32, #tpu.memory_space<vmem>>, %arg5: memref<8x512xf32, #tpu.memory_space<vmem>>) attributes {dimension_semantics = [#tpu.dimension_semantics<parallel>], iteration_bounds = array<i64: 1>, scalar_prefetch = 0 : i64, scratch_operands = 0 : i64, tpu.core_type = #tpu.core_type<tc>, window_params = [{transform_indices = @transform_0, window_bounds = array<i64: 8, 128>}, {pipeline_mode = #tpu.pipeline_mode<synchronous>, transform_indices = @transform_1, window_bounds = array<i64: 128, 512>}, {pipeline_mode = #tpu.pipeline_mode<synchronous>, transform_indices = @transform_2, window_bounds = array<i64: 7, 512, 512>}, {pipeline_mode = #tpu.pipeline_mode<synchronous>, transform_indices = @transform_3, window_bounds = array<i64: 8, 512>}, {transform_indices = @transform_4, window_bounds = array<i64: 8, 512>}]} {
    %c0 = arith.constant 0 : index
    %c0_0 = arith.constant 0 : index
    %0 = vector.load %arg1[%c0, %c0_0] : memref<8x128xf32, #tpu.memory_space<vmem>>, vector<8x128xf32>
    %1 = arith.mulf %0, %0 : vector<8x128xf32>
    %cst = arith.constant dense<0.000000e+00> : vector<8xf32>
    %2 = vector.multi_reduction <add>, %1, %cst [1] : vector<8x128xf32> to vector<8xf32>
    %3 = vector.shape_cast %2 : vector<8xf32> to vector<8x1xf32>
    %cst_1 = arith.constant 1.000000e-24 : f32
    %4 = vector.broadcast %cst_1 : f32 to vector<8x1xf32>
    %5 = arith.maximumf %3, %4 : vector<8x1xf32>
    %6 = math.rsqrt %5 : vector<8x1xf32>
    %7 = vector.broadcast %6 : vector<8x1xf32> to vector<8x128xf32>
    %8 = arith.mulf %0, %7 : vector<8x128xf32>
    %c0_2 = arith.constant 0 : index
    %c0_3 = arith.constant 0 : index
    %9 = vector.load %arg4[%c0_2, %c0_3] : memref<8x512xf32, #tpu.memory_space<vmem>>, vector<8x512xf32>
    %10 = arith.truncf %8 : vector<8x128xf32> to vector<8x128xbf16>
    %c0_4 = arith.constant 0 : index
    %c0_5 = arith.constant 0 : index
    %11 = vector.load %arg2[%c0_4, %c0_5] : memref<128x512xbf16, #tpu.memory_space<vmem>>, vector<128x512xbf16>
    %cst_6 = arith.constant dense<0.000000e+00> : vector<8x512xf32>
    %12 = tpu.matmul %10, %11, %cst_6 {dimension_numbers = #tpu.dot_dimension_numbers<[1], [0], [0], [1], [0, 0, 1, 1], [], []>} : vector<8x128xbf16>, vector<128x512xbf16>, vector<8x512xf32> -> vector<8x512xf32>
    %13 = vector.extract_strided_slice %9 {offsets = [0, 0], sizes = [1, 512], strides = [1, 1]} : vector<8x512xf32> to vector<1x512xf32>
    %14 = vector.broadcast %13 : vector<1x512xf32> to vector<8x512xf32>
    %15 = arith.addf %12, %14 : vector<8x512xf32>
    %cst_7 = arith.constant 2.000000e-01 : f32
    %16 = vector.broadcast %cst_7 : f32 to vector<8x512xf32>
    %17 = arith.mulf %16, %15 : vector<8x512xf32>
    %18 = arith.maximumf %15, %17 : vector<8x512xf32>
    %19 = arith.truncf %18 : vector<8x512xf32> to vector<8x512xbf16>
    %c0_8 = arith.constant 0 : index
    %c0_9 = arith.constant 0 : index
    %c0_10 = arith.constant 0 : index
    %20 = vector.load %arg3[%c0_8, %c0_9, %c0_10] : memref<7x512x512xbf16, #tpu.memory_space<vmem>>, vector<1x512x512xbf16>
    %21 = vector.shape_cast %20 : vector<1x512x512xbf16> to vector<512x512xbf16>
    %cst_11 = arith.constant dense<0.000000e+00> : vector<8x512xf32>
    %22 = tpu.matmul %19, %21, %cst_11 {dimension_numbers = #tpu.dot_dimension_numbers<[1], [0], [0], [1], [0, 0, 1, 1], [], []>} : vector<8x512xbf16>, vector<512x512xbf16>, vector<8x512xf32> -> vector<8x512xf32>
    %23 = vector.extract_strided_slice %9 {offsets = [1, 0], sizes = [1, 512], strides = [1, 1]} : vector<8x512xf32> to vector<1x512xf32>
    %24 = vector.broadcast %23 : vector<1x512xf32> to vector<8x512xf32>
    %25 = arith.addf %22, %24 : vector<8x512xf32>
    %cst_12 = arith.constant 2.000000e-01 : f32
    %26 = vector.broadcast %cst_12 : f32 to vector<8x512xf32>
    %27 = arith.mulf %26, %25 : vector<8x512xf32>
    %28 = arith.maximumf %25, %27 : vector<8x512xf32>
    %29 = arith.truncf %28 : vector<8x512xf32> to vector<8x512xbf16>
    %c1 = arith.constant 1 : index
    %c0_13 = arith.constant 0 : index
    %c0_14 = arith.constant 0 : index
    %30 = vector.load %arg3[%c1, %c0_13, %c0_14] : memref<7x512x512xbf16, #tpu.memory_space<vmem>>, vector<1x512x512xbf16>
    %31 = vector.shape_cast %30 : vector<1x512x512xbf16> to vector<512x512xbf16>
    %cst_15 = arith.constant dense<0.000000e+00> : vector<8x512xf32>
    %32 = tpu.matmul %29, %31, %cst_15 {dimension_numbers = #tpu.dot_dimension_numbers<[1], [0], [0], [1], [0, 0, 1, 1], [], []>} : vector<8x512xbf16>, vector<512x512xbf16>, vector<8x512xf32> -> vector<8x512xf32>
    %33 = vector.extract_strided_slice %9 {offsets = [2, 0], sizes = [1, 512], strides = [1, 1]} : vector<8x512xf32> to vector<1x512xf32>
    %34 = vector.broadcast %33 : vector<1x512xf32> to vector<8x512xf32>
    %35 = arith.addf %32, %34 : vector<8x512xf32>
    %cst_16 = arith.constant 2.000000e-01 : f32
    %36 = vector.broadcast %cst_16 : f32 to vector<8x512xf32>
    %37 = arith.mulf %36, %35 : vector<8x512xf32>
    %38 = arith.maximumf %35, %37 : vector<8x512xf32>
    %39 = arith.truncf %38 : vector<8x512xf32> to vector<8x512xbf16>
    %c2 = arith.constant 2 : index
    %c0_17 = arith.constant 0 : index
    %c0_18 = arith.constant 0 : index
    %40 = vector.load %arg3[%c2, %c0_17, %c0_18] : memref<7x512x512xbf16, #tpu.memory_space<vmem>>, vector<1x512x512xbf16>
    %41 = vector.shape_cast %40 : vector<1x512x512xbf16> to vector<512x512xbf16>
    %cst_19 = arith.constant dense<0.000000e+00> : vector<8x512xf32>
    %42 = tpu.matmul %39, %41, %cst_19 {dimension_numbers = #tpu.dot_dimension_numbers<[1], [0], [0], [1], [0, 0, 1, 1], [], []>} : vector<8x512xbf16>, vector<512x512xbf16>, vector<8x512xf32> -> vector<8x512xf32>
    %43 = vector.extract_strided_slice %9 {offsets = [3, 0], sizes = [1, 512], strides = [1, 1]} : vector<8x512xf32> to vector<1x512xf32>
    %44 = vector.broadcast %43 : vector<1x512xf32> to vector<8x512xf32>
    %45 = arith.addf %42, %44 : vector<8x512xf32>
    %cst_20 = arith.constant 2.000000e-01 : f32
    %46 = vector.broadcast %cst_20 : f32 to vector<8x512xf32>
    %47 = arith.mulf %46, %45 : vector<8x512xf32>
    %48 = arith.maximumf %45, %47 : vector<8x512xf32>
    %49 = arith.truncf %48 : vector<8x512xf32> to vector<8x512xbf16>
    %c3 = arith.constant 3 : index
    %c0_21 = arith.constant 0 : index
    %c0_22 = arith.constant 0 : index
    %50 = vector.load %arg3[%c3, %c0_21, %c0_22] : memref<7x512x512xbf16, #tpu.memory_space<vmem>>, vector<1x512x512xbf16>
    %51 = vector.shape_cast %50 : vector<1x512x512xbf16> to vector<512x512xbf16>
    %cst_23 = arith.constant dense<0.000000e+00> : vector<8x512xf32>
    %52 = tpu.matmul %49, %51, %cst_23 {dimension_numbers = #tpu.dot_dimension_numbers<[1], [0], [0], [1], [0, 0, 1, 1], [], []>} : vector<8x512xbf16>, vector<512x512xbf16>, vector<8x512xf32> -> vector<8x512xf32>
    %53 = vector.extract_strided_slice %9 {offsets = [4, 0], sizes = [1, 512], strides = [1, 1]} : vector<8x512xf32> to vector<1x512xf32>
    %54 = vector.broadcast %53 : vector<1x512xf32> to vector<8x512xf32>
    %55 = arith.addf %52, %54 : vector<8x512xf32>
    %cst_24 = arith.constant 2.000000e-01 : f32
    %56 = vector.broadcast %cst_24 : f32 to vector<8x512xf32>
    %57 = arith.mulf %56, %55 : vector<8x512xf32>
    %58 = arith.maximumf %55, %57 : vector<8x512xf32>
    %59 = arith.truncf %58 : vector<8x512xf32> to vector<8x512xbf16>
    %c4 = arith.constant 4 : index
    %c0_25 = arith.constant 0 : index
    %c0_26 = arith.constant 0 : index
    %60 = vector.load %arg3[%c4, %c0_25, %c0_26] : memref<7x512x512xbf16, #tpu.memory_space<vmem>>, vector<1x512x512xbf16>
    %61 = vector.shape_cast %60 : vector<1x512x512xbf16> to vector<512x512xbf16>
    %cst_27 = arith.constant dense<0.000000e+00> : vector<8x512xf32>
    %62 = tpu.matmul %59, %61, %cst_27 {dimension_numbers = #tpu.dot_dimension_numbers<[1], [0], [0], [1], [0, 0, 1, 1], [], []>} : vector<8x512xbf16>, vector<512x512xbf16>, vector<8x512xf32> -> vector<8x512xf32>
    %63 = vector.extract_strided_slice %9 {offsets = [5, 0], sizes = [1, 512], strides = [1, 1]} : vector<8x512xf32> to vector<1x512xf32>
    %64 = vector.broadcast %63 : vector<1x512xf32> to vector<8x512xf32>
    %65 = arith.addf %62, %64 : vector<8x512xf32>
    %cst_28 = arith.constant 2.000000e-01 : f32
    %66 = vector.broadcast %cst_28 : f32 to vector<8x512xf32>
    %67 = arith.mulf %66, %65 : vector<8x512xf32>
    %68 = arith.maximumf %65, %67 : vector<8x512xf32>
    %69 = arith.truncf %68 : vector<8x512xf32> to vector<8x512xbf16>
    %c5 = arith.constant 5 : index
    %c0_29 = arith.constant 0 : index
    %c0_30 = arith.constant 0 : index
    %70 = vector.load %arg3[%c5, %c0_29, %c0_30] : memref<7x512x512xbf16, #tpu.memory_space<vmem>>, vector<1x512x512xbf16>
    %71 = vector.shape_cast %70 : vector<1x512x512xbf16> to vector<512x512xbf16>
    %cst_31 = arith.constant dense<0.000000e+00> : vector<8x512xf32>
    %72 = tpu.matmul %69, %71, %cst_31 {dimension_numbers = #tpu.dot_dimension_numbers<[1], [0], [0], [1], [0, 0, 1, 1], [], []>} : vector<8x512xbf16>, vector<512x512xbf16>, vector<8x512xf32> -> vector<8x512xf32>
    %73 = vector.extract_strided_slice %9 {offsets = [6, 0], sizes = [1, 512], strides = [1, 1]} : vector<8x512xf32> to vector<1x512xf32>
    %74 = vector.broadcast %73 : vector<1x512xf32> to vector<8x512xf32>
    %75 = arith.addf %72, %74 : vector<8x512xf32>
    %cst_32 = arith.constant 2.000000e-01 : f32
    %76 = vector.broadcast %cst_32 : f32 to vector<8x512xf32>
    %77 = arith.mulf %76, %75 : vector<8x512xf32>
    %78 = arith.maximumf %75, %77 : vector<8x512xf32>
    %79 = arith.truncf %78 : vector<8x512xf32> to vector<8x512xbf16>
    %c6 = arith.constant 6 : index
    %c0_33 = arith.constant 0 : index
    %c0_34 = arith.constant 0 : index
    %80 = vector.load %arg3[%c6, %c0_33, %c0_34] : memref<7x512x512xbf16, #tpu.memory_space<vmem>>, vector<1x512x512xbf16>
    %81 = vector.shape_cast %80 : vector<1x512x512xbf16> to vector<512x512xbf16>
    %cst_35 = arith.constant dense<0.000000e+00> : vector<8x512xf32>
    %82 = tpu.matmul %79, %81, %cst_35 {dimension_numbers = #tpu.dot_dimension_numbers<[1], [0], [0], [1], [0, 0, 1, 1], [], []>} : vector<8x512xbf16>, vector<512x512xbf16>, vector<8x512xf32> -> vector<8x512xf32>
    %83 = vector.extract_strided_slice %9 {offsets = [7, 0], sizes = [1, 512], strides = [1, 1]} : vector<8x512xf32> to vector<1x512xf32>
    %84 = vector.broadcast %83 : vector<1x512xf32> to vector<8x512xf32>
    %85 = arith.addf %82, %84 : vector<8x512xf32>
    %cst_36 = arith.constant 2.000000e-01 : f32
    %86 = vector.broadcast %cst_36 : f32 to vector<8x512xf32>
    %87 = arith.mulf %86, %85 : vector<8x512xf32>
    %88 = arith.maximumf %85, %87 : vector<8x512xf32>
    %c0_37 = arith.constant 0 : index
    %c0_38 = arith.constant 0 : index
    %89 = vector.load %arg5[%c0_37, %c0_38] : memref<8x512xf32, #tpu.memory_space<vmem>>, vector<8x512xf32>
    tpu.vector_store %arg5[%c0_37, %c0_38], %88 {strides = array<i32>} : memref<8x512xf32, #tpu.memory_space<vmem>>, vector<8x512xf32>,
    return
  }
  func.func @transform_0(%arg0: i32) -> (i32, i32) {
    %c0_i32 = arith.constant 0 : i32
    %c0_i32_0 = arith.constant 0 : i32
    return %arg0, %c0_i32 : i32, i32
  }
  func.func @transform_1(%arg0: i32) -> (i32, i32) {
    %c0_i32 = arith.constant 0 : i32
    %c0_i32_0 = arith.constant 0 : i32
    %c0_i32_1 = arith.constant 0 : i32
    return %c0_i32, %c0_i32_0 : i32, i32
  }
  func.func @transform_2(%arg0: i32) -> (i32, i32, i32) {
    %c0_i32 = arith.constant 0 : i32
    %c0_i32_0 = arith.constant 0 : i32
    %c0_i32_1 = arith.constant 0 : i32
    %c0_i32_2 = arith.constant 0 : i32
    return %c0_i32, %c0_i32_0, %c0_i32_1 : i32, i32, i32
  }
  func.func @transform_3(%arg0: i32) -> (i32, i32) {
    %c0_i32 = arith.constant 0 : i32
    %c0_i32_0 = arith.constant 0 : i32
    %c0_i32_1 = arith.constant 0 : i32
    return %c0_i32, %c0_i32_0 : i32, i32
  }
  func.func @transform_4(%arg0: i32) -> (i32, i32) {
    %c0_i32 = arith.constant 0 : i32
    %c0_i32_0 = arith.constant 0 : i32
    return %arg0, %c0_i32 : i32, i32
  }
}

</mosaic_0001>

<llo_original>
// kernel: _mapping_forward_padded.1
$region0: #{_mapping_forward_padded.1}
  #allocation0 [shape = 'u32[]', space=smem, size = 0x4, offset = 0x4, fixed_abs, tag = 'smem constant byte address 0x4 - core index']
  #allocation1 [shape = 'u32[144,128]{1,0:T(1,128)}', space=vmem, size = 0x12000, scoped, tag = 'internal scratch']
  %s0 = inlined_call_operand.hbm [shape: f32[8,128], index: 0, kind: input, shape index: {}]
  %s1 = inlined_call_operand.hbm [shape: bf16[128,512], index: 1, kind: input, shape index: {}]
  %s2 = inlined_call_operand.hbm [shape: bf16[7,512,512], index: 2, kind: input, shape index: {}]
  %s3 = inlined_call_operand.hbm [shape: f32[8,512], index: 3, kind: input, shape index: {}]
  %s4 = inlined_call_operand.hbm [shape: f32[8,512], index: 4, kind: output, shape index: {}]
  %s5 = sld [smem:[#allocation0]]
  $region42: #{_mapping_forward_padded.1} parent=0
    _
  %s7 = ssub.s32 1, %s5
  %s8 = scalar_select 0, %s7, %s5
  $region1: #{_mapping_forward_padded.1} parent=0
    #allocation2 [shape = 'u8[4096]{0}', space=vmem, size = 0x1000, scoped, tag = 'input window, operand 0, single buffered']
    #allocation3 [shape = 's32[1]{0}', space=sflag, size = 0x4, scoped, tag = 'scoped memory for _mapping_forward_padded.1']
    #allocation4 [shape = 's32[1]{0}', space=sflag, size = 0x4, scoped, tag = 'scoped memory for _mapping_forward_padded.1']
    #allocation5 [shape = 'u8[131072]{0}', space=vmem, size = 0x20000, scoped, tag = 'input window, operand 1, single buffered']
    #allocation6 [shape = 's32[1]{0}', space=sflag, size = 0x4, scoped, tag = 'scoped memory for _mapping_forward_padded.1']
    #allocation7 [shape = 'u8[3670016]{0}', space=vmem, size = 0x380000, scoped, tag = 'input window, operand 2, single buffered']
    #allocation8 [shape = 'u8[16384]{0}', space=vmem, size = 0x4000, scoped, tag = 'input window, operand 3, single buffered']
    #allocation9 [shape = 's32[1]{0}', space=sflag, size = 0x4, scoped, tag = 'scoped memory for _mapping_forward_padded.1']
    #allocation10 [shape = 'u8[16384]{0}', space=vmem, size = 0x4000, scoped, tag = 'output window, operand 0, single buffered']
    %9 = vsyncpa [#allocation3], 0
    %10 = vsyncpa [#allocation6], 0
    %11 = vsyncpa [#allocation9], 0
    %12 = vsyncpa [#allocation4], 0
    // Predicated region
    $region2: #{_mapping_forward_padded.1} parent=1 // pred_check
      _
    $region3: #{_mapping_forward_padded.1} parent=1 // pred_check_branch
      %14 = sbr.rel (0) target = $region5
    $region4: #{_mapping_forward_padded.1} parent=1 // pred_region
      %s16 = ssub.s32 128, 128
      %17 = vsyncadd [#allocation3], %s16
      %s19 = sshll.u32 [#allocation2], 4
      %s20 = int_to_ptr.vmem [resolvable:$true] %s19
      %22 = dma.hbm_to_vmem [thread:$0]  %s0, 128, %s20, [#allocation3]
    $region5: #{_mapping_forward_padded.1} parent=1 // pred_fallthru
      _
    // Predicated region
    $region6: #{_mapping_forward_padded.1} parent=1 // pred_check
      _
    $region7: #{_mapping_forward_padded.1} parent=1 // pred_check_branch
      %24 = sbr.rel (0) target = $region9
    $region8: #{_mapping_forward_padded.1} parent=1 // pred_region
      %s26 = ssub.s32 4096, 4096
      %27 = vsyncadd [#allocation6], %s26
      %s28 = sshll.u32 [#allocation5], 4
      %s29 = int_to_ptr.vmem [resolvable:$true] %s28
      %34 = dma.hbm_to_vmem [thread:$0]  %s1, 4096, %s29, [#allocation6], 256, 256, 16
    $region9: #{_mapping_forward_padded.1} parent=1 // pred_fallthru
      _
    // Predicated region
    $region10: #{_mapping_forward_padded.1} parent=1 // pred_check
      _
    $region11: #{_mapping_forward_padded.1} parent=1 // pred_check_branch
      %36 = sbr.rel (0) target = $region13
    $region12: #{_mapping_forward_padded.1} parent=1 // pred_region
      %s38 = ssub.s32 114688, 114688
      %39 = vsyncadd [#allocation6], %s38
      %s40 = sshll.u32 [#allocation7], 4
      %s41 = int_to_ptr.vmem [resolvable:$true] %s40
      %46 = dma.hbm_to_vmem [thread:$0]  %s2, 114688, %s41, [#allocation6], 256, 256, 16
    $region13: #{_mapping_forward_padded.1} parent=1 // pred_fallthru
      _
    // Predicated region
    $region14: #{_mapping_forward_padded.1} parent=1 // pred_check
      _
    $region15: #{_mapping_forward_padded.1} parent=1 // pred_check_branch
      %48 = sbr.rel (0) target = $region17
    $region16: #{_mapping_forward_padded.1} parent=1 // pred_region
      %s50 = ssub.s32 512, 512
      %51 = vsyncadd [#allocation9], %s50
      %s53 = sshll.u32 [#allocation8], 4
      %s54 = int_to_ptr.vmem [resolvable:$true] %s53
      %56 = dma.hbm_to_vmem [thread:$0]  %s3, 512, %s54, [#allocation9]
    $region17: #{_mapping_forward_padded.1} parent=1 // pred_fallthru
      _
    // Predicated region
    $region18: #{_mapping_forward_padded.1} parent=1 // pred_check
      _
    $region19: #{_mapping_forward_padded.1} parent=1 // pred_check_branch
      %58 = sbr.rel (0) target = $region21
    $region20: #{_mapping_forward_padded.1} parent=1 // pred_region
      %59 = dma.done [#allocation3], 128
    $region21: #{_mapping_forward_padded.1} parent=1 // pred_fallthru
      _
    // Predicated region
    $region22: #{_mapping_forward_padded.1} parent=1 // pred_check
      _
    $region23: #{_mapping_forward_padded.1} parent=1 // pred_check_branch
      %61 = sbr.rel (0) target = $region25
    $region24: #{_mapping_forward_padded.1} parent=1 // pred_region
      %62 = dma.done [#allocation6], 4096
    $region25: #{_mapping_forward_padded.1} parent=1 // pred_fallthru
      _
    // Predicated region
    $region26: #{_mapping_forward_padded.1} parent=1 // pred_check
      _
    $region27: #{_mapping_forward_padded.1} parent=1 // pred_check_branch
      %64 = sbr.rel (0) target = $region29
    $region28: #{_mapping_forward_padded.1} parent=1 // pred_region
      %65 = dma.done [#allocation6], 114688
    $region29: #{_mapping_forward_padded.1} parent=1 // pred_fallthru
      _
    // Predicated region
    $region30: #{_mapping_forward_padded.1} parent=1 // pred_check
      _
    $region31: #{_mapping_forward_padded.1} parent=1 // pred_check_branch
      %67 = sbr.rel (0) target = $region33
    $region32: #{_mapping_forward_padded.1} parent=1 // pred_region
      %68 = dma.done [#allocation9], 512
    $region33: #{_mapping_forward_padded.1} parent=1 // pred_fallthru
      _
    %v70 = vld [vmem:[#allocation2] sm:$0xff]
    %v71 = vmul.f32 %v70, %v70
    %72 = vadd.xlane.f32.xlu0 %v71
    %v73 = vpop.xlane.xlu0 %72
    %v74 = vmax.f32 %v73, 1e-24
    %v75 = vrsqrt.pop %v74
    %v76 = vmul.f32 %v70, %v75
    %v77 = vld [vmem:[#allocation8] sm:$0xff]
    %v78 = vld [vmem:[#allocation8 + $0x8] sm:$0xff]
    %v79 = vld [vmem:[#allocation8 + $0x10] sm:$0xff]
    %v80 = vld [vmem:[#allocation8 + $0x18] sm:$0xff]
    %v81 = vpack.c.bf16 %v76, %v76
    %v82 = vld [vmem:[#allocation5] sm:$0xff]
    %v83 = vld [vmem:[#allocation5 + $0x8] sm:$0xff]
    %v84 = vld [vmem:[#allocation5 + $0x10] sm:$0xff]
    %v85 = vld [vmem:[#allocation5 + $0x18] sm:$0xff]
    %v86 = vld [vmem:[#allocation5 + $0x20] sm:$0xff]
    %v87 = vld [vmem:[#allocation5 + $0x28] sm:$0xff]
    %v88 = vld [vmem:[#allocation5 + $0x30] sm:$0xff]
    %v89 = vld [vmem:[#allocation5 + $0x38] sm:$0xff]
    %v90 = vld [vmem:[#allocation5 + $0x40] sm:$0xff]
    %v91 = vld [vmem:[#allocation5 + $0x48] sm:$0xff]
    %v92 = vld [vmem:[#allocation5 + $0x50] sm:$0xff]
    %v93 = vld [vmem:[#allocation5 + $0x58] sm:$0xff]
    %v94 = vld [vmem:[#allocation5 + $0x60] sm:$0xff]
    %v95 = vld [vmem:[#allocation5 + $0x68] sm:$0xff]
    %v96 = vld [vmem:[#allocation5 + $0x70] sm:$0xff]
    %v97 = vld [vmem:[#allocation5 + $0x78] sm:$0xff]
    %v98 = vld [vmem:[#allocation5 + $0x80] sm:$0xff]
    %v99 = vld [vmem:[#allocation5 + $0x88] sm:$0xff]
    %v100 = vld [vmem:[#allocation5 + $0x90] sm:$0xff]
    %v101 = vld [vmem:[#allocation5 + $0x98] sm:$0xff]
    %v102 = vld [vmem:[#allocation5 + $0xa0] sm:$0xff]
    %v103 = vld [vmem:[#allocation5 + $0xa8] sm:$0xff]
    %v104 = vld [vmem:[#allocation5 + $0xb0] sm:$0xff]
    %v105 = vld [vmem:[#allocation5 + $0xb8] sm:$0xff]
    %v106 = vld [vmem:[#allocation5 + $0xc0] sm:$0xff]
    %v107 = vld [vmem:[#allocation5 + $0xc8] sm:$0xff]
    %v108 = vld [vmem:[#allocation5 + $0xd0] sm:$0xff]
    %v109 = vld [vmem:[#allocation5 + $0xd8] sm:$0xff]
    %v110 = vld [vmem:[#allocation5 + $0xe0] sm:$0xff]
    %v111 = vld [vmem:[#allocation5 + $0xe8] sm:$0xff]
    %v112 = vld [vmem:[#allocation5 + $0xf0] sm:$0xff]
    %v113 = vld [vmem:[#allocation5 + $0xf8] sm:$0xff]
    %v114 = vlaneseq
    %v115 = vshrl.u32 %v114, 7
    %v116 = vsub.s32 0, %v115
    %v117 = vrot.slane %v77, %v116
    %v118 = vlaneseq
    %v119 = vshrl.u32 %v118, 7
    %v120 = vsub.s32 0, %v119
    %v121 = vrot.slane %v78, %v120
    %v122 = vlaneseq
    %v123 = vshrl.u32 %v122, 7
    %v124 = vsub.s32 0, %v123
    %v125 = vrot.slane %v79, %v124
    %v126 = vlaneseq
    %v127 = vshrl.u32 %v126, 7
    %v128 = vsub.s32 0, %v127
    %v129 = vrot.slane %v80, %v128
    %v162 = vunpack.c.l.b16 %v82
    %v163 = vunpack.c.h.b16 %v82
    %v164 = vunpack.c.l.b16 %v83
    %v165 = vunpack.c.h.b16 %v83
    %v166 = vunpack.c.l.b16 %v84
    %v167 = vunpack.c.h.b16 %v84
    %v168 = vunpack.c.l.b16 %v85
    %v169 = vunpack.c.h.b16 %v85
    %v170 = vunpack.c.l.b16 %v86
    %v171 = vunpack.c.h.b16 %v86
    %v172 = vunpack.c.l.b16 %v87
    %v173 = vunpack.c.h.b16 %v87
    %v174 = vunpack.c.l.b16 %v88
    %v175 = vunpack.c.h.b16 %v88
    %v176 = vunpack.c.l.b16 %v89
    %v177 = vunpack.c.h.b16 %v89
    %v178 = vunpack.c.l.b16 %v90
    %v179 = vunpack.c.h.b16 %v90
    %v180 = vunpack.c.l.b16 %v91
    %v181 = vunpack.c.h.b16 %v91
    %v182 = vunpack.c.l.b16 %v92
    %v183 = vunpack.c.h.b16 %v92
    %v184 = vunpack.c.l.b16 %v93
    %v185 = vunpack.c.h.b16 %v93
    %v186 = vunpack.c.l.b16 %v94
    %v187 = vunpack.c.h.b16 %v94
    %v188 = vunpack.c.l.b16 %v95
    %v189 = vunpack.c.h.b16 %v95
    %v190 = vunpack.c.l.b16 %v96
    %v191 = vunpack.c.h.b16 %v96
    %v192 = vunpack.c.l.b16 %v97
    %v193 = vunpack.c.h.b16 %v97
    %v194 = vunpack.c.l.b16 %v98
    %v195 = vunpack.c.h.b16 %v98
    %v196 = vunpack.c.l.b16 %v99
    %v197 = vunpack.c.h.b16 %v99
    %v198 = vunpack.c.l.b16 %v100
    %v199 = vunpack.c.h.b16 %v100
    %v200 = vunpack.c.l.b16 %v101
    %v201 = vunpack.c.h.b16 %v101
    %v202 = vunpack.c.l.b16 %v102
    %v203 = vunpack.c.h.b16 %v102
    %v204 = vunpack.c.l.b16 %v103
    %v205 = vunpack.c.h.b16 %v103
    %v206 = vunpack.c.l.b16 %v104
    %v207 = vunpack.c.h.b16 %v104
    %v208 = vunpack.c.l.b16 %v105
    %v209 = vunpack.c.h.b16 %v105
    %v210 = vunpack.c.l.b16 %v106
    %v211 = vunpack.c.h.b16 %v106
    %v212 = vunpack.c.l.b16 %v107
    %v213 = vunpack.c.h.b16 %v107
    %v214 = vunpack.c.l.b16 %v108
    %v215 = vunpack.c.h.b16 %v108
    %v216 = vunpack.c.l.b16 %v109
    %v217 = vunpack.c.h.b16 %v109
    %v218 = vunpack.c.l.b16 %v110
    %v219 = vunpack.c.h.b16 %v110
    %v220 = vunpack.c.l.b16 %v111
    %v221 = vunpack.c.h.b16 %v111
    %v222 = vunpack.c.l.b16 %v112
    %v223 = vunpack.c.h.b16 %v112
    %v224 = vunpack.c.l.b16 %v113
    %v225 = vunpack.c.h.b16 %v113
    %v226 = vpack.c.b16 %v166, %v162
    %v227 = vpack.c.b16 %v167, %v163
    %v228 = vpack.c.b16 %v168, %v164
    %v229 = vpack.c.b16 %v169, %v165
    %v230 = vpack.c.b16 %v174, %v170
    %v231 = vpack.c.b16 %v175, %v171
    %v232 = vpack.c.b16 %v176, %v172
    %v233 = vpack.c.b16 %v177, %v173
    %v234 = vpack.c.b16 %v182, %v178
    %v235 = vpack.c.b16 %v183, %v179
    %v236 = vpack.c.b16 %v184, %v180
    %v237 = vpack.c.b16 %v185, %v181
    %v238 = vpack.c.b16 %v190, %v186
    %v239 = vpack.c.b16 %v191, %v187
    %v240 = vpack.c.b16 %v192, %v188
    %v241 = vpack.c.b16 %v193, %v189
    %v242 = vpack.c.b16 %v198, %v194
    %v243 = vpack.c.b16 %v199, %v195
    %v244 = vpack.c.b16 %v200, %v196
    %v245 = vpack.c.b16 %v201, %v197
    %v246 = vpack.c.b16 %v206, %v202
    %v247 = vpack.c.b16 %v207, %v203
    %v248 = vpack.c.b16 %v208, %v204
    %v249 = vpack.c.b16 %v209, %v205
    %v250 = vpack.c.b16 %v214, %v210
    %v251 = vpack.c.b16 %v215, %v211
    %v252 = vpack.c.b16 %v216, %v212
    %v253 = vpack.c.b16 %v217, %v213
    %v254 = vpack.c.b16 %v222, %v218
    %v255 = vpack.c.b16 %v223, %v219
    %v256 = vpack.c.b16 %v224, %v220
    %v257 = vpack.c.b16 %v225, %v221
    %290 = vmatprep.subr.bf16.mxu0 %v255
    %291 = vmatpush1.bf16.msra.mxu0 %v254
    %292 = vmatprep.subr.bf16.mxu0 %v251
    %293 = vmatpush1.bf16.msra.mxu0 %v250
    %294 = vmatprep.subr.bf16.mxu0 %v247
    %295 = vmatpush1.bf16.msra.mxu0 %v246
    %296 = vmatprep.subr.bf16.mxu0 %v243
    %297 = vmatpush1.bf16.msra.mxu0 %v242
    %298 = vmatprep.subr.bf16.mxu0 %v239
    %299 = vmatpush1.bf16.msra.mxu0 %v238
    %300 = vmatprep.subr.bf16.mxu0 %v235
    %301 = vmatpush1.bf16.msra.mxu0 %v234
    %302 = vmatprep.subr.bf16.mxu0 %v231
    %303 = vmatpush1.bf16.msra.mxu0 %v230
    %304 = vmatprep.subr.bf16.mxu0 %v227
    %305 = vmatpush1.bf16.msra.mxu0 %v226
    %306 = vmatprep.subr.bf16.mxu0 0
    %307 = vmatpush2.bf16.msra.mxu0 0
    %308 = vmatprep.subr.bf16.mxu0 0
    %309 = vmatpush2.bf16.msra.mxu0 0
    %310 = vmatprep.subr.bf16.mxu0 0
    %311 = vmatpush2.bf16.msra.mxu0 0
    %312 = vmatprep.subr.bf16.mxu0 0
    %313 = vmatpush2.bf16.msra.mxu0 0
    %314 = vmatprep.subr.bf16.mxu0 0
    %315 = vmatpush2.bf16.msra.mxu0 0
    %316 = vmatprep.subr.bf16.mxu0 0
    %317 = vmatpush2.bf16.msra.mxu0 0
    %318 = vmatprep.subr.bf16.mxu0 0
    %319 = vmatpush2.bf16.msra.mxu0 0
    %320 = vmatprep.subr.bf16.mxu0 0
    %321 = vmatpush2.bf16.msra.mxu0 0
    %322 = vmatprep.mubr.bf16.mxu0 0
    %323 = vmatmul.mubr.bf16.gmra.mxu0 %v81
    %v324 = vpop.f32.mrf.mxu0
    %v325 = vadd.f32 %v117, %v324
    %v326 = vpop.f32.mrf.mxu0
    %v327 = vadd.f32 %v121, %v326
    %v328 = vpop.f32.mrf.mxu0
    %v329 = vpop.f32.mrf.mxu0
    %330 = vdwg.mxu0
    %331 = vmatprep.subr.bf16.mxu0 %v257
    %332 = vmatpush1.bf16.msra.mxu0 %v256
    %333 = vmatprep.subr.bf16.mxu0 %v253
    %334 = vmatpush1.bf16.msra.mxu0 %v252
    %335 = vmatprep.subr.bf16.mxu0 %v249
    %336 = vmatpush1.bf16.msra.mxu0 %v248
    %337 = vmatprep.subr.bf16.mxu0 %v245
    %338 = vmatpush1.bf16.msra.mxu0 %v244
    %339 = vmatprep.subr.bf16.mxu0 %v241
    %340 = vmatpush1.bf16.msra.mxu0 %v240
    %341 = vmatprep.subr.bf16.mxu0 %v237
    %342 = vmatpush1.bf16.msra.mxu0 %v236
    %343 = vmatprep.subr.bf16.mxu0 %v233
    %344 = vmatpush1.bf16.msra.mxu0 %v232
    %345 = vmatprep.subr.bf16.mxu0 %v229
    %346 = vmatpush1.bf16.msra.mxu0 %v228
    %347 = vmatprep.subr.bf16.mxu0 0
    %348 = vmatpush2.bf16.msra.mxu0 0
    %349 = vmatprep.subr.bf16.mxu0 0
    %350 = vmatpush2.bf16.msra.mxu0 0
    %351 = vmatprep.subr.bf16.mxu0 0
    %352 = vmatpush2.bf16.msra.mxu0 0
    %353 = vmatprep.subr.bf16.mxu0 0
    %354 = vmatpush2.bf16.msra.mxu0 0
    %355 = vmatprep.subr.bf16.mxu0 0
    %356 = vmatpush2.bf16.msra.mxu0 0
    %357 = vmatprep.subr.bf16.mxu0 0
    %358 = vmatpush2.bf16.msra.mxu0 0
    %359 = vmatprep.subr.bf16.mxu0 0
    %360 = vmatpush2.bf16.msra.mxu0 0
    %361 = vmatprep.subr.bf16.mxu0 0
    %362 = vmatpush2.bf16.msra.mxu0 0
    %363 = vmatprep.mubr.bf16.mxu0 0
    %364 = vmatmul.mubr.bf16.gmra.mxu0 %v81
    %v365 = vpop.f32.mrf.mxu0
    %v366 = vadd.f32 %v125, %v365
    %v367 = vpop.f32.mrf.mxu0
    %v368 = vadd.f32 %v129, %v367
    %v369 = vpop.f32.mrf.mxu0
    %v370 = vpop.f32.mrf.mxu0
    %371 = vdwg.mxu0
    %v372 = vmul.f32 %v325, 0.2
    %v373 = vmul.f32 %v327, 0.2
    %v374 = vmul.f32 %v366, 0.2
    %v375 = vmul.f32 %v368, 0.2
    %v376 = vmax.f32 %v325, %v372
    %v377 = vmax.f32 %v327, %v373
    %v378 = vmax.f32 %v366, %v374
    %v379 = vmax.f32 %v368, %v375
    %v380 = vpack.c.bf16 %v376, %v376
    %v381 = vpack.c.bf16 %v377, %v377
    %v382 = vpack.c.bf16 %v378, %v378
    %v383 = vpack.c.bf16 %v379, %v379
    %v384 = vld [vmem:[#allocation7] sm:$0xff]
    %v385 = vld [vmem:[#allocation7 + $0x8] sm:$0xff]
    %v386 = vld [vmem:[#allocation7 + $0x10] sm:$0xff]
    %v387 = vld [vmem:[#allocation7 + $0x18] sm:$0xff]
    %v388 = vld [vmem:[#allocation7 + $0x20] sm:$0xff]
    %v389 = vld [vmem:[#allocation7 + $0x28] sm:$0xff]
    %v390 = vld [vmem:[#allocation7 + $0x30] sm:$0xff]
    %v391 = vld [vmem:[#allocation7 + $0x38] sm:$0xff]
    %v392 = vld [vmem:[#allocation7 + $0x40] sm:$0xff]
    %v393 = vld [vmem:[#allocation7 + $0x48] sm:$0xff]
    %v394 = vld [vmem:[#allocation7 + $0x50] sm:$0xff]
    %v395 = vld [vmem:[#allocation7 + $0x58] sm:$0xff]
    %v396 = vld [vmem:[#allocation7 + $0x60] sm:$0xff]
    %v397 = vld [vmem:[#allocation7 + $0x68] sm:$0xff]
    %v398 = vld [vmem:[#allocation7 + $0x70] sm:$0xff]
    %v399 = vld [vmem:[#allocation7 + $0x78] sm:$0xff]
    %v400 = vld [vmem:[#allocation7 + $0x80] sm:$0xff]
    %v401 = vld [vmem:[#allocation7 + $0x88] sm:$0xff]
    %v402 = vld [vmem:[#allocation7 + $0x90] sm:$0xff]
    %v403 = vld [vmem:[#allocation7 + $0x98] sm:$0xff]
    %v404 = vld [vmem:[#allocation7 + $0xa0] sm:$0xff]
    %v405 = vld [vmem:[#allocation7 + $0xa8] sm:$0xff]
    %v406 = vld [vmem:[#allocation7 + $0xb0] sm:$0xff]
    %v407 = vld [vmem:[#allocation7 + $0xb8] sm:$0xff]
    %v408 = vld [vmem:[#allocation7 + $0xc0] sm:$0xff]
    %v409 = vld [vmem:[#allocation7 + $0xc8] sm:$0xff]
    %v410 = vld [vmem:[#allocation7 + $0xd0] sm:$0xff]
    %v411 = vld [vmem:[#allocation7 + $0xd8] sm:$0xff]
    %v412 = vld [vmem:[#allocation7 + $0xe0] sm:$0xff]
    %v413 = vld [vmem:[#allocation7 + $0xe8] sm:$0xff]
    %v414 = vld [vmem:[#allocation7 + $0xf0] sm:$0xff]
    %v415 = vld [vmem:[#allocation7 + $0xf8] sm:$0xff]
    %v416 = vld [vmem:[#allocation7 + $0x100] sm:$0xff]
    %v417 = vld [vmem:[#allocation7 + $0x108] sm:$0xff]
    %v418 = vld [vmem:[#allocation7 + $0x110] sm:$0xff]
    %v419 = vld [vmem:[#allocation7 + $0x118] sm:$0xff]
    %v420 = vld [vmem:[#allocation7 + $0x120] sm:$0xff]
    %v421 = vld [vmem:[#allocation7 + $0x128] sm:$0xff]
    %v422 = vld [vmem:[#allocation7 + $0x130] sm:$0xff]
    %v423 = vld [vmem:[#allocation7 + $0x138] sm:$0xff]
    %v424 = vld [vmem:[#allocation7 + $0x140] sm:$0xff]
    %v425 = vld [vmem:[#allocation7 + $0x148] sm:$0xff]
    %v426 = vld [vmem:[#allocation7 + $0x150] sm:$0xff]
    %v427 = vld [vmem:[#allocation7 + $0x158] sm:$0xff]
    %v428 = vld [vmem:[#allocation7 + $0x160] sm:$0xff]
    %v429 = vld [vmem:[#allocation7 + $0x168] sm:$0xff]
    %v430 = vld [vmem:[#allocation7 + $0x170] sm:$0xff]
    %v431 = vld [vmem:[#allocation7 + $0x178] sm:$0xff]
    %v432 = vld [vmem:[#allocation7 + $0x180] sm:$0xff]
    %v433 = vld [vmem:[#allocation7 + $0x188] sm:$0xff]
    %v434 = vld [vmem:[#allocation7 + $0x190] sm:$0xff]
    %v435 = vld [vmem:[#allocation7 + $0x198] sm:$0xff]
    %v436 = vld [vmem:[#allocation7 + $0x1a0] sm:$0xff]
    %v437 = vld [vmem:[#allocation7 + $0x1a8] sm:$0xff]
    %v438 = vld [vmem:[#allocation7 + $0x1b0] sm:$0xff]
    %v439 = vld [vmem:[#allocation7 + $0x1b8] sm:$0xff]
    %v440 = vld [vmem:[#allocation7 + $0x1c0] sm:$0xff]
    %v441 = vld [vmem:[#allocation7 + $0x1c8] sm:$0xff]
    %v442 = vld [vmem:[#allocation7 + $0x1d0] sm:$0xff]
    %v443 = vld [vmem:[#allocation7 + $0x1d8] sm:$0xff]
    %v444 = vld [vmem:[#allocation7 + $0x1e0] sm:$0xff]
    %v445 = vld [vmem:[#allocation7 + $0x1e8] sm:$0xff]
    %v446 = vld [vmem:[#allocation7 + $0x1f0] sm:$0xff]
    %v447 = vld [vmem:[#allocation7 + $0x1f8] sm:$0xff]
    %v448 = vld [vmem:[#allocation7 + $0x200] sm:$0xff]
    %v449 = vld [vmem:[#allocation7 + $0x208] sm:$0xff]
    %v450 = vld [vmem:[#allocation7 + $0x210] sm:$0xff]
    %v451 = vld [vmem:[#allocation7 + $0x218] sm:$0xff]
    %v452 = vld [vmem:[#allocation7 + $0x220] sm:$0xff]
    %v453 = vld [vmem:[#allocation7 + $0x228] sm:$0xff]
    %v454 = vld [vmem:[#allocation7 + $0x230] sm:$0xff]
    %v455 = vld [vmem:[#allocation7 + $0x238] sm:$0xff]
    %v456 = vld [vmem:[#allocation7 + $0x240] sm:$0xff]
    %v457 = vld [vmem:[#allocation7 + $0x248] sm:$0xff]
    %v458 = vld [vmem:[#allocation7 + $0x250] sm:$0xff]
    %v459 = vld [vmem:[#allocation7 + $0x258] sm:$0xff]
    %v460 = vld [vmem:[#allocation7 + $0x260] sm:$0xff]
    %v461 = vld [vmem:[#allocation7 + $0x268] sm:$0xff]
    %v462 = vld [vmem:[#allocation7 + $0x270] sm:$0xff]
    %v463 = vld [vmem:[#allocation7 + $0x278] sm:$0xff]
    %v464 = vld [vmem:[#allocation7 + $0x280] sm:$0xff]
    %v465 = vld [vmem:[#allocation7 + $0x288] sm:$0xff]
    %v466 = vld [vmem:[#allocation7 + $0x290] sm:$0xff]
    %v467 = vld [vmem:[#allocation7 + $0x298] sm:$0xff]
    %v468 = vld [vmem:[#allocation7 + $0x2a0] sm:$0xff]
    %v469 = vld [vmem:[#allocation7 + $0x2a8] sm:$0xff]
    %v470 = vld [vmem:[#allocation7 + $0x2b0] sm:$0xff]
    %v471 = vld [vmem:[#allocation7 + $0x2b8] sm:$0xff]
    %v472 = vld [vmem:[#allocation7 + $0x2c0] sm:$0xff]
    %v473 = vld [vmem:[#allocation7 + $0x2c8] sm:$0xff]
    %v474 = vld [vmem:[#allocation7 + $0x2d0] sm:$0xff]
    %v475 = vld [vmem:[#allocation7 + $0x2d8] sm:$0xff]
    %v476 = vld [vmem:[#allocation7 + $0x2e0] sm:$0xff]
    %v477 = vld [vmem:[#allocation7 + $0x2e8] sm:$0xff]
    %v478 = vld [vmem:[#allocation7 + $0x2f0] sm:$0xff]
    %v479 = vld [vmem:[#allocation7 + $0x2f8] sm:$0xff]
    %v480 = vld [vmem:[#allocation7 + $0x300] sm:$0xff]
    %v481 = vld [vmem:[#allocation7 + $0x308] sm:$0xff]
    %v482 = vld [vmem:[#allocation7 + $0x310] sm:$0xff]
    %v483 = vld [vmem:[#allocation7 + $0x318] sm:$0xff]
    %v484 = vld [vmem:[#allocation7 + $0x320] sm:$0xff]
    %v485 = vld [vmem:[#allocation7 + $0x328] sm:$0xff]
    %v486 = vld [vmem:[#allocation7 + $0x330] sm:$0xff]
    %v487 = vld [vmem:[#allocation7 + $0x338] sm:$0xff]
    %v488 = vld [vmem:[#allocation7 + $0x340] sm:$0xff]
    %v489 = vld [vmem:[#allocation7 + $0x348] sm:$0xff]
    %v490 = vld [vmem:[#allocation7 + $0x350] sm:$0xff]
    %v491 = vld [vmem:[#allocation7 + $0x358] sm:$0xff]
    %v492 = vld [vmem:[#allocation7 + $0x360] sm:$0xff]
    %v493 = vld [vmem:[#allocation7 + $0x368] sm:$0xff]
    %v494 = vld [vmem:[#allocation7 + $0x370] sm:$0xff]
    %v495 = vld [vmem:[#allocation7 + $0x378] sm:$0xff]
    %v496 = vld [vmem:[#allocation7 + $0x380] sm:$0xff]
    %v497 = vld [vmem:[#allocation7 + $0x388] sm:$0xff]
    %v498 = vld [vmem:[#allocation7 + $0x390] sm:$0xff]
    %v499 = vld [vmem:[#allocation7 + $0x398] sm:$0xff]
    %v500 = vld [vmem:[#allocation7 + $0x3a0] sm:$0xff]
    %v501 = vld [vmem:[#allocation7 + $0x3a8] sm:$0xff]
    %v502 = vld [vmem:[#allocation7 + $0x3b0] sm:$0xff]
    %v503 = vld [vmem:[#allocation7 + $0x3b8] sm:$0xff]
    %v504 = vld [vmem:[#allocation7 + $0x3c0] sm:$0xff]
    %v505 = vld [vmem:[#allocation7 + $0x3c8] sm:$0xff]
    %v506 = vld [vmem:[#allocation7 + $0x3d0] sm:$0xff]
    %v507 = vld [vmem:[#allocation7 + $0x3d8] sm:$0xff]
    %v508 = vld [vmem:[#allocation7 + $0x3e0] sm:$0xff]
    %v509 = vld [vmem:[#allocation7 + $0x3e8] sm:$0xff]
    %v510 = vld [vmem:[#allocation7 + $0x3f0] sm:$0xff]
    %v511 = vld [vmem:[#allocation7 + $0x3f8] sm:$0xff]
    %v512 = vlaneseq
    %v513 = vshrl.u32 %v512, 7
    %v514 = vsub.s32 1, %v513
    %v515 = vrot.slane %v77, %v514
    %v516 = vlaneseq
    %v517 = vshrl.u32 %v516, 7
    %v518 = vsub.s32 1, %v517
    %v519 = vrot.slane %v78, %v518
    %v520 = vlaneseq
    %v521 = vshrl.u32 %v520, 7
    %v522 = vsub.s32 1, %v521
    %v523 = vrot.slane %v79, %v522
    %v524 = vlaneseq
    %v525 = vshrl.u32 %v524, 7
    %v526 = vsub.s32 1, %v525
    %v527 = vrot.slane %v80, %v526
    %v656 = vunpack.c.l.b16 %v384
    %v657 = vunpack.c.h.b16 %v384
    %v658 = vunpack.c.l.b16 %v385
    %v659 = vunpack.c.h.b16 %v385
    %v660 = vunpack.c.l.b16 %v386
    %v661 = vunpack.c.h.b16 %v386
    %v662 = vunpack.c.l.b16 %v387
    %v663 = vunpack.c.h.b16 %v387
    %v664 = vunpack.c.l.b16 %v388
    %v665 = vunpack.c.h.b16 %v388
    %v666 = vunpack.c.l.b16 %v389
    %v667 = vunpack.c.h.b16 %v389
    %v668 = vunpack.c.l.b16 %v390
    %v669 = vunpack.c.h.b16 %v390
    %v670 = vunpack.c.l.b16 %v391
    %v671 = vunpack.c.h.b16 %v391
    %v672 = vunpack.c.l.b16 %v392
    %v673 = vunpack.c.h.b16 %v392
    %v674 = vunpack.c.l.b16 %v393
    %v675 = vunpack.c.h.b16 %v393
    %v676 = vunpack.c.l.b16 %v394
    %v677 = vunpack.c.h.b16 %v394
    %v678 = vunpack.c.l.b16 %v395
    %v679 = vunpack.c.h.b16 %v395
    %v680 = vunpack.c.l.b16 %v396
    %v681 = vunpack.c.h.b16 %v396
    %v682 = vunpack.c.l.b16 %v397
    %v683 = vunpack.c.h.b16 %v397
    %v684 = vunpack.c.l.b16 %v398
    %v685 = vunpack.c.h.b16 %v398
    %v686 = vunpack.c.l.b16 %v399
    %v687 = vunpack.c.h.b16 %v399
    %v688 = vunpack.c.l.b16 %v400
    %v689 = vunpack.c.h.b16 %v400
    %v690 = vunpack.c.l.b16 %v401
    %v691 = vunpack.c.h.b16 %v401
    %v692 = vunpack.c.l.b16 %v402
    %v693 = vunpack.c.h.b16 %v402
    %v694 = vunpack.c.l.b16 %v403
    %v695 = vunpack.c.h.b16 %v403
    %v696 = vunpack.c.l.b16 %v404
    %v697 = vunpack.c.h.b16 %v404
    %v698 = vunpack.c.l.b16 %v405
    %v699 = vunpack.c.h.b16 %v405
    %v700 = vunpack.c.l.b16 %v406
    %v701 = vunpack.c.h.b16 %v406
    %v702 = vunpack.c.l.b16 %v407
    %v703 = vunpack.c.h.b16 %v407
    %v704 = vunpack.c.l.b16 %v408
    %v705 = vunpack.c.h.b16 %v408
    %v706 = vunpack.c.l.b16 %v409
    %v707 = vunpack.c.h.b16 %v409
    %v708 = vunpack.c.l.b16 %v410
    %v709 = vunpack.c.h.b16 %v410
    %v710 = vunpack.c.l.b16 %v411
    %v711 = vunpack.c.h.b16 %v411
    %v712 = vunpack.c.l.b16 %v412
    %v713 = vunpack.c.h.b16 %v412
    %v714 = vunpack.c.l.b16 %v413
    %v715 = vunpack.c.h.b16 %v413
    %v716 = vunpack.c.l.b16 %v414
    %v717 = vunpack.c.h.b16 %v414
    %v718 = vunpack.c.l.b16 %v415
    %v719 = vunpack.c.h.b16 %v415
    %v720 = vunpack.c.l.b16 %v416
    %v721 = vunpack.c.h.b16 %v416
    %v722 = vunpack.c.l.b16 %v417
    %v723 = vunpack.c.h.b16 %v417
    %v724 = vunpack.c.l.b16 %v418
    %v725 = vunpack.c.h.b16 %v418
    %v726 = vunpack.c.l.b16 %v419
    %v727 = vunpack.c.h.b16 %v419
    %v728 = vunpack.c.l.b16 %v420
    %v729 = vunpack.c.h.b16 %v420
    %v730 = vunpack.c.l.b16 %v421
    %v731 = vunpack.c.h.b16 %v421
    %v732 = vunpack.c.l.b16 %v422
    %v733 = vunpack.c.h.b16 %v422
    %v734 = vunpack.c.l.b16 %v423
    %v735 = vunpack.c.h.b16 %v423
    %v736 = vunpack.c.l.b16 %v424
    %v737 = vunpack.c.h.b16 %v424
    %v738 = vunpack.c.l.b16 %v425
    %v739 = vunpack.c.h.b16 %v425
    %v740 = vunpack.c.l.b16 %v426
    %v741 = vunpack.c.h.b16 %v426
    %v742 = vunpack.c.l.b16 %v427
    %v743 = vunpack.c.h.b16 %v427
    %v744 = vunpack.c.l.b16 %v428
    %v745 = vunpack.c.h.b16 %v428
    %v746 = vunpack.c.l.b16 %v429
    %v747 = vunpack.c.h.b16 %v429
    %v748 = vunpack.c.l.b16 %v430
    %v749 = vunpack.c.h.b16 %v430
    %v750 = vunpack.c.l.b16 %v431
    %v751 = vunpack.c.h.b16 %v431
    %v752 = vunpack.c.l.b16 %v432
    %v753 = vunpack.c.h.b16 %v432
    %v754 = vunpack.c.l.b16 %v433
    %v755 = vunpack.c.h.b16 %v433
    %v756 = vunpack.c.l.b16 %v434
    %v757 = vunpack.c.h.b16 %v434
    %v758 = vunpack.c.l.b16 %v435
    %v759 = vunpack.c.h.b16 %v435
    %v760 = vunpack.c.l.b16 %v436
    %v761 = vunpack.c.h.b16 %v436
    %v762 = vunpack.c.l.b16 %v437
    %v763 = vunpack.c.h.b16 %v437
    %v764 = vunpack.c.l.b16 %v438
    %v765 = vunpack.c.h.b16 %v438
    %v766 = vunpack.c.l.b16 %v439
    %v767 = vunpack.c.h.b16 %v439
    %v768 = vunpack.c.l.b16 %v440
    %v769 = vunpack.c.h.b16 %v440
    %v770 = vunpack.c.l.b16 %v441
    %v771 = vunpack.c.h.b16 %v441
    %v772 = vunpack.c.l.b16 %v442
    %v773 = vunpack.c.h.b16 %v442
    %v774 = vunpack.c.l.b16 %v443
    %v775 = vunpack.c.h.b16 %v443
    %v776 = vunpack.c.l.b16 %v444
    %v777 = vunpack.c.h.b16 %v444
    %v778 = vunpack.c.l.b16 %v445
    %v779 = vunpack.c.h.b16 %v445
    %v780 = vunpack.c.l.b16 %v446
    %v781 = vunpack.c.h.b16 %v446
    %v782 = vunpack.c.l.b16 %v447
    %v783 = vunpack.c.h.b16 %v447
    %v784 = vunpack.c.l.b16 %v448
    %v785 = vunpack.c.h.b16 %v448
    %v786 = vunpack.c.l.b16 %v449
    %v787 = vunpack.c.h.b16 %v449
    %v788 = vunpack.c.l.b16 %v450
    %v789 = vunpack.c.h.b16 %v450
    %v790 = vunpack.c.l.b16 %v451
    %v791 = vunpack.c.h.b16 %v451
    %v792 = vunpack.c.l.b16 %v452
    %v793 = vunpack.c.h.b16 %v452
    %v794 = vunpack.c.l.b16 %v453
    %v795 = vunpack.c.h.b16 %v453
    %v796 = vunpack.c.l.b16 %v454
    %v797 = vunpack.c.h.b16 %v454
    %v798 = vunpack.c.l.b16 %v455
    %v799 = vunpack.c.h.b16 %v455
    %v800 = vunpack.c.l.b16 %v456
    %v801 = vunpack.c.h.b16 %v456
    %v802 = vunpack.c.l.b16 %v457
    %v803 = vunpack.c.h.b16 %v457
    %v804 = vunpack.c.l.b16 %v458
    %v805 = vunpack.c.h.b16 %v458
    %v806 = vunpack.c.l.b16 %v459
    %v807 = vunpack.c.h.b16 %v459
    %v808 = vunpack.c.l.b16 %v460
    %v809 = vunpack.c.h.b16 %v460
    %v810 = vunpack.c.l.b16 %v461
    %v811 = vunpack.c.h.b16 %v461
    %v812 = vunpack.c.l.b16 %v462
    %v813 = vunpack.c.h.b16 %v462
    %v814 = vunpack.c.l.b16 %v463
    %v815 = vunpack.c.h.b16 %v463
    %v816 = vunpack.c.l.b16 %v464
    %v817 = vunpack.c.h.b16 %v464
    %v818 = vunpack.c.l.b16 %v465
    %v819 = vunpack.c.h.b16 %v465
    %v820 = vunpack.c.l.b16 %v466
    %v821 = vunpack.c.h.b16 %v466
    %v822 = vunpack.c.l.b16 %v467
    %v823 = vunpack.c.h.b16 %v467
    %v824 = vunpack.c.l.b16 %v468
    %v825 = vunpack.c.h.b16 %v468
    %v826 = vunpack.c.l.b16 %v469
    %v827 = vunpack.c.h.b16 %v469
    %v828 = vunpack.c.l.b16 %v470
    %v829 = vunpack.c.h.b16 %v470
    %v830 = vunpack.c.l.b16 %v471
    %v831 = vunpack.c.h.b16 %v471
    %v832 = vunpack.c.l.b16 %v472
    %v833 = vunpack.c.h.b16 %v472
    %v834 = vunpack.c.l.b16 %v473
    %v835 = vunpack.c.h.b16 %v473
    %v836 = vunpack.c.l.b16 %v474
    %v837 = vunpack.c.h.b16 %v474
    %v838 = vunpack.c.l.b16 %v475
    %v839 = vunpack.c.h.b16 %v475
    %v840 = vunpack.c.l.b16 %v476
    %v841 = vunpack.c.h.b16 %v476
    %v842 = vunpack.c.l.b16 %v477
    %v843 = vunpack.c.h.b16 %v477
    %v844 = vunpack.c.l.b16 %v478
    %v845 = vunpack.c.h.b16 %v478
    %v846 = vunpack.c.l.b16 %v479
    %v847 = vunpack.c.h.b16 %v479
    %v848 = vunpack.c.l.b16 %v480
    %v849 = vunpack.c.h.b16 %v480
    %v850 = vunpack.c.l.b16 %v481
    %v851 = vunpack.c.h.b16 %v481
    %v852 = vunpack.c.l.b16 %v482
    %v853 = vunpack.c.h.b16 %v482
    %v854 = vunpack.c.l.b16 %v483
    %v855 = vunpack.c.h.b16 %v483
    %v856 = vunpack.c.l.b16 %v484
    %v857 = vunpack.c.h.b16 %v484
    %v858 = vunpack.c.l.b16 %v485
    %v859 = vunpack.c.h.b16 %v485
    %v860 = vunpack.c.l.b16 %v486
    %v861 = vunpack.c.h.b16 %v486
    %v862 = vunpack.c.l.b16 %v487
    %v863 = vunpack.c.h.b16 %v487
    %v864 = vunpack.c.l.b16 %v488
    %v865 = vunpack.c.h.b16 %v488
    %v866 = vunpack.c.l.b16 %v489
    %v867 = vunpack.c.h.b16 %v489
    %v868 = vunpack.c.l.b16 %v490
    %v869 = vunpack.c.h.b16 %v490
    %v870 = vunpack.c.l.b16 %v491
    %v871 = vunpack.c.h.b16 %v491
    %v872 = vunpack.c.l.b16 %v492
    %v873 = vunpack.c.h.b16 %v492
    %v874 = vunpack.c.l.b16 %v493
    %v875 = vunpack.c.h.b16 %v493
    %v876 = vunpack.c.l.b16 %v494
    %v877 = vunpack.c.h.b16 %v494
    %v878 = vunpack.c.l.b16 %v495
    %v879 = vunpack.c.h.b16 %v495
    %v880 = vunpack.c.l.b16 %v496
    %v881 = vunpack.c.h.b16 %v496
    %v882 = vunpack.c.l.b16 %v497
    %v883 = vunpack.c.h.b16 %v497
    %v884 = vunpack.c.l.b16 %v498
    %v885 = vunpack.c.h.b16 %v498
    %v886 = vunpack.c.l.b16 %v499
    %v887 = vunpack.c.h.b16 %v499
    %v888 = vunpack.c.l.b16 %v500
    %v889 = vunpack.c.h.b16 %v500
    %v890 = vunpack.c.l.b16 %v501
    %v891 = vunpack.c.h.b16 %v501
    %v892 = vunpack.c.l.b16 %v502
    %v893 = vunpack.c.h.b16 %v502
    %v894 = vunpack.c.l.b16 %v503
    %v895 = vunpack.c.h.b16 %v503
    %v896 = vunpack.c.l.b16 %v504
    %v897 = vunpack.c.h.b16 %v504
    %v898 = vunpack.c.l.b16 %v505
    %v899 = vunpack.c.h.b16 %v505
    %v900 = vunpack.c.l.b16 %v506
    %v901 = vunpack.c.h.b16 %v506
    %v902 = vunpack.c.l.b16 %v507
    %v903 = vunpack.c.h.b16 %v507
    %v904 = vunpack.c.l.b16 %v508
    %v905 = vunpack.c.h.b16 %v508
    %v906 = vunpack.c.l.b16 %v509
    %v907 = vunpack.c.h.b16 %v509
    %v908 = vunpack.c.l.b16 %v510
    %v909 = vunpack.c.h.b16 %v510
    %v910 = vunpack.c.l.b16 %v511
    %v911 = vunpack.c.h.b16 %v511
    %v912 = vpack.c.b16 %v660, %v656
    %v913 = vpack.c.b16 %v661, %v657
    %v914 = vpack.c.b16 %v662, %v658
    %v915 = vpack.c.b16 %v663, %v659
    %v916 = vpack.c.b16 %v668, %v664
    %v917 = vpack.c.b16 %v669, %v665
    %v918 = vpack.c.b16 %v670, %v666
    %v919 = vpack.c.b16 %v671, %v667
    %v920 = vpack.c.b16 %v676, %v672
    %v921 = vpack.c.b16 %v677, %v673
    %v922 = vpack.c.b16 %v678, %v674
    %v923 = vpack.c.b16 %v679, %v675
    %v924 = vpack.c.b16 %v684, %v680
    %v925 = vpack.c.b16 %v685, %v681
    %v926 = vpack.c.b16 %v686, %v682
    %v927 = vpack.c.b16 %v687, %v683
    %v928 = vpack.c.b16 %v692, %v688
    %v929 = vpack.c.b16 %v693, %v689
    %v930 = vpack.c.b16 %v694, %v690
    %v931 = vpack.c.b16 %v695, %v691
    %v932 = vpack.c.b16 %v700, %v696
    %v933 = vpack.c.b16 %v701, %v697
    %v934 = vpack.c.b16 %v702, %v698
    %v935 = vpack.c.b16 %v703, %v699
    %v936 = vpack.c.b16 %v708, %v704
    %v937 = vpack.c.b16 %v709, %v705
    %v938 = vpack.c.b16 %v710, %v706
    %v939 = vpack.c.b16 %v711, %v707
    %v940 = vpack.c.b16 %v716, %v712
    %v941 = vpack.c.b16 %v717, %v713
    %v942 = vpack.c.b16 %v718, %v714
    %v943 = vpack.c.b16 %v719, %v715
    %v944 = vpack.c.b16 %v724, %v720
    %v945 = vpack.c.b16 %v725, %v721
    %v946 = vpack.c.b16 %v726, %v722
    %v947 = vpack.c.b16 %v727, %v723
    %v948 = vpack.c.b16 %v732, %v728
    %v949 = vpack.c.b16 %v733, %v729
    %v950 = vpack.c.b16 %v734, %v730
    %v951 = vpack.c.b16 %v735, %v731
    %v952 = vpack.c.b16 %v740, %v736
    %v953 = vpack.c.b16 %v741, %v737
    %v954 = vpack.c.b16 %v742, %v738
    %v955 = vpack.c.b16 %v743, %v739
    %v956 = vpack.c.b16 %v748, %v744
    %v957 = vpack.c.b16 %v749, %v745
    %v958 = vpack.c.b16 %v750, %v746
    %v959 = vpack.c.b16 %v751, %v747
    %v960 = vpack.c.b16 %v756, %v752
    %v961 = vpack.c.b16 %v757, %v753
    %v962 = vpack.c.b16 %v758, %v754
    %v963 = vpack.c.b16 %v759, %v755
    %v964 = vpack.c.b16 %v764, %v760
    %v965 = vpack.c.b16 %v765, %v761
    %v966 = vpack.c.b16 %v766, %v762
    %v967 = vpack.c.b16 %v767, %v763
    %v968 = vpack.c.b16 %v772, %v768
    %v969 = vpack.c.b16 %v773, %v769
    %v970 = vpack.c.b16 %v774, %v770
    %v971 = vpack.c.b16 %v775, %v771
    %v972 = vpack.c.b16 %v780, %v776
    %v973 = vpack.c.b16 %v781, %v777
    %v974 = vpack.c.b16 %v782, %v778
    %v975 = vpack.c.b16 %v783, %v779
    %v976 = vpack.c.b16 %v788, %v784
    %v977 = vpack.c.b16 %v789, %v785
    %v978 = vpack.c.b16 %v790, %v786
    %v979 = vpack.c.b16 %v791, %v787
    %v980 = vpack.c.b16 %v796, %v792
    %v981 = vpack.c.b16 %v797, %v793
    %v982 = vpack.c.b16 %v798, %v794
    %v983 = vpack.c.b16 %v799, %v795
    %v984 = vpack.c.b16 %v804, %v800
    %v985 = vpack.c.b16 %v805, %v801
    %v986 = vpack.c.b16 %v806, %v802
    %v987 = vpack.c.b16 %v807, %v803
    %v988 = vpack.c.b16 %v812, %v808
    %v989 = vpack.c.b16 %v813, %v809
    %v990 = vpack.c.b16 %v814, %v810
    %v991 = vpack.c.b16 %v815, %v811
    %v992 = vpack.c.b16 %v820, %v816
    %v993 = vpack.c.b16 %v821, %v817
    %v994 = vpack.c.b16 %v822, %v818
    %v995 = vpack.c.b16 %v823, %v819
    %v996 = vpack.c.b16 %v828, %v824
    %v997 = vpack.c.b16 %v829, %v825
    %v998 = vpack.c.b16 %v830, %v826
    %v999 = vpack.c.b16 %v831, %v827
    %v1000 = vpack.c.b16 %v836, %v832
    %v1001 = vpack.c.b16 %v837, %v833
    %v1002 = vpack.c.b16 %v838, %v834
    %v1003 = vpack.c.b16 %v839, %v835
    %v1004 = vpack.c.b16 %v844, %v840
    %v1005 = vpack.c.b16 %v845, %v841
    %v1006 = vpack.c.b16 %v846, %v842
    %v1007 = vpack.c.b16 %v847, %v843
    %v1008 = vpack.c.b16 %v852, %v848
    %v1009 = vpack.c.b16 %v853, %v849
    %v1010 = vpack.c.b16 %v854, %v850
    %v1011 = vpack.c.b16 %v855, %v851
    %v1012 = vpack.c.b16 %v860, %v856
    %v1013 = vpack.c.b16 %v861, %v857
    %v1014 = vpack.c.b16 %v862, %v858
    %v1015 = vpack.c.b16 %v863, %v859
    %v1016 = vpack.c.b16 %v868, %v864
    %v1017 = vpack.c.b16 %v869, %v865
    %v1018 = vpack.c.b16 %v870, %v866
    %v1019 = vpack.c.b16 %v871, %v867
    %v1020 = vpack.c.b16 %v876, %v872
    %v1021 = vpack.c.b16 %v877, %v873
    %v1022 = vpack.c.b16 %v878, %v874
    %v1023 = vpack.c.b16 %v879, %v875
    %v1024 = vpack.c.b16 %v884, %v880
    %v1025 = vpack.c.b16 %v885, %v881
    %v1026 = vpack.c.b16 %v886, %v882
    %v1027 = vpack.c.b16 %v887, %v883
    %v1028 = vpack.c.b16 %v892, %v888
    %v1029 = vpack.c.b16 %v893, %v889
    %v1030 = vpack.c.b16 %v894, %v890
    %v1031 = vpack.c.b16 %v895, %v891
    %v1032 = vpack.c.b16 %v900, %v896
    %v1033 = vpack.c.b16 %v901, %v897
    %v1034 = vpack.c.b16 %v902, %v898
    %v1035 = vpack.c.b16 %v903, %v899
    %v1036 = vpack.c.b16 %v908, %v904
    %v1037 = vpack.c.b16 %v909, %v905
    %v1038 = vpack.c.b16 %v910, %v906
    %v1039 = vpack.c.b16 %v911, %v907
    %1168 = vmatprep.subr.bf16.mxu0 %v941
    %1169 = vmatpush1.bf16.msra.mxu0 %v940
    %1170 = vmatprep.subr.bf16.mxu0 %v937
    %1171 = vmatpush1.bf16.msra.mxu0 %v936
    %1172 = vmatprep.subr.bf16.mxu0 %v933
    %1173 = vmatpush1.bf16.msra.mxu0 %v932
    %1174 = vmatprep.subr.bf16.mxu0 %v929
    %1175 = vmatpush1.bf16.msra.mxu0 %v928
    %1176 = vmatprep.subr.bf16.mxu0 %v925
    %1177 = vmatpush1.bf16.msra.mxu0 %v924
    %1178 = vmatprep.subr.bf16.mxu0 %v921
    %1179 = vmatpush1.bf16.msra.mxu0 %v920
    %1180 = vmatprep.subr.bf16.mxu0 %v917
    %1181 = vmatpush1.bf16.msra.mxu0 %v916
    %1182 = vmatprep.subr.bf16.mxu0 %v913
    %1183 = vmatpush1.bf16.msra.mxu0 %v912
    %1184 = vmatprep.subr.bf16.mxu0 %v973
    %1185 = vmatpush2.bf16.msra.mxu0 %v972
    %1186 = vmatprep.subr.bf16.mxu0 %v969
    %1187 = vmatpush2.bf16.msra.mxu0 %v968
    %1188 = vmatprep.subr.bf16.mxu0 %v965
    %1189 = vmatpush2.bf16.msra.mxu0 %v964
    %1190 = vmatprep.subr.bf16.mxu0 %v961
    %1191 = vmatpush2.bf16.msra.mxu0 %v960
    %1192 = vmatprep.subr.bf16.mxu0 %v957
    %1193 = vmatpush2.bf16.msra.mxu0 %v956
    %1194 = vmatprep.subr.bf16.mxu0 %v953
    %1195 = vmatpush2.bf16.msra.mxu0 %v952
    %1196 = vmatprep.subr.bf16.mxu0 %v949
    %1197 = vmatpush2.bf16.msra.mxu0 %v948
    %1198 = vmatprep.subr.bf16.mxu0 %v945
    %1199 = vmatpush2.bf16.msra.mxu0 %v944
    %1200 = vmatprep.mubr.bf16.mxu0 %v381
    %1201 = vmatmul.mubr.bf16.gmra.mxu0 %v380
    %v1202 = vpop.f32.mrf.mxu0
    %v1203 = vadd.f32 %v515, %v1202
    %v1204 = vpop.f32.mrf.mxu0
    %v1205 = vadd.f32 %v519, %v1204
    %v1206 = vpop.f32.mrf.mxu0
    %v1207 = vpop.f32.mrf.mxu0
    %1208 = vdwg.mxu0
    %1209 = vmatprep.subr.bf16.mxu0 %v1005
    %1210 = vmatpush1.bf16.msra.mxu0 %v1004
    %1211 = vmatprep.subr.bf16.mxu0 %v1001
    %1212 = vmatpush1.bf16.msra.mxu0 %v1000
    %1213 = vmatprep.subr.bf16.mxu0 %v997
    %1214 = vmatpush1.bf16.msra.mxu0 %v996
    %1215 = vmatprep.subr.bf16.mxu0 %v993
    %1216 = vmatpush1.bf16.msra.mxu0 %v992
    %1217 = vmatprep.subr.bf16.mxu0 %v989
    %1218 = vmatpush1.bf16.msra.mxu0 %v988
    %1219 = vmatprep.subr.bf16.mxu0 %v985
    %1220 = vmatpush1.bf16.msra.mxu0 %v984
    %1221 = vmatprep.subr.bf16.mxu0 %v981
    %1222 = vmatpush1.bf16.msra.mxu0 %v980
    %1223 = vmatprep.subr.bf16.mxu0 %v977
    %1224 = vmatpush1.bf16.msra.mxu0 %v976
    %1225 = vmatprep.subr.bf16.mxu0 %v1037
    %1226 = vmatpush2.bf16.msra.mxu0 %v1036
    %1227 = vmatprep.subr.bf16.mxu0 %v1033
    %1228 = vmatpush2.bf16.msra.mxu0 %v1032
    %1229 = vmatprep.subr.bf16.mxu0 %v1029
    %1230 = vmatpush2.bf16.msra.mxu0 %v1028
    %1231 = vmatprep.subr.bf16.mxu0 %v1025
    %1232 = vmatpush2.bf16.msra.mxu0 %v1024
    %1233 = vmatprep.subr.bf16.mxu0 %v1021
    %1234 = vmatpush2.bf16.msra.mxu0 %v1020
    %1235 = vmatprep.subr.bf16.mxu0 %v1017
    %1236 = vmatpush2.bf16.msra.mxu0 %v1016
    %1237 = vmatprep.subr.bf16.mxu0 %v1013
    %1238 = vmatpush2.bf16.msra.mxu0 %v1012
    %1239 = vmatprep.subr.bf16.mxu0 %v1009
    %1240 = vmatpush2.bf16.msra.mxu0 %v1008
    %1241 = vmatprep.mubr.bf16.mxu0 %v383
    %1242 = vmatmul.mubr.bf16.gmra.mxu0 %v382
    %v1243 = vpop.f32.mrf.mxu0
    %v1244 = vadd.f32 %v1203, %v1243
    %v1245 = vpop.f32.mrf.mxu0
    %v1246 = vadd.f32 %v1205, %v1245
    %v1247 = vpop.f32.mrf.mxu0
    %v1248 = vpop.f32.mrf.mxu0
    %1249 = vdwg.mxu0
    %1250 = vmatprep.subr.bf16.mxu0 %v943
    %1251 = vmatpush1.bf16.msra.mxu0 %v942
    %1252 = vmatprep.subr.bf16.mxu0 %v939
    %1253 = vmatpush1.bf16.msra.mxu0 %v938
    %1254 = vmatprep.subr.bf16.mxu0 %v935
    %1255 = vmatpush1.bf16.msra.mxu0 %v934
    %1256 = vmatprep.subr.bf16.mxu0 %v931
    %1257 = vmatpush1.bf16.msra.mxu0 %v930
    %1258 = vmatprep.subr.bf16.mxu0 %v927
    %1259 = vmatpush1.bf16.msra.mxu0 %v926
    %1260 = vmatprep.subr.bf16.mxu0 %v923
    %1261 = vmatpush1.bf16.msra.mxu0 %v922
    %1262 = vmatprep.subr.bf16.mxu0 %v919
    %1263 = vmatpush1.bf16.msra.mxu0 %v918
    %1264 = vmatprep.subr.bf16.mxu0 %v915
    %1265 = vmatpush1.bf16.msra.mxu0 %v914
    %1266 = vmatprep.subr.bf16.mxu0 %v975
    %1267 = vmatpush2.bf16.msra.mxu0 %v974
    %1268 = vmatprep.subr.bf16.mxu0 %v971
    %1269 = vmatpush2.bf16.msra.mxu0 %v970
    %1270 = vmatprep.subr.bf16.mxu0 %v967
    %1271 = vmatpush2.bf16.msra.mxu0 %v966
    %1272 = vmatprep.subr.bf16.mxu0 %v963
    %1273 = vmatpush2.bf16.msra.mxu0 %v962
    %1274 = vmatprep.subr.bf16.mxu0 %v959
    %1275 = vmatpush2.bf16.msra.mxu0 %v958
    %1276 = vmatprep.subr.bf16.mxu0 %v955
    %1277 = vmatpush2.bf16.msra.mxu0 %v954
    %1278 = vmatprep.subr.bf16.mxu0 %v951
    %1279 = vmatpush2.bf16.msra.mxu0 %v950
    %1280 = vmatprep.subr.bf16.mxu0 %v947
    %1281 = vmatpush2.bf16.msra.mxu0 %v946
    %1282 = vmatprep.mubr.bf16.mxu0 %v381
    %1283 = vmatmul.mubr.bf16.gmra.mxu0 %v380
    %v1284 = vpop.f32.mrf.mxu0
    %v1285 = vadd.f32 %v523, %v1284
    %v1286 = vpop.f32.mrf.mxu0
    %v1287 = vadd.f32 %v527, %v1286
    %v1288 = vpop.f32.mrf.mxu0
    %v1289 = vpop.f32.mrf.mxu0
    %1290 = vdwg.mxu0
    %1291 = vmatprep.subr.bf16.mxu0 %v1007
    %1292 = vmatpush1.bf16.msra.mxu0 %v1006
    %1293 = vmatprep.subr.bf16.mxu0 %v1003
    %1294 = vmatpush1.bf16.msra.mxu0 %v1002
    %1295 = vmatprep.subr.bf16.mxu0 %v999
    %1296 = vmatpush1.bf16.msra.mxu0 %v998
    %1297 = vmatprep.subr.bf16.mxu0 %v995
    %1298 = vmatpush1.bf16.msra.mxu0 %v994
    %1299 = vmatprep.subr.bf16.mxu0 %v991
    %1300 = vmatpush1.bf16.msra.mxu0 %v990
    %1301 = vmatprep.subr.bf16.mxu0 %v987
    %1302 = vmatpush1.bf16.msra.mxu0 %v986
    %1303 = vmatprep.subr.bf16.mxu0 %v983
    %1304 = vmatpush1.bf16.msra.mxu0 %v982
    %1305 = vmatprep.subr.bf16.mxu0 %v979
    %1306 = vmatpush1.bf16.msra.mxu0 %v978
    %1307 = vmatprep.subr.bf16.mxu0 %v1039
    %1308 = vmatpush2.bf16.msra.mxu0 %v1038
    %1309 = vmatprep.subr.bf16.mxu0 %v1035
    %1310 = vmatpush2.bf16.msra.mxu0 %v1034
    %1311 = vmatprep.subr.bf16.mxu0 %v1031
    %1312 = vmatpush2.bf16.msra.mxu0 %v1030
    %1313 = vmatprep.subr.bf16.mxu0 %v1027
    %1314 = vmatpush2.bf16.msra.mxu0 %v1026
    %1315 = vmatprep.subr.bf16.mxu0 %v1023
    %1316 = vmatpush2.bf16.msra.mxu0 %v1022
    %1317 = vmatprep.subr.bf16.mxu0 %v1019
    %1318 = vmatpush2.bf16.msra.mxu0 %v1018
    %1319 = vmatprep.subr.bf16.mxu0 %v1015
    %1320 = vmatpush2.bf16.msra.mxu0 %v1014
    %1321 = vmatprep.subr.bf16.mxu0 %v1011
    %1322 = vmatpush2.bf16.msra.mxu0 %v1010
    %1323 = vmatprep.mubr.bf16.mxu0 %v383
    %1324 = vmatmul.mubr.bf16.gmra.mxu0 %v382
    %v1325 = vpop.f32.mrf.mxu0
    %v1326 = vadd.f32 %v1285, %v1325
    %v1327 = vpop.f32.mrf.mxu0
    %v1328 = vadd.f32 %v1287, %v1327
    %v1329 = vpop.f32.mrf.mxu0
    %v1330 = vpop.f32.mrf.mxu0
    %1331 = vdwg.mxu0
    %v1332 = vmul.f32 %v1244, 0.2
    %v1333 = vmul.f32 %v1246, 0.2
    %v1334 = vmul.f32 %v1326, 0.2
    %v1335 = vmul.f32 %v1328, 0.2
    %v1336 = vmax.f32 %v1244, %v1332
    %v1337 = vmax.f32 %v1246, %v1333
    %v1338 = vmax.f32 %v1326, %v1334
    %v1339 = vmax.f32 %v1328, %v1335
    %v1340 = vpack.c.bf16 %v1336, %v1336
    %v1341 = vpack.c.bf16 %v1337, %v1337
    %v1342 = vpack.c.bf16 %v1338, %v1338
    %v1343 = vpack.c.bf16 %v1339, %v1339
    %s1344 = scalar_lea.vmem [#allocation7], 1024
    %v1345 = vld [vmem:[%s1344] sm:$0xff]
    %v1346 = vld [vmem:[%s1344 + $0x8] sm:$0xff]
    %v1347 = vld [vmem:[%s1344 + $0x10] sm:$0xff]
    %v1348 = vld [vmem:[%s1344 + $0x18] sm:$0xff]
    %v1349 = vld [vmem:[%s1344 + $0x20] sm:$0xff]
    %v1350 = vld [vmem:[%s1344 + $0x28] sm:$0xff]
    %v1351 = vld [vmem:[%s1344 + $0x30] sm:$0xff]
    %v1352 = vld [vmem:[%s1344 + $0x38] sm:$0xff]
    %v1353 = vld [vmem:[%s1344 + $0x40] sm:$0xff]
    %v1354 = vld [vmem:[%s1344 + $0x48] sm:$0xff]
    %v1355 = vld [vmem:[%s1344 + $0x50] sm:$0xff]
    %v1356 = vld [vmem:[%s1344 + $0x58] sm:$0xff]
    %v1357 = vld [vmem:[%s1344 + $0x60] sm:$0xff]
    %v1358 = vld [vmem:[%s1344 + $0x68] sm:$0xff]
    %v1359 = vld [vmem:[%s1344 + $0x70] sm:$0xff]
    %v1360 = vld [vmem:[%s1344 + $0x78] sm:$0xff]
    %v1361 = vld [vmem:[%s1344 + $0x80] sm:$0xff]
    %v1362 = vld [vmem:[%s1344 + $0x88] sm:$0xff]
    %v1363 = vld [vmem:[%s1344 + $0x90] sm:$0xff]
    %v1364 = vld [vmem:[%s1344 + $0x98] sm:$0xff]
    %v1365 = vld [vmem:[%s1344 + $0xa0] sm:$0xff]
    %v1366 = vld [vmem:[%s1344 + $0xa8] sm:$0xff]
    %v1367 = vld [vmem:[%s1344 + $0xb0] sm:$0xff]
    %v1368 = vld [vmem:[%s1344 + $0xb8] sm:$0xff]
    %v1369 = vld [vmem:[%s1344 + $0xc0] sm:$0xff]
    %v1370 = vld [vmem:[%s1344 + $0xc8] sm:$0xff]
    %v1371 = vld [vmem:[%s1344 + $0xd0] sm:$0xff]
    %v1372 = vld [vmem:[%s1344 + $0xd8] sm:$0xff]
    %v1373 = vld [vmem:[%s1344 + $0xe0] sm:$0xff]
    %v1374 = vld [vmem:[%s1344 + $0xe8] sm:$0xff]
    %v1375 = vld [vmem:[%s1344 + $0xf0] sm:$0xff]
    %v1376 = vld [vmem:[%s1344 + $0xf8] sm:$0xff]
    %v1377 = vld [vmem:[%s1344 + $0x100] sm:$0xff]
    %v1378 = vld [vmem:[%s1344 + $0x108] sm:$0xff]
    %v1379 = vld [vmem:[%s1344 + $0x110] sm:$0xff]
    %v1380 = vld [vmem:[%s1344 + $0x118] sm:$0xff]
    %v1381 = vld [vmem:[%s1344 + $0x120] sm:$0xff]
    %v1382 = vld [vmem:[%s1344 + $0x128] sm:$0xff]
    %v1383 = vld [vmem:[%s1344 + $0x130] sm:$0xff]
    %v1384 = vld [vmem:[%s1344 + $0x138] sm:$0xff]
    %v1385 = vld [vmem:[%s1344 + $0x140] sm:$0xff]
    %v1386 = vld [vmem:[%s1344 + $0x148] sm:$0xff]
    %v1387 = vld [vmem:[%s1344 + $0x150] sm:$0xff]
    %v1388 = vld [vmem:[%s1344 + $0x158] sm:$0xff]
    %v1389 = vld [vmem:[%s1344 + $0x160] sm:$0xff]
    %v1390 = vld [vmem:[%s1344 + $0x168] sm:$0xff]
    %v1391 = vld [vmem:[%s1344 + $0x170] sm:$0xff]
    %v1392 = vld [vmem:[%s1344 + $0x178] sm:$0xff]
    %v1393 = vld [vmem:[%s1344 + $0x180] sm:$0xff]
    %v1394 = vld [vmem:[%s1344 + $0x188] sm:$0xff]
    %v1395 = vld [vmem:[%s1344 + $0x190] sm:$0xff]
    %v1396 = vld [vmem:[%s1344 + $0x198] sm:$0xff]
    %v1397 = vld [vmem:[%s1344 + $0x1a0] sm:$0xff]
    %v1398 = vld [vmem:[%s1344 + $0x1a8] sm:$0xff]
    %v1399 = vld [vmem:[%s1344 + $0x1b0] sm:$0xff]
    %v1400 = vld [vmem:[%s1344 + $0x1b8] sm:$0xff]
    %v1401 = vld [vmem:[%s1344 + $0x1c0] sm:$0xff]
    %v1402 = vld [vmem:[%s1344 + $0x1c8] sm:$0xff]
    %v1403 = vld [vmem:[%s1344 + $0x1d0] sm:$0xff]
    %v1404 = vld [vmem:[%s1344 + $0x1d8] sm:$0xff]
    %v1405 = vld [vmem:[%s1344 + $0x1e0] sm:$0xff]
    %v1406 = vld [vmem:[%s1344 + $0x1e8] sm:$0xff]
    %v1407 = vld [vmem:[%s1344 + $0x1f0] sm:$0xff]
    %v1408 = vld [vmem:[%s1344 + $0x1f8] sm:$0xff]
    %v1409 = vld [vmem:[%s1344 + $0x200] sm:$0xff]
    %v1410 = vld [vmem:[%s1344 + $0x208] sm:$0xff]
    %v1411 = vld [vmem:[%s1344 + $0x210] sm:$0xff]
    %v1412 = vld [vmem:[%s1344 + $0x218] sm:$0xff]
    %v1413 = vld [vmem:[%s1344 + $0x220] sm:$0xff]
    %v1414 = vld [vmem:[%s1344 + $0x228] sm:$0xff]
    %v1415 = vld [vmem:[%s1344 + $0x230] sm:$0xff]
    %v1416 = vld [vmem:[%s1344 + $0x238] sm:$0xff]
    %v1417 = vld [vmem:[%s1344 + $0x240] sm:$0xff]
    %v1418 = vld [vmem:[%s1344 + $0x248] sm:$0xff]
    %v1419 = vld [vmem:[%s1344 + $0x250] sm:$0xff]
    %v1420 = vld [vmem:[%s1344 + $0x258] sm:$0xff]
    %v1421 = vld [vmem:[%s1344 + $0x260] sm:$0xff]
    %v1422 = vld [vmem:[%s1344 + $0x268] sm:$0xff]
    %v1423 = vld [vmem:[%s1344 + $0x270] sm:$0xff]
    %v1424 = vld [vmem:[%s1344 + $0x278] sm:$0xff]
    %v1425 = vld [vmem:[%s1344 + $0x280] sm:$0xff]
    %v1426 = vld [vmem:[%s1344 + $0x288] sm:$0xff]
    %v1427 = vld [vmem:[%s1344 + $0x290] sm:$0xff]
    %v1428 = vld [vmem:[%s1344 + $0x298] sm:$0xff]
    %v1429 = vld [vmem:[%s1344 + $0x2a0] sm:$0xff]
    %v1430 = vld [vmem:[%s1344 + $0x2a8] sm:$0xff]
    %v1431 = vld [vmem:[%s1344 + $0x2b0] sm:$0xff]
    %v1432 = vld [vmem:[%s1344 + $0x2b8] sm:$0xff]
    %v1433 = vld [vmem:[%s1344 + $0x2c0] sm:$0xff]
    %v1434 = vld [vmem:[%s1344 + $0x2c8] sm:$0xff]
    %v1435 = vld [vmem:[%s1344 + $0x2d0] sm:$0xff]
    %v1436 = vld [vmem:[%s1344 + $0x2d8] sm:$0xff]
    %v1437 = vld [vmem:[%s1344 + $0x2e0] sm:$0xff]
    %v1438 = vld [vmem:[%s1344 + $0x2e8] sm:$0xff]
    %v1439 = vld [vmem:[%s1344 + $0x2f0] sm:$0xff]
    %v1440 = vld [vmem:[%s1344 + $0x2f8] sm:$0xff]
    %v1441 = vld [vmem:[%s1344 + $0x300] sm:$0xff]
    %v1442 = vld [vmem:[%s1344 + $0x308] sm:$0xff]
    %v1443 = vld [vmem:[%s1344 + $0x310] sm:$0xff]
    %v1444 = vld [vmem:[%s1344 + $0x318] sm:$0xff]
    %v1445 = vld [vmem:[%s1344 + $0x320] sm:$0xff]
    %v1446 = vld [vmem:[%s1344 + $0x328] sm:$0xff]
    %v1447 = vld [vmem:[%s1344 + $0x330] sm:$0xff]
    %v1448 = vld [vmem:[%s1344 + $0x338] sm:$0xff]
    %v1449 = vld [vmem:[%s1344 + $0x340] sm:$0xff]
    %v1450 = vld [vmem:[%s1344 + $0x348] sm:$0xff]
    %v1451 = vld [vmem:[%s1344 + $0x350] sm:$0xff]
    %v1452 = vld [vmem:[%s1344 + $0x358] sm:$0xff]
    %v1453 = vld [vmem:[%s1344 + $0x360] sm:$0xff]
    %v1454 = vld [vmem:[%s1344 + $0x368] sm:$0xff]
    %v1455 = vld [vmem:[%s1344 + $0x370] sm:$0xff]
    %v1456 = vld [vmem:[%s1344 + $0x378] sm:$0xff]
    %v1457 = vld [vmem:[%s1344 + $0x380] sm:$0xff]
    %v1458 = vld [vmem:[%s1344 + $0x388] sm:$0xff]
    %v1459 = vld [vmem:[%s1344 + $0x390] sm:$0xff]
    %v1460 = vld [vmem:[%s1344 + $0x398] sm:$0xff]
    %v1461 = vld [vmem:[%s1344 + $0x3a0] sm:$0xff]
    %v1462 = vld [vmem:[%s1344 + $0x3a8] sm:$0xff]
    %v1463 = vld [vmem:[%s1344 + $0x3b0] sm:$0xff]
    %v1464 = vld [vmem:[%s1344 + $0x3b8] sm:$0xff]
    %v1465 = vld [vmem:[%s1344 + $0x3c0] sm:$0xff]
    %v1466 = vld [vmem:[%s1344 + $0x3c8] sm:$0xff]
    %v1467 = vld [vmem:[%s1344 + $0x3d0] sm:$0xff]
    %v1468 = vld [vmem:[%s1344 + $0x3d8] sm:$0xff]
    %v1469 = vld [vmem:[%s1344 + $0x3e0] sm:$0xff]
    %v1470 = vld [vmem:[%s1344 + $0x3e8] sm:$0xff]
    %v1471 = vld [vmem:[%s1344 + $0x3f0] sm:$0xff]
    %v1472 = vld [vmem:[%s1344 + $0x3f8] sm:$0xff]
    %v1473 = vlaneseq
    %v1474 = vshrl.u32 %v1473, 7
    %v1475 = vsub.s32 2, %v1474
    %v1476 = vrot.slane %v77, %v1475
    %v1477 = vlaneseq
    %v1478 = vshrl.u32 %v1477, 7
    %v1479 = vsub.s32 2, %v1478
    %v1480 = vrot.slane %v78, %v1479
    %v1481 = vlaneseq
    %v1482 = vshrl.u32 %v1481, 7
    %v1483 = vsub.s32 2, %v1482
    %v1484 = vrot.slane %v79, %v1483
    %v1485 = vlaneseq
    %v1486 = vshrl.u32 %v1485, 7
    %v1487 = vsub.s32 2, %v1486
    %v1488 = vrot.slane %v80, %v1487
    %v1617 = vunpack.c.l.b16 %v1345
    %v1618 = vunpack.c.h.b16 %v1345
    %v1619 = vunpack.c.l.b16 %v1346
    %v1620 = vunpack.c.h.b16 %v1346
    %v1621 = vunpack.c.l.b16 %v1347
    %v1622 = vunpack.c.h.b16 %v1347
    %v1623 = vunpack.c.l.b16 %v1348
    %v1624 = vunpack.c.h.b16 %v1348
    %v1625 = vunpack.c.l.b16 %v1349
    %v1626 = vunpack.c.h.b16 %v1349
    %v1627 = vunpack.c.l.b16 %v1350
    %v1628 = vunpack.c.h.b16 %v1350
    %v1629 = vunpack.c.l.b16 %v1351
    %v1630 = vunpack.c.h.b16 %v1351
    %v1631 = vunpack.c.l.b16 %v1352
    %v1632 = vunpack.c.h.b16 %v1352
    %v1633 = vunpack.c.l.b16 %v1353
    %v1634 = vunpack.c.h.b16 %v1353
    %v1635 = vunpack.c.l.b16 %v1354
    %v1636 = vunpack.c.h.b16 %v1354
    %v1637 = vunpack.c.l.b16 %v1355
    %v1638 = vunpack.c.h.b16 %v1355
    %v1639 = vunpack.c.l.b16 %v1356
    %v1640 = vunpack.c.h.b16 %v1356
    %v1641 = vunpack.c.l.b16 %v1357
    %v1642 = vunpack.c.h.b16 %v1357
    %v1643 = vunpack.c.l.b16 %v1358
    %v1644 = vunpack.c.h.b16 %v1358
    %v1645 = vunpack.c.l.b16 %v1359
    %v1646 = vunpack.c.h.b16 %v1359
    %v1647 = vunpack.c.l.b16 %v1360
    %v1648 = vunpack.c.h.b16 %v1360
    %v1649 = vunpack.c.l.b16 %v1361
    %v1650 = vunpack.c.h.b16 %v1361
    %v1651 = vunpack.c.l.b16 %v1362
    %v1652 = vunpack.c.h.b16 %v1362
    %v1653 = vunpack.c.l.b16 %v1363
    %v1654 = vunpack.c.h.b16 %v1363
    %v1655 = vunpack.c.l.b16 %v1364
    %v1656 = vunpack.c.h.b16 %v1364
    %v1657 = vunpack.c.l.b16 %v1365
    %v1658 = vunpack.c.h.b16 %v1365
    %v1659 = vunpack.c.l.b16 %v1366
    %v1660 = vunpack.c.h.b16 %v1366
    %v1661 = vunpack.c.l.b16 %v1367
    %v1662 = vunpack.c.h.b16 %v1367
    %v1663 = vunpack.c.l.b16 %v1368
    %v1664 = vunpack.c.h.b16 %v1368
    %v1665 = vunpack.c.l.b16 %v1369
    %v1666 = vunpack.c.h.b16 %v1369
    %v1667 = vunpack.c.l.b16 %v1370
    %v1668 = vunpack.c.h.b16 %v1370
    %v1669 = vunpack.c.l.b16 %v1371
    %v1670 = vunpack.c.h.b16 %v1371
    %v1671 = vunpack.c.l.b16 %v1372
    %v1672 = vunpack.c.h.b16 %v1372
    %v1673 = vunpack.c.l.b16 %v1373
    %v1674 = vunpack.c.h.b16 %v1373
    %v1675 = vunpack.c.l.b16 %v1374
    %v1676 = vunpack.c.h.b16 %v1374
    %v1677 = vunpack.c.l.b16 %v1375
    %v1678 = vunpack.c.h.b16 %v1375
    %v1679 = vunpack.c.l.b16 %v1376
    %v1680 = vunpack.c.h.b16 %v1376
    %v1681 = vunpack.c.l.b16 %v1377
    %v1682 = vunpack.c.h.b16 %v1377
    %v1683 = vunpack.c.l.b16 %v1378
    %v1684 = vunpack.c.h.b16 %v1378
    %v1685 = vunpack.c.l.b16 %v1379
    %v1686 = vunpack.c.h.b16 %v1379
    %v1687 = vunpack.c.l.b16 %v1380
    %v1688 = vunpack.c.h.b16 %v1380
    %v1689 = vunpack.c.l.b16 %v1381
    %v1690 = vunpack.c.h.b16 %v1381
    %v1691 = vunpack.c.l.b16 %v1382
    %v1692 = vunpack.c.h.b16 %v1382
    %v1693 = vunpack.c.l.b16 %v1383
    %v1694 = vunpack.c.h.b16 %v1383
    %v1695 = vunpack.c.l.b16 %v1384
    %v1696 = vunpack.c.h.b16 %v1384
    %v1697 = vunpack.c.l.b16 %v1385
    %v1698 = vunpack.c.h.b16 %v1385
    %v1699 = vunpack.c.l.b16 %v1386
    %v1700 = vunpack.c.h.b16 %v1386
    %v1701 = vunpack.c.l.b16 %v1387
    %v1702 = vunpack.c.h.b16 %v1387
    %v1703 = vunpack.c.l.b16 %v1388
    %v1704 = vunpack.c.h.b16 %v1388
    %v1705 = vunpack.c.l.b16 %v1389
    %v1706 = vunpack.c.h.b16 %v1389
    %v1707 = vunpack.c.l.b16 %v1390
    %v1708 = vunpack.c.h.b16 %v1390
    %v1709 = vunpack.c.l.b16 %v1391
    %v1710 = vunpack.c.h.b16 %v1391
    %v1711 = vunpack.c.l.b16 %v1392
    %v1712 = vunpack.c.h.b16 %v1392
    %v1713 = vunpack.c.l.b16 %v1393
    %v1714 = vunpack.c.h.b16 %v1393
    %v1715 = vunpack.c.l.b16 %v1394
    %v1716 = vunpack.c.h.b16 %v1394
    %v1717 = vunpack.c.l.b16 %v1395
    %v1718 = vunpack.c.h.b16 %v1395
    %v1719 = vunpack.c.l.b16 %v1396
    %v1720 = vunpack.c.h.b16 %v1396
    %v1721 = vunpack.c.l.b16 %v1397
    %v1722 = vunpack.c.h.b16 %v1397
    %v1723 = vunpack.c.l.b16 %v1398
    %v1724 = vunpack.c.h.b16 %v1398
    %v1725 = vunpack.c.l.b16 %v1399
    %v1726 = vunpack.c.h.b16 %v1399
    %v1727 = vunpack.c.l.b16 %v1400
    %v1728 = vunpack.c.h.b16 %v1400
    %v1729 = vunpack.c.l.b16 %v1401
    %v1730 = vunpack.c.h.b16 %v1401
    %v1731 = vunpack.c.l.b16 %v1402
    %v1732 = vunpack.c.h.b16 %v1402
    %v1733 = vunpack.c.l.b16 %v1403
    %v1734 = vunpack.c.h.b16 %v1403
    %v1735 = vunpack.c.l.b16 %v1404
    %v1736 = vunpack.c.h.b16 %v1404
    %v1737 = vunpack.c.l.b16 %v1405
    %v1738 = vunpack.c.h.b16 %v1405
    %v1739 = vunpack.c.l.b16 %v1406
    %v1740 = vunpack.c.h.b16 %v1406
    %v1741 = vunpack.c.l.b16 %v1407
    %v1742 = vunpack.c.h.b16 %v1407
    %v1743 = vunpack.c.l.b16 %v1408
    %v1744 = vunpack.c.h.b16 %v1408
    %v1745 = vunpack.c.l.b16 %v1409
    %v1746 = vunpack.c.h.b16 %v1409
    %v1747 = vunpack.c.l.b16 %v1410
    %v1748 = vunpack.c.h.b16 %v1410
    %v1749 = vunpack.c.l.b16 %v1411
    %v1750 = vunpack.c.h.b16 %v1411
    %v1751 = vunpack.c.l.b16 %v1412
    %v1752 = vunpack.c.h.b16 %v1412
    %v1753 = vunpack.c.l.b16 %v1413
    %v1754 = vunpack.c.h.b16 %v1413
    %v1755 = vunpack.c.l.b16 %v1414
    %v1756 = vunpack.c.h.b16 %v1414
    %v1757 = vunpack.c.l.b16 %v1415
    %v1758 = vunpack.c.h.b16 %v1415
    %v1759 = vunpack.c.l.b16 %v1416
    %v1760 = vunpack.c.h.b16 %v1416
    %v1761 = vunpack.c.l.b16 %v1417
    %v1762 = vunpack.c.h.b16 %v1417
    %v1763 = vunpack.c.l.b16 %v1418
    %v1764 = vunpack.c.h.b16 %v1418
    %v1765 = vunpack.c.l.b16 %v1419
    %v1766 = vunpack.c.h.b16 %v1419
    %v1767 = vunpack.c.l.b16 %v1420
    %v1768 = vunpack.c.h.b16 %v1420
    %v1769 = vunpack.c.l.b16 %v1421
    %v1770 = vunpack.c.h.b16 %v1421
    %v1771 = vunpack.c.l.b16 %v1422
    %v1772 = vunpack.c.h.b16 %v1422
    %v1773 = vunpack.c.l.b16 %v1423
    %v1774 = vunpack.c.h.b16 %v1423
    %v1775 = vunpack.c.l.b16 %v1424
    %v1776 = vunpack.c.h.b16 %v1424
    %v1777 = vunpack.c.l.b16 %v1425
    %v1778 = vunpack.c.h.b16 %v1425
    %v1779 = vunpack.c.l.b16 %v1426
    %v1780 = vunpack.c.h.b16 %v1426
    %v1781 = vunpack.c.l.b16 %v1427
    %v1782 = vunpack.c.h.b16 %v1427
    %v1783 = vunpack.c.l.b16 %v1428
    %v1784 = vunpack.c.h.b16 %v1428
    %v1785 = vunpack.c.l.b16 %v1429
    %v1786 = vunpack.c.h.b16 %v1429
    %v1787 = vunpack.c.l.b16 %v1430
    %v1788 = vunpack.c.h.b16 %v1430
    %v1789 = vunpack.c.l.b16 %v1431
    %v1790 = vunpack.c.h.b16 %v1431
    %v1791 = vunpack.c.l.b16 %v1432
    %v1792 = vunpack.c.h.b16 %v1432
    %v1793 = vunpack.c.l.b16 %v1433
    %v1794 = vunpack.c.h.b16 %v1433
    %v1795 = vunpack.c.l.b16 %v1434
    %v1796 = vunpack.c.h.b16 %v1434
    %v1797 = vunpack.c.l.b16 %v1435
    %v1798 = vunpack.c.h.b16 %v1435
    %v1799 = vunpack.c.l.b16 %v1436
    %v1800 = vunpack.c.h.b16 %v1436
    %v1801 = vunpack.c.l.b16 %v1437
    %v1802 = vunpack.c.h.b16 %v1437
    %v1803 = vunpack.c.l.b16 %v1438
    %v1804 = vunpack.c.h.b16 %v1438
    %v1805 = vunpack.c.l.b16 %v1439
    %v1806 = vunpack.c.h.b16 %v1439
    %v1807 = vunpack.c.l.b16 %v1440
    %v1808 = vunpack.c.h.b16 %v1440
    %v1809 = vunpack.c.l.b16 %v1441
    %v1810 = vunpack.c.h.b16 %v1441
    %v1811 = vunpack.c.l.b16 %v1442
    %v1812 = vunpack.c.h.b16 %v1442
    %v1813 = vunpack.c.l.b16 %v1443
    %v1814 = vunpack.c.h.b16 %v1443
    %v1815 = vunpack.c.l.b16 %v1444
    %v1816 = vunpack.c.h.b16 %v1444
    %v1817 = vunpack.c.l.b16 %v1445
    %v1818 = vunpack.c.h.b16 %v1445
    %v1819 = vunpack.c.l.b16 %v1446
    %v1820 = vunpack.c.h.b16 %v1446
    %v1821 = vunpack.c.l.b16 %v1447
    %v1822 = vunpack.c.h.b16 %v1447
    %v1823 = vunpack.c.l.b16 %v1448
    %v1824 = vunpack.c.h.b16 %v1448
    %v1825 = vunpack.c.l.b16 %v1449
    %v1826 = vunpack.c.h.b16 %v1449
    %v1827 = vunpack.c.l.b16 %v1450
    %v1828 = vunpack.c.h.b16 %v1450
    %v1829 = vunpack.c.l.b16 %v1451
    %v1830 = vunpack.c.h.b16 %v1451
    %v1831 = vunpack.c.l.b16 %v1452
    %v1832 = vunpack.c.h.b16 %v1452
    %v1833 = vunpack.c.l.b16 %v1453
    %v1834 = vunpack.c.h.b16 %v1453
    %v1835 = vunpack.c.l.b16 %v1454
    %v1836 = vunpack.c.h.b16 %v1454
    %v1837 = vunpack.c.l.b16 %v1455
    %v1838 = vunpack.c.h.b16 %v1455
    %v1839 = vunpack.c.l.b16 %v1456
    %v1840 = vunpack.c.h.b16 %v1456
    %v1841 = vunpack.c.l.b16 %v1457
    %v1842 = vunpack.c.h.b16 %v1457
    %v1843 = vunpack.c.l.b16 %v1458
    %v1844 = vunpack.c.h.b16 %v1458
    %v1845 = vunpack.c.l.b16 %v1459
    %v1846 = vunpack.c.h.b16 %v1459
    %v1847 = vunpack.c.l.b16 %v1460
    %v1848 = vunpack.c.h.b16 %v1460
    %v1849 = vunpack.c.l.b16 %v1461
    %v1850 = vunpack.c.h.b16 %v1461
    %v1851 = vunpack.c.l.b16 %v1462
    %v1852 = vunpack.c.h.b16 %v1462
    %v1853 = vunpack.c.l.b16 %v1463
    %v1854 = vunpack.c.h.b16 %v1463
    %v1855 = vunpack.c.l.b16 %v1464
    %v1856 = vunpack.c.h.b16 %v1464
    %v1857 = vunpack.c.l.b16 %v1465
    %v1858 = vunpack.c.h.b16 %v1465
    %v1859 = vunpack.c.l.b16 %v1466
    %v1860 = vunpack.c.h.b16 %v1466
    %v1861 = vunpack.c.l.b16 %v1467
    %v1862 = vunpack.c.h.b16 %v1467
    %v1863 = vunpack.c.l.b16 %v1468
    %v1864 = vunpack.c.h.b16 %v1468
    %v1865 = vunpack.c.l.b16 %v1469
    %v1866 = vunpack.c.h.b16 %v1469
    %v1867 = vunpack.c.l.b16 %v1470
    %v1868 = vunpack.c.h.b16 %v1470
    %v1869 = vunpack.c.l.b16 %v1471
    %v1870 = vunpack.c.h.b16 %v1471
    %v1871 = vunpack.c.l.b16 %v1472
    %v1872 = vunpack.c.h.b16 %v1472
    %v1873 = vpack.c.b16 %v1621, %v1617
    %v1874 = vpack.c.b16 %v1622, %v1618
    %v1875 = vpack.c.b16 %v1623, %v1619
    %v1876 = vpack.c.b16 %v1624, %v1620
    %v1877 = vpack.c.b16 %v1629, %v1625
    %v1878 = vpack.c.b16 %v1630, %v1626
    %v1879 = vpack.c.b16 %v1631, %v1627
    %v1880 = vpack.c.b16 %v1632, %v1628
    %v1881 = vpack.c.b16 %v1637, %v1633
    %v1882 = vpack.c.b16 %v1638, %v1634
    %v1883 = vpack.c.b16 %v1639, %v1635
    %v1884 = vpack.c.b16 %v1640, %v1636
    %v1885 = vpack.c.b16 %v1645, %v1641
    %v1886 = vpack.c.b16 %v1646, %v1642
    %v1887 = vpack.c.b16 %v1647, %v1643
    %v1888 = vpack.c.b16 %v1648, %v1644
    %v1889 = vpack.c.b16 %v1653, %v1649
    %v1890 = vpack.c.b16 %v1654, %v1650
    %v1891 = vpack.c.b16 %v1655, %v1651
    %v1892 = vpack.c.b16 %v1656, %v1652
    %v1893 = vpack.c.b16 %v1661, %v1657
    %v1894 = vpack.c.b16 %v1662, %v1658
    %v1895 = vpack.c.b16 %v1663, %v1659
    %v1896 = vpack.c.b16 %v1664, %v1660
    %v1897 = vpack.c.b16 %v1669, %v1665
    %v1898 = vpack.c.b16 %v1670, %v1666
    %v1899 = vpack.c.b16 %v1671, %v1667
    %v1900 = vpack.c.b16 %v1672, %v1668
    %v1901 = vpack.c.b16 %v1677, %v1673
    %v1902 = vpack.c.b16 %v1678, %v1674
    %v1903 = vpack.c.b16 %v1679, %v1675
    %v1904 = vpack.c.b16 %v1680, %v1676
    %v1905 = vpack.c.b16 %v1685, %v1681
    %v1906 = vpack.c.b16 %v1686, %v1682
    %v1907 = vpack.c.b16 %v1687, %v1683
    %v1908 = vpack.c.b16 %v1688, %v1684
    %v1909 = vpack.c.b16 %v1693, %v1689
    %v1910 = vpack.c.b16 %v1694, %v1690
    %v1911 = vpack.c.b16 %v1695, %v1691
    %v1912 = vpack.c.b16 %v1696, %v1692
    %v1913 = vpack.c.b16 %v1701, %v1697
    %v1914 = vpack.c.b16 %v1702, %v1698
    %v1915 = vpack.c.b16 %v1703, %v1699
    %v1916 = vpack.c.b16 %v1704, %v1700
    %v1917 = vpack.c.b16 %v1709, %v1705
    %v1918 = vpack.c.b16 %v1710, %v1706
    %v1919 = vpack.c.b16 %v1711, %v1707
    %v1920 = vpack.c.b16 %v1712, %v1708
    %v1921 = vpack.c.b16 %v1717, %v1713
    %v1922 = vpack.c.b16 %v1718, %v1714
    %v1923 = vpack.c.b16 %v1719, %v1715
    %v1924 = vpack.c.b16 %v1720, %v1716
    %v1925 = vpack.c.b16 %v1725, %v1721
    %v1926 = vpack.c.b16 %v1726, %v1722
    %v1927 = vpack.c.b16 %v1727, %v1723
    %v1928 = vpack.c.b16 %v1728, %v1724
    %v1929 = vpack.c.b16 %v1733, %v1729
    %v1930 = vpack.c.b16 %v1734, %v1730
    %v1931 = vpack.c.b16 %v1735, %v1731
    %v1932 = vpack.c.b16 %v1736, %v1732
    %v1933 = vpack.c.b16 %v1741, %v1737
    %v1934 = vpack.c.b16 %v1742, %v1738
    %v1935 = vpack.c.b16 %v1743, %v1739
    %v1936 = vpack.c.b16 %v1744, %v1740
    %v1937 = vpack.c.b16 %v1749, %v1745
    %v1938 = vpack.c.b16 %v1750, %v1746
    %v1939 = vpack.c.b16 %v1751, %v1747
    %v1940 = vpack.c.b16 %v1752, %v1748
    %v1941 = vpack.c.b16 %v1757, %v1753
    %v1942 = vpack.c.b16 %v1758, %v1754
    %v1943 = vpack.c.b16 %v1759, %v1755
    %v1944 = vpack.c.b16 %v1760, %v1756
    %v1945 = vpack.c.b16 %v1765, %v1761
    %v1946 = vpack.c.b16 %v1766, %v1762
    %v1947 = vpack.c.b16 %v1767, %v1763
    %v1948 = vpack.c.b16 %v1768, %v1764
    %v1949 = vpack.c.b16 %v1773, %v1769
    %v1950 = vpack.c.b16 %v1774, %v1770
    %v1951 = vpack.c.b16 %v1775, %v1771
    %v1952 = vpack.c.b16 %v1776, %v1772
    %v1953 = vpack.c.b16 %v1781, %v1777
    %v1954 = vpack.c.b16 %v1782, %v1778
    %v1955 = vpack.c.b16 %v1783, %v1779
    %v1956 = vpack.c.b16 %v1784, %v1780
    %v1957 = vpack.c.b16 %v1789, %v1785
    %v1958 = vpack.c.b16 %v1790, %v1786
    %v1959 = vpack.c.b16 %v1791, %v1787
    %v1960 = vpack.c.b16 %v1792, %v1788
    %v1961 = vpack.c.b16 %v1797, %v1793
    %v1962 = vpack.c.b16 %v1798, %v1794
    %v1963 = vpack.c.b16 %v1799, %v1795
    %v1964 = vpack.c.b16 %v1800, %v1796
    %v1965 = vpack.c.b16 %v1805, %v1801
    %v1966 = vpack.c.b16 %v1806, %v1802
    %v1967 = vpack.c.b16 %v1807, %v1803
    %v1968 = vpack.c.b16 %v1808, %v1804
    %v1969 = vpack.c.b16 %v1813, %v1809
    %v1970 = vpack.c.b16 %v1814, %v1810
    %v1971 = vpack.c.b16 %v1815, %v1811
    %v1972 = vpack.c.b16 %v1816, %v1812
    %v1973 = vpack.c.b16 %v1821, %v1817
    %v1974 = vpack.c.b16 %v1822, %v1818
    %v1975 = vpack.c.b16 %v1823, %v1819
    %v1976 = vpack.c.b16 %v1824, %v1820
    %v1977 = vpack.c.b16 %v1829, %v1825
    %v1978 = vpack.c.b16 %v1830, %v1826
    %v1979 = vpack.c.b16 %v1831, %v1827
    %v1980 = vpack.c.b16 %v1832, %v1828
    %v1981 = vpack.c.b16 %v1837, %v1833
    %v1982 = vpack.c.b16 %v1838, %v1834
    %v1983 = vpack.c.b16 %v1839, %v1835
    %v1984 = vpack.c.b16 %v1840, %v1836
    %v1985 = vpack.c.b16 %v1845, %v1841
    %v1986 = vpack.c.b16 %v1846, %v1842
    %v1987 = vpack.c.b16 %v1847, %v1843
    %v1988 = vpack.c.b16 %v1848, %v1844
    %v1989 = vpack.c.b16 %v1853, %v1849
    %v1990 = vpack.c.b16 %v1854, %v1850
    %v1991 = vpack.c.b16 %v1855, %v1851
    %v1992 = vpack.c.b16 %v1856, %v1852
    %v1993 = vpack.c.b16 %v1861, %v1857
    %v1994 = vpack.c.b16 %v1862, %v1858
    %v1995 = vpack.c.b16 %v1863, %v1859
    %v1996 = vpack.c.b16 %v1864, %v1860
    %v1997 = vpack.c.b16 %v1869, %v1865
    %v1998 = vpack.c.b16 %v1870, %v1866
    %v1999 = vpack.c.b16 %v1871, %v1867
    %v2000 = vpack.c.b16 %v1872, %v1868
    %2129 = vmatprep.subr.bf16.mxu0 %v1902
    %2130 = vmatpush1.bf16.msra.mxu0 %v1901
    %2131 = vmatprep.subr.bf16.mxu0 %v1898
    %2132 = vmatpush1.bf16.msra.mxu0 %v1897
    %2133 = vmatprep.subr.bf16.mxu0 %v1894
    %2134 = vmatpush1.bf16.msra.mxu0 %v1893
    %2135 = vmatprep.subr.bf16.mxu0 %v1890
    %2136 = vmatpush1.bf16.msra.mxu0 %v1889
    %2137 = vmatprep.subr.bf16.mxu0 %v1886
    %2138 = vmatpush1.bf16.msra.mxu0 %v1885
    %2139 = vmatprep.subr.bf16.mxu0 %v1882
    %2140 = vmatpush1.bf16.msra.mxu0 %v1881
    %2141 = vmatprep.subr.bf16.mxu0 %v1878
    %2142 = vmatpush1.bf16.msra.mxu0 %v1877
    %2143 = vmatprep.subr.bf16.mxu0 %v1874
    %2144 = vmatpush1.bf16.msra.mxu0 %v1873
    %2145 = vmatprep.subr.bf16.mxu0 %v1934
    %2146 = vmatpush2.bf16.msra.mxu0 %v1933
    %2147 = vmatprep.subr.bf16.mxu0 %v1930
    %2148 = vmatpush2.bf16.msra.mxu0 %v1929
    %2149 = vmatprep.subr.bf16.mxu0 %v1926
    %2150 = vmatpush2.bf16.msra.mxu0 %v1925
    %2151 = vmatprep.subr.bf16.mxu0 %v1922
    %2152 = vmatpush2.bf16.msra.mxu0 %v1921
    %2153 = vmatprep.subr.bf16.mxu0 %v1918
    %2154 = vmatpush2.bf16.msra.mxu0 %v1917
    %2155 = vmatprep.subr.bf16.mxu0 %v1914
    %2156 = vmatpush2.bf16.msra.mxu0 %v1913
    %2157 = vmatprep.subr.bf16.mxu0 %v1910
    %2158 = vmatpush2.bf16.msra.mxu0 %v1909
    %2159 = vmatprep.subr.bf16.mxu0 %v1906
    %2160 = vmatpush2.bf16.msra.mxu0 %v1905
    %2161 = vmatprep.mubr.bf16.mxu0 %v1341
    %2162 = vmatmul.mubr.bf16.gmra.mxu0 %v1340
    %v2163 = vpop.f32.mrf.mxu0
    %v2164 = vadd.f32 %v1476, %v2163
    %v2165 = vpop.f32.mrf.mxu0
    %v2166 = vadd.f32 %v1480, %v2165
    %v2167 = vpop.f32.mrf.mxu0
    %v2168 = vpop.f32.mrf.mxu0
    %2169 = vdwg.mxu0
    %2170 = vmatprep.subr.bf16.mxu0 %v1966
    %2171 = vmatpush1.bf16.msra.mxu0 %v1965
    %2172 = vmatprep.subr.bf16.mxu0 %v1962
    %2173 = vmatpush1.bf16.msra.mxu0 %v1961
    %2174 = vmatprep.subr.bf16.mxu0 %v1958
    %2175 = vmatpush1.bf16.msra.mxu0 %v1957
    %2176 = vmatprep.subr.bf16.mxu0 %v1954
    %2177 = vmatpush1.bf16.msra.mxu0 %v1953
    %2178 = vmatprep.subr.bf16.mxu0 %v1950
    %2179 = vmatpush1.bf16.msra.mxu0 %v1949
    %2180 = vmatprep.subr.bf16.mxu0 %v1946
    %2181 = vmatpush1.bf16.msra.mxu0 %v1945
    %2182 = vmatprep.subr.bf16.mxu0 %v1942
    %2183 = vmatpush1.bf16.msra.mxu0 %v1941
    %2184 = vmatprep.subr.bf16.mxu0 %v1938
    %2185 = vmatpush1.bf16.msra.mxu0 %v1937
    %2186 = vmatprep.subr.bf16.mxu0 %v1998
    %2187 = vmatpush2.bf16.msra.mxu0 %v1997
    %2188 = vmatprep.subr.bf16.mxu0 %v1994
    %2189 = vmatpush2.bf16.msra.mxu0 %v1993
    %2190 = vmatprep.subr.bf16.mxu0 %v1990
    %2191 = vmatpush2.bf16.msra.mxu0 %v1989
    %2192 = vmatprep.subr.bf16.mxu0 %v1986
    %2193 = vmatpush2.bf16.msra.mxu0 %v1985
    %2194 = vmatprep.subr.bf16.mxu0 %v1982
    %2195 = vmatpush2.bf16.msra.mxu0 %v1981
    %2196 = vmatprep.subr.bf16.mxu0 %v1978
    %2197 = vmatpush2.bf16.msra.mxu0 %v1977
    %2198 = vmatprep.subr.bf16.mxu0 %v1974
    %2199 = vmatpush2.bf16.msra.mxu0 %v1973
    %2200 = vmatprep.subr.bf16.mxu0 %v1970
    %2201 = vmatpush2.bf16.msra.mxu0 %v1969
    %2202 = vmatprep.mubr.bf16.mxu0 %v1343
    %2203 = vmatmul.mubr.bf16.gmra.mxu0 %v1342
    %v2204 = vpop.f32.mrf.mxu0
    %v2205 = vadd.f32 %v2164, %v2204
    %v2206 = vpop.f32.mrf.mxu0
    %v2207 = vadd.f32 %v2166, %v2206
    %v2208 = vpop.f32.mrf.mxu0
    %v2209 = vpop.f32.mrf.mxu0
    %2210 = vdwg.mxu0
    %2211 = vmatprep.subr.bf16.mxu0 %v1904
    %2212 = vmatpush1.bf16.msra.mxu0 %v1903
    %2213 = vmatprep.subr.bf16.mxu0 %v1900
    %2214 = vmatpush1.bf16.msra.mxu0 %v1899
    %2215 = vmatprep.subr.bf16.mxu0 %v1896
    %2216 = vmatpush1.bf16.msra.mxu0 %v1895
    %2217 = vmatprep.subr.bf16.mxu0 %v1892
    %2218 = vmatpush1.bf16.msra.mxu0 %v1891
    %2219 = vmatprep.subr.bf16.mxu0 %v1888
    %2220 = vmatpush1.bf16.msra.mxu0 %v1887
    %2221 = vmatprep.subr.bf16.mxu0 %v1884
    %2222 = vmatpush1.bf16.msra.mxu0 %v1883
    %2223 = vmatprep.subr.bf16.mxu0 %v1880
    %2224 = vmatpush1.bf16.msra.mxu0 %v1879
    %2225 = vmatprep.subr.bf16.mxu0 %v1876
    %2226 = vmatpush1.bf16.msra.mxu0 %v1875
    %2227 = vmatprep.subr.bf16.mxu0 %v1936
    %2228 = vmatpush2.bf16.msra.mxu0 %v1935
    %2229 = vmatprep.subr.bf16.mxu0 %v1932
    %2230 = vmatpush2.bf16.msra.mxu0 %v1931
    %2231 = vmatprep.subr.bf16.mxu0 %v1928
    %2232 = vmatpush2.bf16.msra.mxu0 %v1927
    %2233 = vmatprep.subr.bf16.mxu0 %v1924
    %2234 = vmatpush2.bf16.msra.mxu0 %v1923
    %2235 = vmatprep.subr.bf16.mxu0 %v1920
    %2236 = vmatpush2.bf16.msra.mxu0 %v1919
    %2237 = vmatprep.subr.bf16.mxu0 %v1916
    %2238 = vmatpush2.bf16.msra.mxu0 %v1915
    %2239 = vmatprep.subr.bf16.mxu0 %v1912
    %2240 = vmatpush2.bf16.msra.mxu0 %v1911
    %2241 = vmatprep.subr.bf16.mxu0 %v1908
    %2242 = vmatpush2.bf16.msra.mxu0 %v1907
    %2243 = vmatprep.mubr.bf16.mxu0 %v1341
    %2244 = vmatmul.mubr.bf16.gmra.mxu0 %v1340
    %v2245 = vpop.f32.mrf.mxu0
    %v2246 = vadd.f32 %v1484, %v2245
    %v2247 = vpop.f32.mrf.mxu0
    %v2248 = vadd.f32 %v1488, %v2247
    %v2249 = vpop.f32.mrf.mxu0
    %v2250 = vpop.f32.mrf.mxu0
    %2251 = vdwg.mxu0
    %2252 = vmatprep.subr.bf16.mxu0 %v1968
    %2253 = vmatpush1.bf16.msra.mxu0 %v1967
    %2254 = vmatprep.subr.bf16.mxu0 %v1964
    %2255 = vmatpush1.bf16.msra.mxu0 %v1963
    %2256 = vmatprep.subr.bf16.mxu0 %v1960
    %2257 = vmatpush1.bf16.msra.mxu0 %v1959
    %2258 = vmatprep.subr.bf16.mxu0 %v1956
    %2259 = vmatpush1.bf16.msra.mxu0 %v1955
    %2260 = vmatprep.subr.bf16.mxu0 %v1952
    %2261 = vmatpush1.bf16.msra.mxu0 %v1951
    %2262 = vmatprep.subr.bf16.mxu0 %v1948
    %2263 = vmatpush1.bf16.msra.mxu0 %v1947
    %2264 = vmatprep.subr.bf16.mxu0 %v1944
    %2265 = vmatpush1.bf16.msra.mxu0 %v1943
    %2266 = vmatprep.subr.bf16.mxu0 %v1940
    %2267 = vmatpush1.bf16.msra.mxu0 %v1939
    %2268 = vmatprep.subr.bf16.mxu0 %v2000
    %2269 = vmatpush2.bf16.msra.mxu0 %v1999
    %2270 = vmatprep.subr.bf16.mxu0 %v1996
    %2271 = vmatpush2.bf16.msra.mxu0 %v1995
    %2272 = vmatprep.subr.bf16.mxu0 %v1992
    %2273 = vmatpush2.bf16.msra.mxu0 %v1991
    %2274 = vmatprep.subr.bf16.mxu0 %v1988
    %2275 = vmatpush2.bf16.msra.mxu0 %v1987
    %2276 = vmatprep.subr.bf16.mxu0 %v1984
    %2277 = vmatpush2.bf16.msra.mxu0 %v1983
    %2278 = vmatprep.subr.bf16.mxu0 %v1980
    %2279 = vmatpush2.bf16.msra.mxu0 %v1979
    %2280 = vmatprep.subr.bf16.mxu0 %v1976
    %2281 = vmatpush2.bf16.msra.mxu0 %v1975
    %2282 = vmatprep.subr.bf16.mxu0 %v1972
    %2283 = vmatpush2.bf16.msra.mxu0 %v1971
    %2284 = vmatprep.mubr.bf16.mxu0 %v1343
    %2285 = vmatmul.mubr.bf16.gmra.mxu0 %v1342
    %v2286 = vpop.f32.mrf.mxu0
    %v2287 = vadd.f32 %v2246, %v2286
    %v2288 = vpop.f32.mrf.mxu0
    %v2289 = vadd.f32 %v2248, %v2288
    %v2290 = vpop.f32.mrf.mxu0
    %v2291 = vpop.f32.mrf.mxu0
    %2292 = vdwg.mxu0
    %v2293 = vmul.f32 %v2205, 0.2
    %v2294 = vmul.f32 %v2207, 0.2
    %v2295 = vmul.f32 %v2287, 0.2
    %v2296 = vmul.f32 %v2289, 0.2
    %v2297 = vmax.f32 %v2205, %v2293
    %v2298 = vmax.f32 %v2207, %v2294
    %v2299 = vmax.f32 %v2287, %v2295
    %v2300 = vmax.f32 %v2289, %v2296
    %v2301 = vpack.c.bf16 %v2297, %v2297
    %v2302 = vpack.c.bf16 %v2298, %v2298
    %v2303 = vpack.c.bf16 %v2299, %v2299
    %v2304 = vpack.c.bf16 %v2300, %v2300
    %s2305 = scalar_lea.vmem [#allocation7], 2048
    %v2306 = vld [vmem:[%s2305] sm:$0xff]
    %v2307 = vld [vmem:[%s2305 + $0x8] sm:$0xff]
    %v2308 = vld [vmem:[%s2305 + $0x10] sm:$0xff]
    %v2309 = vld [vmem:[%s2305 + $0x18] sm:$0xff]
    %v2310 = vld [vmem:[%s2305 + $0x20] sm:$0xff]
    %v2311 = vld [vmem:[%s2305 + $0x28] sm:$0xff]
    %v2312 = vld [vmem:[%s2305 + $0x30] sm:$0xff]
    %v2313 = vld [vmem:[%s2305 + $0x38] sm:$0xff]
    %v2314 = vld [vmem:[%s2305 + $0x40] sm:$0xff]
    %v2315 = vld [vmem:[%s2305 + $0x48] sm:$0xff]
    %v2316 = vld [vmem:[%s2305 + $0x50] sm:$0xff]
    %v2317 = vld [vmem:[%s2305 + $0x58] sm:$0xff]
    %v2318 = vld [vmem:[%s2305 + $0x60] sm:$0xff]
    %v2319 = vld [vmem:[%s2305 + $0x68] sm:$0xff]
    %v2320 = vld [vmem:[%s2305 + $0x70] sm:$0xff]
    %v2321 = vld [vmem:[%s2305 + $0x78] sm:$0xff]
    %v2322 = vld [vmem:[%s2305 + $0x80] sm:$0xff]
    %v2323 = vld [vmem:[%s2305 + $0x88] sm:$0xff]
    %v2324 = vld [vmem:[%s2305 + $0x90] sm:$0xff]
    %v2325 = vld [vmem:[%s2305 + $0x98] sm:$0xff]
    %v2326 = vld [vmem:[%s2305 + $0xa0] sm:$0xff]
    %v2327 = vld [vmem:[%s2305 + $0xa8] sm:$0xff]
    %v2328 = vld [vmem:[%s2305 + $0xb0] sm:$0xff]
    %v2329 = vld [vmem:[%s2305 + $0xb8] sm:$0xff]
    %v2330 = vld [vmem:[%s2305 + $0xc0] sm:$0xff]
    %v2331 = vld [vmem:[%s2305 + $0xc8] sm:$0xff]
    %v2332 = vld [vmem:[%s2305 + $0xd0] sm:$0xff]
    %v2333 = vld [vmem:[%s2305 + $0xd8] sm:$0xff]
    %v2334 = vld [vmem:[%s2305 + $0xe0] sm:$0xff]
    %v2335 = vld [vmem:[%s2305 + $0xe8] sm:$0xff]
    %v2336 = vld [vmem:[%s2305 + $0xf0] sm:$0xff]
    %v2337 = vld [vmem:[%s2305 + $0xf8] sm:$0xff]
    %v2338 = vld [vmem:[%s2305 + $0x100] sm:$0xff]
    %v2339 = vld [vmem:[%s2305 + $0x108] sm:$0xff]
    %v2340 = vld [vmem:[%s2305 + $0x110] sm:$0xff]
    %v2341 = vld [vmem:[%s2305 + $0x118] sm:$0xff]
    %v2342 = vld [vmem:[%s2305 + $0x120] sm:$0xff]
    %v2343 = vld [vmem:[%s2305 + $0x128] sm:$0xff]
    %v2344 = vld [vmem:[%s2305 + $0x130] sm:$0xff]
    %v2345 = vld [vmem:[%s2305 + $0x138] sm:$0xff]
    %v2346 = vld [vmem:[%s2305 + $0x140] sm:$0xff]
    %v2347 = vld [vmem:[%s2305 + $0x148] sm:$0xff]
    %v2348 = vld [vmem:[%s2305 + $0x150] sm:$0xff]
    %v2349 = vld [vmem:[%s2305 + $0x158] sm:$0xff]
    %v2350 = vld [vmem:[%s2305 + $0x160] sm:$0xff]
    %v2351 = vld [vmem:[%s2305 + $0x168] sm:$0xff]
    %v2352 = vld [vmem:[%s2305 + $0x170] sm:$0xff]
    %v2353 = vld [vmem:[%s2305 + $0x178] sm:$0xff]
    %v2354 = vld [vmem:[%s2305 + $0x180] sm:$0xff]
    %v2355 = vld [vmem:[%s2305 + $0x188] sm:$0xff]
    %v2356 = vld [vmem:[%s2305 + $0x190] sm:$0xff]
    %v2357 = vld [vmem:[%s2305 + $0x198] sm:$0xff]
    %v2358 = vld [vmem:[%s2305 + $0x1a0] sm:$0xff]
    %v2359 = vld [vmem:[%s2305 + $0x1a8] sm:$0xff]
    %v2360 = vld [vmem:[%s2305 + $0x1b0] sm:$0xff]
    %v2361 = vld [vmem:[%s2305 + $0x1b8] sm:$0xff]
    %v2362 = vld [vmem:[%s2305 + $0x1c0] sm:$0xff]
    %v2363 = vld [vmem:[%s2305 + $0x1c8] sm:$0xff]
    %v2364 = vld [vmem:[%s2305 + $0x1d0] sm:$0xff]
    %v2365 = vld [vmem:[%s2305 + $0x1d8] sm:$0xff]
    %v2366 = vld [vmem:[%s2305 + $0x1e0] sm:$0xff]
    %v2367 = vld [vmem:[%s2305 + $0x1e8] sm:$0xff]
    %v2368 = vld [vmem:[%s2305 + $0x1f0] sm:$0xff]
    %v2369 = vld [vmem:[%s2305 + $0x1f8] sm:$0xff]
    %v2370 = vld [vmem:[%s2305 + $0x200] sm:$0xff]
    %v2371 = vld [vmem:[%s2305 + $0x208] sm:$0xff]
    %v2372 = vld [vmem:[%s2305 + $0x210] sm:$0xff]
    %v2373 = vld [vmem:[%s2305 + $0x218] sm:$0xff]
    %v2374 = vld [vmem:[%s2305 + $0x220] sm:$0xff]
    %v2375 = vld [vmem:[%s2305 + $0x228] sm:$0xff]
    %v2376 = vld [vmem:[%s2305 + $0x230] sm:$0xff]
    %v2377 = vld [vmem:[%s2305 + $0x238] sm:$0xff]
    %v2378 = vld [vmem:[%s2305 + $0x240] sm:$0xff]
    %v2379 = vld [vmem:[%s2305 + $0x248] sm:$0xff]
    %v2380 = vld [vmem:[%s2305 + $0x250] sm:$0xff]
    %v2381 = vld [vmem:[%s2305 + $0x258] sm:$0xff]
    %v2382 = vld [vmem:[%s2305 + $0x260] sm:$0xff]
    %v2383 = vld [vmem:[%s2305 + $0x268] sm:$0xff]
    %v2384 = vld [vmem:[%s2305 + $0x270] sm:$0xff]
    %v2385 = vld [vmem:[%s2305 + $0x278] sm:$0xff]
    %v2386 = vld [vmem:[%s2305 + $0x280] sm:$0xff]
    %v2387 = vld [vmem:[%s2305 + $0x288] sm:$0xff]
    %v2388 = vld [vmem:[%s2305 + $0x290] sm:$0xff]
    %v2389 = vld [vmem:[%s2305 + $0x298] sm:$0xff]
    %v2390 = vld [vmem:[%s2305 + $0x2a0] sm:$0xff]
    %v2391 = vld [vmem:[%s2305 + $0x2a8] sm:$0xff]
    %v2392 = vld [vmem:[%s2305 + $0x2b0] sm:$0xff]
    %v2393 = vld [vmem:[%s2305 + $0x2b8] sm:$0xff]
    %v2394 = vld [vmem:[%s2305 + $0x2c0] sm:$0xff]
    %v2395 = vld [vmem:[%s2305 + $0x2c8] sm:$0xff]
    %v2396 = vld [vmem:[%s2305 + $0x2d0] sm:$0xff]
    %v2397 = vld [vmem:[%s2305 + $0x2d8] sm:$0xff]
    %v2398 = vld [vmem:[%s2305 + $0x2e0] sm:$0xff]
    %v2399 = vld [vmem:[%s2305 + $0x2e8] sm:$0xff]
    %v2400 = vld [vmem:[%s2305 + $0x2f0] sm:$0xff]
    %v2401 = vld [vmem:[%s2305 + $0x2f8] sm:$0xff]
    %v2402 = vld [vmem:[%s2305 + $0x300] sm:$0xff]
    %v2403 = vld [vmem:[%s2305 + $0x308] sm:$0xff]
    %v2404 = vld [vmem:[%s2305 + $0x310] sm:$0xff]
    %v2405 = vld [vmem:[%s2305 + $0x318] sm:$0xff]
    %v2406 = vld [vmem:[%s2305 + $0x320] sm:$0xff]
    %v2407 = vld [vmem:[%s2305 + $0x328] sm:$0xff]
    %v2408 = vld [vmem:[%s2305 + $0x330] sm:$0xff]
    %v2409 = vld [vmem:[%s2305 + $0x338] sm:$0xff]
    %v2410 = vld [vmem:[%s2305 + $0x340] sm:$0xff]
    %v2411 = vld [vmem:[%s2305 + $0x348] sm:$0xff]
    %v2412 = vld [vmem:[%s2305 + $0x350] sm:$0xff]
    %v2413 = vld [vmem:[%s2305 + $0x358] sm:$0xff]
    %v2414 = vld [vmem:[%s2305 + $0x360] sm:$0xff]
    %v2415 = vld [vmem:[%s2305 + $0x368] sm:$0xff]
    %v2416 = vld [vmem:[%s2305 + $0x370] sm:$0xff]
    %v2417 = vld [vmem:[%s2305 + $0x378] sm:$0xff]
    %v2418 = vld [vmem:[%s2305 + $0x380] sm:$0xff]
    %v2419 = vld [vmem:[%s2305 + $0x388] sm:$0xff]
    %v2420 = vld [vmem:[%s2305 + $0x390] sm:$0xff]
    %v2421 = vld [vmem:[%s2305 + $0x398] sm:$0xff]
    %v2422 = vld [vmem:[%s2305 + $0x3a0] sm:$0xff]
    %v2423 = vld [vmem:[%s2305 + $0x3a8] sm:$0xff]
    %v2424 = vld [vmem:[%s2305 + $0x3b0] sm:$0xff]
    %v2425 = vld [vmem:[%s2305 + $0x3b8] sm:$0xff]
    %v2426 = vld [vmem:[%s2305 + $0x3c0] sm:$0xff]
    %v2427 = vld [vmem:[%s2305 + $0x3c8] sm:$0xff]
    %v2428 = vld [vmem:[%s2305 + $0x3d0] sm:$0xff]
    %v2429 = vld [vmem:[%s2305 + $0x3d8] sm:$0xff]
    %v2430 = vld [vmem:[%s2305 + $0x3e0] sm:$0xff]
    %v2431 = vld [vmem:[%s2305 + $0x3e8] sm:$0xff]
    %v2432 = vld [vmem:[%s2305 + $0x3f0] sm:$0xff]
    %v2433 = vld [vmem:[%s2305 + $0x3f8] sm:$0xff]
    %v2434 = vlaneseq
    %v2435 = vshrl.u32 %v2434, 7
    %v2436 = vsub.s32 3, %v2435
    %v2437 = vrot.slane %v77, %v2436
    %v2438 = vlaneseq
    %v2439 = vshrl.u32 %v2438, 7
    %v2440 = vsub.s32 3, %v2439
    %v2441 = vrot.slane %v78, %v2440
    %v2442 = vlaneseq
    %v2443 = vshrl.u32 %v2442, 7
    %v2444 = vsub.s32 3, %v2443
    %v2445 = vrot.slane %v79, %v2444
    %v2446 = vlaneseq
    %v2447 = vshrl.u32 %v2446, 7
    %v2448 = vsub.s32 3, %v2447
    %v2449 = vrot.slane %v80, %v2448
    %v2578 = vunpack.c.l.b16 %v2306
    %v2579 = vunpack.c.h.b16 %v2306
    %v2580 = vunpack.c.l.b16 %v2307
    %v2581 = vunpack.c.h.b16 %v2307
    %v2582 = vunpack.c.l.b16 %v2308
    %v2583 = vunpack.c.h.b16 %v2308
    %v2584 = vunpack.c.l.b16 %v2309
    %v2585 = vunpack.c.h.b16 %v2309
    %v2586 = vunpack.c.l.b16 %v2310
    %v2587 = vunpack.c.h.b16 %v2310
    %v2588 = vunpack.c.l.b16 %v2311
    %v2589 = vunpack.c.h.b16 %v2311
    %v2590 = vunpack.c.l.b16 %v2312
    %v2591 = vunpack.c.h.b16 %v2312
    %v2592 = vunpack.c.l.b16 %v2313
    %v2593 = vunpack.c.h.b16 %v2313
    %v2594 = vunpack.c.l.b16 %v2314
    %v2595 = vunpack.c.h.b16 %v2314
    %v2596 = vunpack.c.l.b16 %v2315
    %v2597 = vunpack.c.h.b16 %v2315
    %v2598 = vunpack.c.l.b16 %v2316
    %v2599 = vunpack.c.h.b16 %v2316
    %v2600 = vunpack.c.l.b16 %v2317
    %v2601 = vunpack.c.h.b16 %v2317
    %v2602 = vunpack.c.l.b16 %v2318
    %v2603 = vunpack.c.h.b16 %v2318
    %v2604 = vunpack.c.l.b16 %v2319
    %v2605 = vunpack.c.h.b16 %v2319
    %v2606 = vunpack.c.l.b16 %v2320
    %v2607 = vunpack.c.h.b16 %v2320
    %v2608 = vunpack.c.l.b16 %v2321
    %v2609 = vunpack.c.h.b16 %v2321
    %v2610 = vunpack.c.l.b16 %v2322
    %v2611 = vunpack.c.h.b16 %v2322
    %v2612 = vunpack.c.l.b16 %v2323
    %v2613 = vunpack.c.h.b16 %v2323
    %v2614 = vunpack.c.l.b16 %v2324
    %v2615 = vunpack.c.h.b16 %v2324
    %v2616 = vunpack.c.l.b16 %v2325
    %v2617 = vunpack.c.h.b16 %v2325
    %v2618 = vunpack.c.l.b16 %v2326
    %v2619 = vunpack.c.h.b16 %v2326
    %v2620 = vunpack.c.l.b16 %v2327
    %v2621 = vunpack.c.h.b16 %v2327
    %v2622 = vunpack.c.l.b16 %v2328
    %v2623 = vunpack.c.h.b16 %v2328
    %v2624 = vunpack.c.l.b16 %v2329
    %v2625 = vunpack.c.h.b16 %v2329
    %v2626 = vunpack.c.l.b16 %v2330
    %v2627 = vunpack.c.h.b16 %v2330
    %v2628 = vunpack.c.l.b16 %v2331
    %v2629 = vunpack.c.h.b16 %v2331
    %v2630 = vunpack.c.l.b16 %v2332
    %v2631 = vunpack.c.h.b16 %v2332
    %v2632 = vunpack.c.l.b16 %v2333
    %v2633 = vunpack.c.h.b16 %v2333
    %v2634 = vunpack.c.l.b16 %v2334
    %v2635 = vunpack.c.h.b16 %v2334
    %v2636 = vunpack.c.l.b16 %v2335
    %v2637 = vunpack.c.h.b16 %v2335
    %v2638 = vunpack.c.l.b16 %v2336
    %v2639 = vunpack.c.h.b16 %v2336
    %v2640 = vunpack.c.l.b16 %v2337
    %v2641 = vunpack.c.h.b16 %v2337
    %v2642 = vunpack.c.l.b16 %v2338
    %v2643 = vunpack.c.h.b16 %v2338
    %v2644 = vunpack.c.l.b16 %v2339
    %v2645 = vunpack.c.h.b16 %v2339
    %v2646 = vunpack.c.l.b16 %v2340
    %v2647 = vunpack.c.h.b16 %v2340
    %v2648 = vunpack.c.l.b16 %v2341
    %v2649 = vunpack.c.h.b16 %v2341
    %v2650 = vunpack.c.l.b16 %v2342
    %v2651 = vunpack.c.h.b16 %v2342
    %v2652 = vunpack.c.l.b16 %v2343
    %v2653 = vunpack.c.h.b16 %v2343
    %v2654 = vunpack.c.l.b16 %v2344
    %v2655 = vunpack.c.h.b16 %v2344
    %v2656 = vunpack.c.l.b16 %v2345
    %v2657 = vunpack.c.h.b16 %v2345
    %v2658 = vunpack.c.l.b16 %v2346
    %v2659 = vunpack.c.h.b16 %v2346
    %v2660 = vunpack.c.l.b16 %v2347
    %v2661 = vunpack.c.h.b16 %v2347
    %v2662 = vunpack.c.l.b16 %v2348
    %v2663 = vunpack.c.h.b16 %v2348
    %v2664 = vunpack.c.l.b16 %v2349
    %v2665 = vunpack.c.h.b16 %v2349
    %v2666 = vunpack.c.l.b16 %v2350
    %v2667 = vunpack.c.h.b16 %v2350
    %v2668 = vunpack.c.l.b16 %v2351
    %v2669 = vunpack.c.h.b16 %v2351
    %v2670 = vunpack.c.l.b16 %v2352
    %v2671 = vunpack.c.h.b16 %v2352
    %v2672 = vunpack.c.l.b16 %v2353
    %v2673 = vunpack.c.h.b16 %v2353
    %v2674 = vunpack.c.l.b16 %v2354
    %v2675 = vunpack.c.h.b16 %v2354
    %v2676 = vunpack.c.l.b16 %v2355
    %v2677 = vunpack.c.h.b16 %v2355
    %v2678 = vunpack.c.l.b16 %v2356
    %v2679 = vunpack.c.h.b16 %v2356
    %v2680 = vunpack.c.l.b16 %v2357
    %v2681 = vunpack.c.h.b16 %v2357
    %v2682 = vunpack.c.l.b16 %v2358
    %v2683 = vunpack.c.h.b16 %v2358
    %v2684 = vunpack.c.l.b16 %v2359
    %v2685 = vunpack.c.h.b16 %v2359
    %v2686 = vunpack.c.l.b16 %v2360
    %v2687 = vunpack.c.h.b16 %v2360
    %v2688 = vunpack.c.l.b16 %v2361
    %v2689 = vunpack.c.h.b16 %v2361
    %v2690 = vunpack.c.l.b16 %v2362
    %v2691 = vunpack.c.h.b16 %v2362
    %v2692 = vunpack.c.l.b16 %v2363
    %v2693 = vunpack.c.h.b16 %v2363
    %v2694 = vunpack.c.l.b16 %v2364
    %v2695 = vunpack.c.h.b16 %v2364
    %v2696 = vunpack.c.l.b16 %v2365
    %v2697 = vunpack.c.h.b16 %v2365
    %v2698 = vunpack.c.l.b16 %v2366
    %v2699 = vunpack.c.h.b16 %v2366
    %v2700 = vunpack.c.l.b16 %v2367
    %v2701 = vunpack.c.h.b16 %v2367
    %v2702 = vunpack.c.l.b16 %v2368
    %v2703 = vunpack.c.h.b16 %v2368
    %v2704 = vunpack.c.l.b16 %v2369
    %v2705 = vunpack.c.h.b16 %v2369
    %v2706 = vunpack.c.l.b16 %v2370
    %v2707 = vunpack.c.h.b16 %v2370
    %v2708 = vunpack.c.l.b16 %v2371
    %v2709 = vunpack.c.h.b16 %v2371
    %v2710 = vunpack.c.l.b16 %v2372
    %v2711 = vunpack.c.h.b16 %v2372
    %v2712 = vunpack.c.l.b16 %v2373
    %v2713 = vunpack.c.h.b16 %v2373
    %v2714 = vunpack.c.l.b16 %v2374
    %v2715 = vunpack.c.h.b16 %v2374
    %v2716 = vunpack.c.l.b16 %v2375
    %v2717 = vunpack.c.h.b16 %v2375
    %v2718 = vunpack.c.l.b16 %v2376
    %v2719 = vunpack.c.h.b16 %v2376
    %v2720 = vunpack.c.l.b16 %v2377
    %v2721 = vunpack.c.h.b16 %v2377
    %v2722 = vunpack.c.l.b16 %v2378
    %v2723 = vunpack.c.h.b16 %v2378
    %v2724 = vunpack.c.l.b16 %v2379
    %v2725 = vunpack.c.h.b16 %v2379
    %v2726 = vunpack.c.l.b16 %v2380
    %v2727 = vunpack.c.h.b16 %v2380
    %v2728 = vunpack.c.l.b16 %v2381
    %v2729 = vunpack.c.h.b16 %v2381
    %v2730 = vunpack.c.l.b16 %v2382
    %v2731 = vunpack.c.h.b16 %v2382
    %v2732 = vunpack.c.l.b16 %v2383
    %v2733 = vunpack.c.h.b16 %v2383
    %v2734 = vunpack.c.l.b16 %v2384
    %v2735 = vunpack.c.h.b16 %v2384
    %v2736 = vunpack.c.l.b16 %v2385
    %v2737 = vunpack.c.h.b16 %v2385
    %v2738 = vunpack.c.l.b16 %v2386
    %v2739 = vunpack.c.h.b16 %v2386
    %v2740 = vunpack.c.l.b16 %v2387
    %v2741 = vunpack.c.h.b16 %v2387
    %v2742 = vunpack.c.l.b16 %v2388
    %v2743 = vunpack.c.h.b16 %v2388
    %v2744 = vunpack.c.l.b16 %v2389
    %v2745 = vunpack.c.h.b16 %v2389
    %v2746 = vunpack.c.l.b16 %v2390
    %v2747 = vunpack.c.h.b16 %v2390
    %v2748 = vunpack.c.l.b16 %v2391
    %v2749 = vunpack.c.h.b16 %v2391
    %v2750 = vunpack.c.l.b16 %v2392
    %v2751 = vunpack.c.h.b16 %v2392
    %v2752 = vunpack.c.l.b16 %v2393
    %v2753 = vunpack.c.h.b16 %v2393
    %v2754 = vunpack.c.l.b16 %v2394
    %v2755 = vunpack.c.h.b16 %v2394
    %v2756 = vunpack.c.l.b16 %v2395
    %v2757 = vunpack.c.h.b16 %v2395
    %v2758 = vunpack.c.l.b16 %v2396
    %v2759 = vunpack.c.h.b16 %v2396
    %v2760 = vunpack.c.l.b16 %v2397
    %v2761 = vunpack.c.h.b16 %v2397
    %v2762 = vunpack.c.l.b16 %v2398
    %v2763 = vunpack.c.h.b16 %v2398
    %v2764 = vunpack.c.l.b16 %v2399
    %v2765 = vunpack.c.h.b16 %v2399
    %v2766 = vunpack.c.l.b16 %v2400
    %v2767 = vunpack.c.h.b16 %v2400
    %v2768 = vunpack.c.l.b16 %v2401
    %v2769 = vunpack.c.h.b16 %v2401
    %v2770 = vunpack.c.l.b16 %v2402
    %v2771 = vunpack.c.h.b16 %v2402
    %v2772 = vunpack.c.l.b16 %v2403
    %v2773 = vunpack.c.h.b16 %v2403
    %v2774 = vunpack.c.l.b16 %v2404
    %v2775 = vunpack.c.h.b16 %v2404
    %v2776 = vunpack.c.l.b16 %v2405
    %v2777 = vunpack.c.h.b16 %v2405
    %v2778 = vunpack.c.l.b16 %v2406
    %v2779 = vunpack.c.h.b16 %v2406
    %v2780 = vunpack.c.l.b16 %v2407
    %v2781 = vunpack.c.h.b16 %v2407
    %v2782 = vunpack.c.l.b16 %v2408
    %v2783 = vunpack.c.h.b16 %v2408
    %v2784 = vunpack.c.l.b16 %v2409
    %v2785 = vunpack.c.h.b16 %v2409
    %v2786 = vunpack.c.l.b16 %v2410
    %v2787 = vunpack.c.h.b16 %v2410
    %v2788 = vunpack.c.l.b16 %v2411
    %v2789 = vunpack.c.h.b16 %v2411
    %v2790 = vunpack.c.l.b16 %v2412
    %v2791 = vunpack.c.h.b16 %v2412
    %v2792 = vunpack.c.l.b16 %v2413
    %v2793 = vunpack.c.h.b16 %v2413
    %v2794 = vunpack.c.l.b16 %v2414
    %v2795 = vunpack.c.h.b16 %v2414
    %v2796 = vunpack.c.l.b16 %v2415
    %v2797 = vunpack.c.h.b16 %v2415
    %v2798 = vunpack.c.l.b16 %v2416
    %v2799 = vunpack.c.h.b16 %v2416
    %v2800 = vunpack.c.l.b16 %v2417
    %v2801 = vunpack.c.h.b16 %v2417
    %v2802 = vunpack.c.l.b16 %v2418
    %v2803 = vunpack.c.h.b16 %v2418
    %v2804 = vunpack.c.l.b16 %v2419
    %v2805 = vunpack.c.h.b16 %v2419
    %v2806 = vunpack.c.l.b16 %v2420
    %v2807 = vunpack.c.h.b16 %v2420
    %v2808 = vunpack.c.l.b16 %v2421
    %v2809 = vunpack.c.h.b16 %v2421
    %v2810 = vunpack.c.l.b16 %v2422
    %v2811 = vunpack.c.h.b16 %v2422
    %v2812 = vunpack.c.l.b16 %v2423
    %v2813 = vunpack.c.h.b16 %v2423
    %v2814 = vunpack.c.l.b16 %v2424
    %v2815 = vunpack.c.h.b16 %v2424
    %v2816 = vunpack.c.l.b16 %v2425
    %v2817 = vunpack.c.h.b16 %v2425
    %v2818 = vunpack.c.l.b16 %v2426
    %v2819 = vunpack.c.h.b16 %v2426
    %v2820 = vunpack.c.l.b16 %v2427
    %v2821 = vunpack.c.h.b16 %v2427
    %v2822 = vunpack.c.l.b16 %v2428
    %v2823 = vunpack.c.h.b16 %v2428
    %v2824 = vunpack.c.l.b16 %v2429
    %v2825 = vunpack.c.h.b16 %v2429
    %v2826 = vunpack.c.l.b16 %v2430
    %v2827 = vunpack.c.h.b16 %v2430
    %v2828 = vunpack.c.l.b16 %v2431
    %v2829 = vunpack.c.h.b16 %v2431
    %v2830 = vunpack.c.l.b16 %v2432
    %v2831 = vunpack.c.h.b16 %v2432
    %v2832 = vunpack.c.l.b16 %v2433
    %v2833 = vunpack.c.h.b16 %v2433
    %v2834 = vpack.c.b16 %v2582, %v2578
    %v2835 = vpack.c.b16 %v2583, %v2579
    %v2836 = vpack.c.b16 %v2584, %v2580
    %v2837 = vpack.c.b16 %v2585, %v2581
    %v2838 = vpack.c.b16 %v2590, %v2586
    %v2839 = vpack.c.b16 %v2591, %v2587
    %v2840 = vpack.c.b16 %v2592, %v2588
    %v2841 = vpack.c.b16 %v2593, %v2589
    %v2842 = vpack.c.b16 %v2598, %v2594
    %v2843 = vpack.c.b16 %v2599, %v2595
    %v2844 = vpack.c.b16 %v2600, %v2596
    %v2845 = vpack.c.b16 %v2601, %v2597
    %v2846 = vpack.c.b16 %v2606, %v2602
    %v2847 = vpack.c.b16 %v2607, %v2603
    %v2848 = vpack.c.b16 %v2608, %v2604
    %v2849 = vpack.c.b16 %v2609, %v2605
    %v2850 = vpack.c.b16 %v2614, %v2610
    %v2851 = vpack.c.b16 %v2615, %v2611
    %v2852 = vpack.c.b16 %v2616, %v2612
    %v2853 = vpack.c.b16 %v2617, %v2613
    %v2854 = vpack.c.b16 %v2622, %v2618
    %v2855 = vpack.c.b16 %v2623, %v2619
    %v2856 = vpack.c.b16 %v2624, %v2620
    %v2857 = vpack.c.b16 %v2625, %v2621
    %v2858 = vpack.c.b16 %v2630, %v2626
    %v2859 = vpack.c.b16 %v2631, %v2627
    %v2860 = vpack.c.b16 %v2632, %v2628
    %v2861 = vpack.c.b16 %v2633, %v2629
    %v2862 = vpack.c.b16 %v2638, %v2634
    %v2863 = vpack.c.b16 %v2639, %v2635
    %v2864 = vpack.c.b16 %v2640, %v2636
    %v2865 = vpack.c.b16 %v2641, %v2637
    %v2866 = vpack.c.b16 %v2646, %v2642
    %v2867 = vpack.c.b16 %v2647, %v2643
    %v2868 = vpack.c.b16 %v2648, %v2644
    %v2869 = vpack.c.b16 %v2649, %v2645
    %v2870 = vpack.c.b16 %v2654, %v2650
    %v2871 = vpack.c.b16 %v2655, %v2651
    %v2872 = vpack.c.b16 %v2656, %v2652
    %v2873 = vpack.c.b16 %v2657, %v2653
    %v2874 = vpack.c.b16 %v2662, %v2658
    %v2875 = vpack.c.b16 %v2663, %v2659
    %v2876 = vpack.c.b16 %v2664, %v2660
    %v2877 = vpack.c.b16 %v2665, %v2661
    %v2878 = vpack.c.b16 %v2670, %v2666
    %v2879 = vpack.c.b16 %v2671, %v2667
    %v2880 = vpack.c.b16 %v2672, %v2668
    %v2881 = vpack.c.b16 %v2673, %v2669
    %v2882 = vpack.c.b16 %v2678, %v2674
    %v2883 = vpack.c.b16 %v2679, %v2675
    %v2884 = vpack.c.b16 %v2680, %v2676
    %v2885 = vpack.c.b16 %v2681, %v2677
    %v2886 = vpack.c.b16 %v2686, %v2682
    %v2887 = vpack.c.b16 %v2687, %v2683
    %v2888 = vpack.c.b16 %v2688, %v2684
    %v2889 = vpack.c.b16 %v2689, %v2685
    %v2890 = vpack.c.b16 %v2694, %v2690
    %v2891 = vpack.c.b16 %v2695, %v2691
    %v2892 = vpack.c.b16 %v2696, %v2692
    %v2893 = vpack.c.b16 %v2697, %v2693
    %v2894 = vpack.c.b16 %v2702, %v2698
    %v2895 = vpack.c.b16 %v2703, %v2699
    %v2896 = vpack.c.b16 %v2704, %v2700
    %v2897 = vpack.c.b16 %v2705, %v2701
    %v2898 = vpack.c.b16 %v2710, %v2706
    %v2899 = vpack.c.b16 %v2711, %v2707
    %v2900 = vpack.c.b16 %v2712, %v2708
    %v2901 = vpack.c.b16 %v2713, %v2709
    %v2902 = vpack.c.b16 %v2718, %v2714
    %v2903 = vpack.c.b16 %v2719, %v2715
    %v2904 = vpack.c.b16 %v2720, %v2716
    %v2905 = vpack.c.b16 %v2721, %v2717
    %v2906 = vpack.c.b16 %v2726, %v2722
    %v2907 = vpack.c.b16 %v2727, %v2723
    %v2908 = vpack.c.b16 %v2728, %v2724
    %v2909 = vpack.c.b16 %v2729, %v2725
    %v2910 = vpack.c.b16 %v2734, %v2730
    %v2911 = vpack.c.b16 %v2735, %v2731
    %v2912 = vpack.c.b16 %v2736, %v2732
    %v2913 = vpack.c.b16 %v2737, %v2733
    %v2914 = vpack.c.b16 %v2742, %v2738
    %v2915 = vpack.c.b16 %v2743, %v2739
    %v2916 = vpack.c.b16 %v2744, %v2740
    %v2917 = vpack.c.b16 %v2745, %v2741
    %v2918 = vpack.c.b16 %v2750, %v2746
    %v2919 = vpack.c.b16 %v2751, %v2747
    %v2920 = vpack.c.b16 %v2752, %v2748
    %v2921 = vpack.c.b16 %v2753, %v2749
    %v2922 = vpack.c.b16 %v2758, %v2754
    %v2923 = vpack.c.b16 %v2759, %v2755
    %v2924 = vpack.c.b16 %v2760, %v2756
    %v2925 = vpack.c.b16 %v2761, %v2757
    %v2926 = vpack.c.b16 %v2766, %v2762
    %v2927 = vpack.c.b16 %v2767, %v2763
    %v2928 = vpack.c.b16 %v2768, %v2764
    %v2929 = vpack.c.b16 %v2769, %v2765
    %v2930 = vpack.c.b16 %v2774, %v2770
    %v2931 = vpack.c.b16 %v2775, %v2771
    %v2932 = vpack.c.b16 %v2776, %v2772
    %v2933 = vpack.c.b16 %v2777, %v2773
    %v2934 = vpack.c.b16 %v2782, %v2778
    %v2935 = vpack.c.b16 %v2783, %v2779
    %v2936 = vpack.c.b16 %v2784, %v2780
    %v2937 = vpack.c.b16 %v2785, %v2781
    %v2938 = vpack.c.b16 %v2790, %v2786
    %v2939 = vpack.c.b16 %v2791, %v2787
    %v2940 = vpack.c.b16 %v2792, %v2788
    %v2941 = vpack.c.b16 %v2793, %v2789
    %v2942 = vpack.c.b16 %v2798, %v2794
    %v2943 = vpack.c.b16 %v2799, %v2795
    %v2944 = vpack.c.b16 %v2800, %v2796
    %v2945 = vpack.c.b16 %v2801, %v2797
    %v2946 = vpack.c.b16 %v2806, %v2802
    %v2947 = vpack.c.b16 %v2807, %v2803
    %v2948 = vpack.c.b16 %v2808, %v2804
    %v2949 = vpack.c.b16 %v2809, %v2805
    %v2950 = vpack.c.b16 %v2814, %v2810
    %v2951 = vpack.c.b16 %v2815, %v2811
    %v2952 = vpack.c.b16 %v2816, %v2812
    %v2953 = vpack.c.b16 %v2817, %v2813
    %v2954 = vpack.c.b16 %v2822, %v2818
    %v2955 = vpack.c.b16 %v2823, %v2819
    %v2956 = vpack.c.b16 %v2824, %v2820
    %v2957 = vpack.c.b16 %v2825, %v2821
    %v2958 = vpack.c.b16 %v2830, %v2826
    %v2959 = vpack.c.b16 %v2831, %v2827
    %v2960 = vpack.c.b16 %v2832, %v2828
    %v2961 = vpack.c.b16 %v2833, %v2829
    %3090 = vmatprep.subr.bf16.mxu0 %v2863
    %3091 = vmatpush1.bf16.msra.mxu0 %v2862
    %3092 = vmatprep.subr.bf16.mxu0 %v2859
    %3093 = vmatpush1.bf16.msra.mxu0 %v2858
    %3094 = vmatprep.subr.bf16.mxu0 %v2855
    %3095 = vmatpush1.bf16.msra.mxu0 %v2854
    %3096 = vmatprep.subr.bf16.mxu0 %v2851
    %3097 = vmatpush1.bf16.msra.mxu0 %v2850
    %3098 = vmatprep.subr.bf16.mxu0 %v2847
    %3099 = vmatpush1.bf16.msra.mxu0 %v2846
    %3100 = vmatprep.subr.bf16.mxu0 %v2843
    %3101 = vmatpush1.bf16.msra.mxu0 %v2842
    %3102 = vmatprep.subr.bf16.mxu0 %v2839
    %3103 = vmatpush1.bf16.msra.mxu0 %v2838
    %3104 = vmatprep.subr.bf16.mxu0 %v2835
    %3105 = vmatpush1.bf16.msra.mxu0 %v2834
    %3106 = vmatprep.subr.bf16.mxu0 %v2895
    %3107 = vmatpush2.bf16.msra.mxu0 %v2894
    %3108 = vmatprep.subr.bf16.mxu0 %v2891
    %3109 = vmatpush2.bf16.msra.mxu0 %v2890
    %3110 = vmatprep.subr.bf16.mxu0 %v2887
    %3111 = vmatpush2.bf16.msra.mxu0 %v2886
    %3112 = vmatprep.subr.bf16.mxu0 %v2883
    %3113 = vmatpush2.bf16.msra.mxu0 %v2882
    %3114 = vmatprep.subr.bf16.mxu0 %v2879
    %3115 = vmatpush2.bf16.msra.mxu0 %v2878
    %3116 = vmatprep.subr.bf16.mxu0 %v2875
    %3117 = vmatpush2.bf16.msra.mxu0 %v2874
    %3118 = vmatprep.subr.bf16.mxu0 %v2871
    %3119 = vmatpush2.bf16.msra.mxu0 %v2870
    %3120 = vmatprep.subr.bf16.mxu0 %v2867
    %3121 = vmatpush2.bf16.msra.mxu0 %v2866
    %3122 = vmatprep.mubr.bf16.mxu0 %v2302
    %3123 = vmatmul.mubr.bf16.gmra.mxu0 %v2301
    %v3124 = vpop.f32.mrf.mxu0
    %v3125 = vadd.f32 %v2437, %v3124
    %v3126 = vpop.f32.mrf.mxu0
    %v3127 = vadd.f32 %v2441, %v3126
    %v3128 = vpop.f32.mrf.mxu0
    %v3129 = vpop.f32.mrf.mxu0
    %3130 = vdwg.mxu0
    %3131 = vmatprep.subr.bf16.mxu0 %v2927
    %3132 = vmatpush1.bf16.msra.mxu0 %v2926
    %3133 = vmatprep.subr.bf16.mxu0 %v2923
    %3134 = vmatpush1.bf16.msra.mxu0 %v2922
    %3135 = vmatprep.subr.bf16.mxu0 %v2919
    %3136 = vmatpush1.bf16.msra.mxu0 %v2918
    %3137 = vmatprep.subr.bf16.mxu0 %v2915
    %3138 = vmatpush1.bf16.msra.mxu0 %v2914
    %3139 = vmatprep.subr.bf16.mxu0 %v2911
    %3140 = vmatpush1.bf16.msra.mxu0 %v2910
    %3141 = vmatprep.subr.bf16.mxu0 %v2907
    %3142 = vmatpush1.bf16.msra.mxu0 %v2906
    %3143 = vmatprep.subr.bf16.mxu0 %v2903
    %3144 = vmatpush1.bf16.msra.mxu0 %v2902
    %3145 = vmatprep.subr.bf16.mxu0 %v2899
    %3146 = vmatpush1.bf16.msra.mxu0 %v2898
    %3147 = vmatprep.subr.bf16.mxu0 %v2959
    %3148 = vmatpush2.bf16.msra.mxu0 %v2958
    %3149 = vmatprep.subr.bf16.mxu0 %v2955
    %3150 = vmatpush2.bf16.msra.mxu0 %v2954
    %3151 = vmatprep.subr.bf16.mxu0 %v2951
    %3152 = vmatpush2.bf16.msra.mxu0 %v2950
    %3153 = vmatprep.subr.bf16.mxu0 %v2947
    %3154 = vmatpush2.bf16.msra.mxu0 %v2946
    %3155 = vmatprep.subr.bf16.mxu0 %v2943
    %3156 = vmatpush2.bf16.msra.mxu0 %v2942
    %3157 = vmatprep.subr.bf16.mxu0 %v2939
    %3158 = vmatpush2.bf16.msra.mxu0 %v2938
    %3159 = vmatprep.subr.bf16.mxu0 %v2935
    %3160 = vmatpush2.bf16.msra.mxu0 %v2934
    %3161 = vmatprep.subr.bf16.mxu0 %v2931
    %3162 = vmatpush2.bf16.msra.mxu0 %v2930
    %3163 = vmatprep.mubr.bf16.mxu0 %v2304
    %3164 = vmatmul.mubr.bf16.gmra.mxu0 %v2303
    %v3165 = vpop.f32.mrf.mxu0
    %v3166 = vadd.f32 %v3125, %v3165
    %v3167 = vpop.f32.mrf.mxu0
    %v3168 = vadd.f32 %v3127, %v3167
    %v3169 = vpop.f32.mrf.mxu0
    %v3170 = vpop.f32.mrf.mxu0
    %3171 = vdwg.mxu0
    %3172 = vmatprep.subr.bf16.mxu0 %v2865
    %3173 = vmatpush1.bf16.msra.mxu0 %v2864
    %3174 = vmatprep.subr.bf16.mxu0 %v2861
    %3175 = vmatpush1.bf16.msra.mxu0 %v2860
    %3176 = vmatprep.subr.bf16.mxu0 %v2857
    %3177 = vmatpush1.bf16.msra.mxu0 %v2856
    %3178 = vmatprep.subr.bf16.mxu0 %v2853
    %3179 = vmatpush1.bf16.msra.mxu0 %v2852
    %3180 = vmatprep.subr.bf16.mxu0 %v2849
    %3181 = vmatpush1.bf16.msra.mxu0 %v2848
    %3182 = vmatprep.subr.bf16.mxu0 %v2845
    %3183 = vmatpush1.bf16.msra.mxu0 %v2844
    %3184 = vmatprep.subr.bf16.mxu0 %v2841
    %3185 = vmatpush1.bf16.msra.mxu0 %v2840
    %3186 = vmatprep.subr.bf16.mxu0 %v2837
    %3187 = vmatpush1.bf16.msra.mxu0 %v2836
    %3188 = vmatprep.subr.bf16.mxu0 %v2897
    %3189 = vmatpush2.bf16.msra.mxu0 %v2896
    %3190 = vmatprep.subr.bf16.mxu0 %v2893
    %3191 = vmatpush2.bf16.msra.mxu0 %v2892
    %3192 = vmatprep.subr.bf16.mxu0 %v2889
    %3193 = vmatpush2.bf16.msra.mxu0 %v2888
    %3194 = vmatprep.subr.bf16.mxu0 %v2885
    %3195 = vmatpush2.bf16.msra.mxu0 %v2884
    %3196 = vmatprep.subr.bf16.mxu0 %v2881
    %3197 = vmatpush2.bf16.msra.mxu0 %v2880
    %3198 = vmatprep.subr.bf16.mxu0 %v2877
    %3199 = vmatpush2.bf16.msra.mxu0 %v2876
    %3200 = vmatprep.subr.bf16.mxu0 %v2873
    %3201 = vmatpush2.bf16.msra.mxu0 %v2872
    %3202 = vmatprep.subr.bf16.mxu0 %v2869
    %3203 = vmatpush2.bf16.msra.mxu0 %v2868
    %3204 = vmatprep.mubr.bf16.mxu0 %v2302
    %3205 = vmatmul.mubr.bf16.gmra.mxu0 %v2301
    %v3206 = vpop.f32.mrf.mxu0
    %v3207 = vadd.f32 %v2445, %v3206
    %v3208 = vpop.f32.mrf.mxu0
    %v3209 = vadd.f32 %v2449, %v3208
    %v3210 = vpop.f32.mrf.mxu0
    %v3211 = vpop.f32.mrf.mxu0
    %3212 = vdwg.mxu0
    %3213 = vmatprep.subr.bf16.mxu0 %v2929
    %3214 = vmatpush1.bf16.msra.mxu0 %v2928
    %3215 = vmatprep.subr.bf16.mxu0 %v2925
    %3216 = vmatpush1.bf16.msra.mxu0 %v2924
    %3217 = vmatprep.subr.bf16.mxu0 %v2921
    %3218 = vmatpush1.bf16.msra.mxu0 %v2920
    %3219 = vmatprep.subr.bf16.mxu0 %v2917
    %3220 = vmatpush1.bf16.msra.mxu0 %v2916
    %3221 = vmatprep.subr.bf16.mxu0 %v2913
    %3222 = vmatpush1.bf16.msra.mxu0 %v2912
    %3223 = vmatprep.subr.bf16.mxu0 %v2909
    %3224 = vmatpush1.bf16.msra.mxu0 %v2908
    %3225 = vmatprep.subr.bf16.mxu0 %v2905
    %3226 = vmatpush1.bf16.msra.mxu0 %v2904
    %3227 = vmatprep.subr.bf16.mxu0 %v2901
    %3228 = vmatpush1.bf16.msra.mxu0 %v2900
    %3229 = vmatprep.subr.bf16.mxu0 %v2961
    %3230 = vmatpush2.bf16.msra.mxu0 %v2960
    %3231 = vmatprep.subr.bf16.mxu0 %v2957
    %3232 = vmatpush2.bf16.msra.mxu0 %v2956
    %3233 = vmatprep.subr.bf16.mxu0 %v2953
    %3234 = vmatpush2.bf16.msra.mxu0 %v2952
    %3235 = vmatprep.subr.bf16.mxu0 %v2949
    %3236 = vmatpush2.bf16.msra.mxu0 %v2948
    %3237 = vmatprep.subr.bf16.mxu0 %v2945
    %3238 = vmatpush2.bf16.msra.mxu0 %v2944
    %3239 = vmatprep.subr.bf16.mxu0 %v2941
    %3240 = vmatpush2.bf16.msra.mxu0 %v2940
    %3241 = vmatprep.subr.bf16.mxu0 %v2937
    %3242 = vmatpush2.bf16.msra.mxu0 %v2936
    %3243 = vmatprep.subr.bf16.mxu0 %v2933
    %3244 = vmatpush2.bf16.msra.mxu0 %v2932
    %3245 = vmatprep.mubr.bf16.mxu0 %v2304
    %3246 = vmatmul.mubr.bf16.gmra.mxu0 %v2303
    %v3247 = vpop.f32.mrf.mxu0
    %v3248 = vadd.f32 %v3207, %v3247
    %v3249 = vpop.f32.mrf.mxu0
    %v3250 = vadd.f32 %v3209, %v3249
    %v3251 = vpop.f32.mrf.mxu0
    %v3252 = vpop.f32.mrf.mxu0
    %3253 = vdwg.mxu0
    %v3254 = vmul.f32 %v3166, 0.2
    %v3255 = vmul.f32 %v3168, 0.2
    %v3256 = vmul.f32 %v3248, 0.2
    %v3257 = vmul.f32 %v3250, 0.2
    %v3258 = vmax.f32 %v3166, %v3254
    %v3259 = vmax.f32 %v3168, %v3255
    %v3260 = vmax.f32 %v3248, %v3256
    %v3261 = vmax.f32 %v3250, %v3257
    %v3262 = vpack.c.bf16 %v3258, %v3258
    %v3263 = vpack.c.bf16 %v3259, %v3259
    %v3264 = vpack.c.bf16 %v3260, %v3260
    %v3265 = vpack.c.bf16 %v3261, %v3261
    %s3266 = scalar_lea.vmem [#allocation7], 3072
    %v3267 = vld [vmem:[%s3266] sm:$0xff]
    %v3268 = vld [vmem:[%s3266 + $0x8] sm:$0xff]
    %v3269 = vld [vmem:[%s3266 + $0x10] sm:$0xff]
    %v3270 = vld [vmem:[%s3266 + $0x18] sm:$0xff]
    %v3271 = vld [vmem:[%s3266 + $0x20] sm:$0xff]
    %v3272 = vld [vmem:[%s3266 + $0x28] sm:$0xff]
    %v3273 = vld [vmem:[%s3266 + $0x30] sm:$0xff]
    %v3274 = vld [vmem:[%s3266 + $0x38] sm:$0xff]
    %v3275 = vld [vmem:[%s3266 + $0x40] sm:$0xff]
    %v3276 = vld [vmem:[%s3266 + $0x48] sm:$0xff]
    %v3277 = vld [vmem:[%s3266 + $0x50] sm:$0xff]
    %v3278 = vld [vmem:[%s3266 + $0x58] sm:$0xff]
    %v3279 = vld [vmem:[%s3266 + $0x60] sm:$0xff]
    %v3280 = vld [vmem:[%s3266 + $0x68] sm:$0xff]
    %v3281 = vld [vmem:[%s3266 + $0x70] sm:$0xff]
    %v3282 = vld [vmem:[%s3266 + $0x78] sm:$0xff]
    %v3283 = vld [vmem:[%s3266 + $0x80] sm:$0xff]
    %v3284 = vld [vmem:[%s3266 + $0x88] sm:$0xff]
    %v3285 = vld [vmem:[%s3266 + $0x90] sm:$0xff]
    %v3286 = vld [vmem:[%s3266 + $0x98] sm:$0xff]
    %v3287 = vld [vmem:[%s3266 + $0xa0] sm:$0xff]
    %v3288 = vld [vmem:[%s3266 + $0xa8] sm:$0xff]
    %v3289 = vld [vmem:[%s3266 + $0xb0] sm:$0xff]
    %v3290 = vld [vmem:[%s3266 + $0xb8] sm:$0xff]
    %v3291 = vld [vmem:[%s3266 + $0xc0] sm:$0xff]
    %v3292 = vld [vmem:[%s3266 + $0xc8] sm:$0xff]
    %v3293 = vld [vmem:[%s3266 + $0xd0] sm:$0xff]
    %v3294 = vld [vmem:[%s3266 + $0xd8] sm:$0xff]
    %v3295 = vld [vmem:[%s3266 + $0xe0] sm:$0xff]
    %v3296 = vld [vmem:[%s3266 + $0xe8] sm:$0xff]
    %v3297 = vld [vmem:[%s3266 + $0xf0] sm:$0xff]
    %v3298 = vld [vmem:[%s3266 + $0xf8] sm:$0xff]
    %v3299 = vld [vmem:[%s3266 + $0x100] sm:$0xff]
    %v3300 = vld [vmem:[%s3266 + $0x108] sm:$0xff]
    %v3301 = vld [vmem:[%s3266 + $0x110] sm:$0xff]
    %v3302 = vld [vmem:[%s3266 + $0x118] sm:$0xff]
    %v3303 = vld [vmem:[%s3266 + $0x120] sm:$0xff]
    %v3304 = vld [vmem:[%s3266 + $0x128] sm:$0xff]
    %v3305 = vld [vmem:[%s3266 + $0x130] sm:$0xff]
    %v3306 = vld [vmem:[%s3266 + $0x138] sm:$0xff]
    %v3307 = vld [vmem:[%s3266 + $0x140] sm:$0xff]
    %v3308 = vld [vmem:[%s3266 + $0x148] sm:$0xff]
    %v3309 = vld [vmem:[%s3266 + $0x150] sm:$0xff]
    %v3310 = vld [vmem:[%s3266 + $0x158] sm:$0xff]
    %v3311 = vld [vmem:[%s3266 + $0x160] sm:$0xff]
    %v3312 = vld [vmem:[%s3266 + $0x168] sm:$0xff]
    %v3313 = vld [vmem:[%s3266 + $0x170] sm:$0xff]
    %v3314 = vld [vmem:[%s3266 + $0x178] sm:$0xff]
    %v3315 = vld [vmem:[%s3266 + $0x180] sm:$0xff]
    %v3316 = vld [vmem:[%s3266 + $0x188] sm:$0xff]
    %v3317 = vld [vmem:[%s3266 + $0x190] sm:$0xff]
    %v3318 = vld [vmem:[%s3266 + $0x198] sm:$0xff]
    %v3319 = vld [vmem:[%s3266 + $0x1a0] sm:$0xff]
    %v3320 = vld [vmem:[%s3266 + $0x1a8] sm:$0xff]
    %v3321 = vld [vmem:[%s3266 + $0x1b0] sm:$0xff]
    %v3322 = vld [vmem:[%s3266 + $0x1b8] sm:$0xff]
    %v3323 = vld [vmem:[%s3266 + $0x1c0] sm:$0xff]
    %v3324 = vld [vmem:[%s3266 + $0x1c8] sm:$0xff]
    %v3325 = vld [vmem:[%s3266 + $0x1d0] sm:$0xff]
    %v3326 = vld [vmem:[%s3266 + $0x1d8] sm:$0xff]
    %v3327 = vld [vmem:[%s3266 + $0x1e0] sm:$0xff]
    %v3328 = vld [vmem:[%s3266 + $0x1e8] sm:$0xff]
    %v3329 = vld [vmem:[%s3266 + $0x1f0] sm:$0xff]
    %v3330 = vld [vmem:[%s3266 + $0x1f8] sm:$0xff]
    %v3331 = vld [vmem:[%s3266 + $0x200] sm:$0xff]
    %v3332 = vld [vmem:[%s3266 + $0x208] sm:$0xff]
    %v3333 = vld [vmem:[%s3266 + $0x210] sm:$0xff]
    %v3334 = vld [vmem:[%s3266 + $0x218] sm:$0xff]
    %v3335 = vld [vmem:[%s3266 + $0x220] sm:$0xff]
    %v3336 = vld [vmem:[%s3266 + $0x228] sm:$0xff]
    %v3337 = vld [vmem:[%s3266 + $0x230] sm:$0xff]
    %v3338 = vld [vmem:[%s3266 + $0x238] sm:$0xff]
    %v3339 = vld [vmem:[%s3266 + $0x240] sm:$0xff]
    %v3340 = vld [vmem:[%s3266 + $0x248] sm:$0xff]
    %v3341 = vld [vmem:[%s3266 + $0x250] sm:$0xff]
    %v3342 = vld [vmem:[%s3266 + $0x258] sm:$0xff]
    %v3343 = vld [vmem:[%s3266 + $0x260] sm:$0xff]
    %v3344 = vld [vmem:[%s3266 + $0x268] sm:$0xff]
    %v3345 = vld [vmem:[%s3266 + $0x270] sm:$0xff]
    %v3346 = vld [vmem:[%s3266 + $0x278] sm:$0xff]
    %v3347 = vld [vmem:[%s3266 + $0x280] sm:$0xff]
    %v3348 = vld [vmem:[%s3266 + $0x288] sm:$0xff]
    %v3349 = vld [vmem:[%s3266 + $0x290] sm:$0xff]
    %v3350 = vld [vmem:[%s3266 + $0x298] sm:$0xff]
    %v3351 = vld [vmem:[%s3266 + $0x2a0] sm:$0xff]
    %v3352 = vld [vmem:[%s3266 + $0x2a8] sm:$0xff]
    %v3353 = vld [vmem:[%s3266 + $0x2b0] sm:$0xff]
    %v3354 = vld [vmem:[%s3266 + $0x2b8] sm:$0xff]
    %v3355 = vld [vmem:[%s3266 + $0x2c0] sm:$0xff]
    %v3356 = vld [vmem:[%s3266 + $0x2c8] sm:$0xff]
    %v3357 = vld [vmem:[%s3266 + $0x2d0] sm:$0xff]
    %v3358 = vld [vmem:[%s3266 + $0x2d8] sm:$0xff]
    %v3359 = vld [vmem:[%s3266 + $0x2e0] sm:$0xff]
    %v3360 = vld [vmem:[%s3266 + $0x2e8] sm:$0xff]
    %v3361 = vld [vmem:[%s3266 + $0x2f0] sm:$0xff]
    %v3362 = vld [vmem:[%s3266 + $0x2f8] sm:$0xff]
    %v3363 = vld [vmem:[%s3266 + $0x300] sm:$0xff]
    %v3364 = vld [vmem:[%s3266 + $0x308] sm:$0xff]
    %v3365 = vld [vmem:[%s3266 + $0x310] sm:$0xff]
    %v3366 = vld [vmem:[%s3266 + $0x318] sm:$0xff]
    %v3367 = vld [vmem:[%s3266 + $0x320] sm:$0xff]
    %v3368 = vld [vmem:[%s3266 + $0x328] sm:$0xff]
    %v3369 = vld [vmem:[%s3266 + $0x330] sm:$0xff]
    %v3370 = vld [vmem:[%s3266 + $0x338] sm:$0xff]
    %v3371 = vld [vmem:[%s3266 + $0x340] sm:$0xff]
    %v3372 = vld [vmem:[%s3266 + $0x348] sm:$0xff]
    %v3373 = vld [vmem:[%s3266 + $0x350] sm:$0xff]
    %v3374 = vld [vmem:[%s3266 + $0x358] sm:$0xff]
    %v3375 = vld [vmem:[%s3266 + $0x360] sm:$0xff]
    %v3376 = vld [vmem:[%s3266 + $0x368] sm:$0xff]
    %v3377 = vld [vmem:[%s3266 + $0x370] sm:$0xff]
    %v3378 = vld [vmem:[%s3266 + $0x378] sm:$0xff]
    %v3379 = vld [vmem:[%s3266 + $0x380] sm:$0xff]
    %v3380 = vld [vmem:[%s3266 + $0x388] sm:$0xff]
    %v3381 = vld [vmem:[%s3266 + $0x390] sm:$0xff]
    %v3382 = vld [vmem:[%s3266 + $0x398] sm:$0xff]
    %v3383 = vld [vmem:[%s3266 + $0x3a0] sm:$0xff]
    %v3384 = vld [vmem:[%s3266 + $0x3a8] sm:$0xff]
    %v3385 = vld [vmem:[%s3266 + $0x3b0] sm:$0xff]
    %v3386 = vld [vmem:[%s3266 + $0x3b8] sm:$0xff]
    %v3387 = vld [vmem:[%s3266 + $0x3c0] sm:$0xff]
    %v3388 = vld [vmem:[%s3266 + $0x3c8] sm:$0xff]
    %v3389 = vld [vmem:[%s3266 + $0x3d0] sm:$0xff]
    %v3390 = vld [vmem:[%s3266 + $0x3d8] sm:$0xff]
    %v3391 = vld [vmem:[%s3266 + $0x3e0] sm:$0xff]
    %v3392 = vld [vmem:[%s3266 + $0x3e8] sm:$0xff]
    %v3393 = vld [vmem:[%s3266 + $0x3f0] sm:$0xff]
    %v3394 = vld [vmem:[%s3266 + $0x3f8] sm:$0xff]
    %v3395 = vlaneseq
    %v3396 = vshrl.u32 %v3395, 7
    %v3397 = vsub.s32 4, %v3396
    %v3398 = vrot.slane %v77, %v3397
    %v3399 = vlaneseq
    %v3400 = vshrl.u32 %v3399, 7
    %v3401 = vsub.s32 4, %v3400
    %v3402 = vrot.slane %v78, %v3401
    %v3403 = vlaneseq
    %v3404 = vshrl.u32 %v3403, 7
    %v3405 = vsub.s32 4, %v3404
    %v3406 = vrot.slane %v79, %v3405
    %v3407 = vlaneseq
    %v3408 = vshrl.u32 %v3407, 7
    %v3409 = vsub.s32 4, %v3408
    %v3410 = vrot.slane %v80, %v3409
    %v3539 = vunpack.c.l.b16 %v3267
    %v3540 = vunpack.c.h.b16 %v3267
    %v3541 = vunpack.c.l.b16 %v3268
    %v3542 = vunpack.c.h.b16 %v3268
    %v3543 = vunpack.c.l.b16 %v3269
    %v3544 = vunpack.c.h.b16 %v3269
    %v3545 = vunpack.c.l.b16 %v3270
    %v3546 = vunpack.c.h.b16 %v3270
    %v3547 = vunpack.c.l.b16 %v3271
    %v3548 = vunpack.c.h.b16 %v3271
    %v3549 = vunpack.c.l.b16 %v3272
    %v3550 = vunpack.c.h.b16 %v3272
    %v3551 = vunpack.c.l.b16 %v3273
    %v3552 = vunpack.c.h.b16 %v3273
    %v3553 = vunpack.c.l.b16 %v3274
    %v3554 = vunpack.c.h.b16 %v3274
    %v3555 = vunpack.c.l.b16 %v3275
    %v3556 = vunpack.c.h.b16 %v3275
    %v3557 = vunpack.c.l.b16 %v3276
    %v3558 = vunpack.c.h.b16 %v3276
    %v3559 = vunpack.c.l.b16 %v3277
    %v3560 = vunpack.c.h.b16 %v3277
    %v3561 = vunpack.c.l.b16 %v3278
    %v3562 = vunpack.c.h.b16 %v3278
    %v3563 = vunpack.c.l.b16 %v3279
    %v3564 = vunpack.c.h.b16 %v3279
    %v3565 = vunpack.c.l.b16 %v3280
    %v3566 = vunpack.c.h.b16 %v3280
    %v3567 = vunpack.c.l.b16 %v3281
    %v3568 = vunpack.c.h.b16 %v3281
    %v3569 = vunpack.c.l.b16 %v3282
    %v3570 = vunpack.c.h.b16 %v3282
    %v3571 = vunpack.c.l.b16 %v3283
    %v3572 = vunpack.c.h.b16 %v3283
    %v3573 = vunpack.c.l.b16 %v3284
    %v3574 = vunpack.c.h.b16 %v3284
    %v3575 = vunpack.c.l.b16 %v3285
    %v3576 = vunpack.c.h.b16 %v3285
    %v3577 = vunpack.c.l.b16 %v3286
    %v3578 = vunpack.c.h.b16 %v3286
    %v3579 = vunpack.c.l.b16 %v3287
    %v3580 = vunpack.c.h.b16 %v3287
    %v3581 = vunpack.c.l.b16 %v3288
    %v3582 = vunpack.c.h.b16 %v3288
    %v3583 = vunpack.c.l.b16 %v3289
    %v3584 = vunpack.c.h.b16 %v3289
    %v3585 = vunpack.c.l.b16 %v3290
    %v3586 = vunpack.c.h.b16 %v3290
    %v3587 = vunpack.c.l.b16 %v3291
    %v3588 = vunpack.c.h.b16 %v3291
    %v3589 = vunpack.c.l.b16 %v3292
    %v3590 = vunpack.c.h.b16 %v3292
    %v3591 = vunpack.c.l.b16 %v3293
    %v3592 = vunpack.c.h.b16 %v3293
    %v3593 = vunpack.c.l.b16 %v3294
    %v3594 = vunpack.c.h.b16 %v3294
    %v3595 = vunpack.c.l.b16 %v3295
    %v3596 = vunpack.c.h.b16 %v3295
    %v3597 = vunpack.c.l.b16 %v3296
    %v3598 = vunpack.c.h.b16 %v3296
    %v3599 = vunpack.c.l.b16 %v3297
    %v3600 = vunpack.c.h.b16 %v3297
    %v3601 = vunpack.c.l.b16 %v3298
    %v3602 = vunpack.c.h.b16 %v3298
    %v3603 = vunpack.c.l.b16 %v3299
    %v3604 = vunpack.c.h.b16 %v3299
    %v3605 = vunpack.c.l.b16 %v3300
    %v3606 = vunpack.c.h.b16 %v3300
    %v3607 = vunpack.c.l.b16 %v3301
    %v3608 = vunpack.c.h.b16 %v3301
    %v3609 = vunpack.c.l.b16 %v3302
    %v3610 = vunpack.c.h.b16 %v3302
    %v3611 = vunpack.c.l.b16 %v3303
    %v3612 = vunpack.c.h.b16 %v3303
    %v3613 = vunpack.c.l.b16 %v3304
    %v3614 = vunpack.c.h.b16 %v3304
    %v3615 = vunpack.c.l.b16 %v3305
    %v3616 = vunpack.c.h.b16 %v3305
    %v3617 = vunpack.c.l.b16 %v3306
    %v3618 = vunpack.c.h.b16 %v3306
    %v3619 = vunpack.c.l.b16 %v3307
    %v3620 = vunpack.c.h.b16 %v3307
    %v3621 = vunpack.c.l.b16 %v3308
    %v3622 = vunpack.c.h.b16 %v3308
    %v3623 = vunpack.c.l.b16 %v3309
    %v3624 = vunpack.c.h.b16 %v3309
    %v3625 = vunpack.c.l.b16 %v3310
    %v3626 = vunpack.c.h.b16 %v3310
    %v3627 = vunpack.c.l.b16 %v3311
    %v3628 = vunpack.c.h.b16 %v3311
    %v3629 = vunpack.c.l.b16 %v3312
    %v3630 = vunpack.c.h.b16 %v3312
    %v3631 = vunpack.c.l.b16 %v3313
    %v3632 = vunpack.c.h.b16 %v3313
    %v3633 = vunpack.c.l.b16 %v3314
    %v3634 = vunpack.c.h.b16 %v3314
    %v3635 = vunpack.c.l.b16 %v3315
    %v3636 = vunpack.c.h.b16 %v3315
    %v3637 = vunpack.c.l.b16 %v3316
    %v3638 = vunpack.c.h.b16 %v3316
    %v3639 = vunpack.c.l.b16 %v3317
    %v3640 = vunpack.c.h.b16 %v3317
    %v3641 = vunpack.c.l.b16 %v3318
    %v3642 = vunpack.c.h.b16 %v3318
    %v3643 = vunpack.c.l.b16 %v3319
    %v3644 = vunpack.c.h.b16 %v3319
    %v3645 = vunpack.c.l.b16 %v3320
    %v3646 = vunpack.c.h.b16 %v3320
    %v3647 = vunpack.c.l.b16 %v3321
    %v3648 = vunpack.c.h.b16 %v3321
    %v3649 = vunpack.c.l.b16 %v3322
    %v3650 = vunpack.c.h.b16 %v3322
    %v3651 = vunpack.c.l.b16 %v3323
    %v3652 = vunpack.c.h.b16 %v3323
    %v3653 = vunpack.c.l.b16 %v3324
    %v3654 = vunpack.c.h.b16 %v3324
    %v3655 = vunpack.c.l.b16 %v3325
    %v3656 = vunpack.c.h.b16 %v3325
    %v3657 = vunpack.c.l.b16 %v3326
    %v3658 = vunpack.c.h.b16 %v3326
    %v3659 = vunpack.c.l.b16 %v3327
    %v3660 = vunpack.c.h.b16 %v3327
    %v3661 = vunpack.c.l.b16 %v3328
    %v3662 = vunpack.c.h.b16 %v3328
    %v3663 = vunpack.c.l.b16 %v3329
    %v3664 = vunpack.c.h.b16 %v3329
    %v3665 = vunpack.c.l.b16 %v3330
    %v3666 = vunpack.c.h.b16 %v3330
    %v3667 = vunpack.c.l.b16 %v3331
    %v3668 = vunpack.c.h.b16 %v3331
    %v3669 = vunpack.c.l.b16 %v3332
    %v3670 = vunpack.c.h.b16 %v3332
    %v3671 = vunpack.c.l.b16 %v3333
    %v3672 = vunpack.c.h.b16 %v3333
    %v3673 = vunpack.c.l.b16 %v3334
    %v3674 = vunpack.c.h.b16 %v3334
    %v3675 = vunpack.c.l.b16 %v3335
    %v3676 = vunpack.c.h.b16 %v3335
    %v3677 = vunpack.c.l.b16 %v3336
    %v3678 = vunpack.c.h.b16 %v3336
    %v3679 = vunpack.c.l.b16 %v3337
    %v3680 = vunpack.c.h.b16 %v3337
    %v3681 = vunpack.c.l.b16 %v3338
    %v3682 = vunpack.c.h.b16 %v3338
    %v3683 = vunpack.c.l.b16 %v3339
    %v3684 = vunpack.c.h.b16 %v3339
    %v3685 = vunpack.c.l.b16 %v3340
    %v3686 = vunpack.c.h.b16 %v3340
    %v3687 = vunpack.c.l.b16 %v3341
    %v3688 = vunpack.c.h.b16 %v3341
    %v3689 = vunpack.c.l.b16 %v3342
    %v3690 = vunpack.c.h.b16 %v3342
    %v3691 = vunpack.c.l.b16 %v3343
    %v3692 = vunpack.c.h.b16 %v3343
    %v3693 = vunpack.c.l.b16 %v3344
    %v3694 = vunpack.c.h.b16 %v3344
    %v3695 = vunpack.c.l.b16 %v3345
    %v3696 = vunpack.c.h.b16 %v3345
    %v3697 = vunpack.c.l.b16 %v3346
    %v3698 = vunpack.c.h.b16 %v3346
    %v3699 = vunpack.c.l.b16 %v3347
    %v3700 = vunpack.c.h.b16 %v3347
    %v3701 = vunpack.c.l.b16 %v3348
    %v3702 = vunpack.c.h.b16 %v3348
    %v3703 = vunpack.c.l.b16 %v3349
    %v3704 = vunpack.c.h.b16 %v3349
    %v3705 = vunpack.c.l.b16 %v3350
    %v3706 = vunpack.c.h.b16 %v3350
    %v3707 = vunpack.c.l.b16 %v3351
    %v3708 = vunpack.c.h.b16 %v3351
    %v3709 = vunpack.c.l.b16 %v3352
    %v3710 = vunpack.c.h.b16 %v3352
    %v3711 = vunpack.c.l.b16 %v3353
    %v3712 = vunpack.c.h.b16 %v3353
    %v3713 = vunpack.c.l.b16 %v3354
    %v3714 = vunpack.c.h.b16 %v3354
    %v3715 = vunpack.c.l.b16 %v3355
    %v3716 = vunpack.c.h.b16 %v3355
    %v3717 = vunpack.c.l.b16 %v3356
    %v3718 = vunpack.c.h.b16 %v3356
    %v3719 = vunpack.c.l.b16 %v3357
    %v3720 = vunpack.c.h.b16 %v3357
    %v3721 = vunpack.c.l.b16 %v3358
    %v3722 = vunpack.c.h.b16 %v3358
    %v3723 = vunpack.c.l.b16 %v3359
    %v3724 = vunpack.c.h.b16 %v3359
    %v3725 = vunpack.c.l.b16 %v3360
    %v3726 = vunpack.c.h.b16 %v3360
    %v3727 = vunpack.c.l.b16 %v3361
    %v3728 = vunpack.c.h.b16 %v3361
    %v3729 = vunpack.c.l.b16 %v3362
    %v3730 = vunpack.c.h.b16 %v3362
    %v3731 = vunpack.c.l.b16 %v3363
    %v3732 = vunpack.c.h.b16 %v3363
    %v3733 = vunpack.c.l.b16 %v3364
    %v3734 = vunpack.c.h.b16 %v3364
    %v3735 = vunpack.c.l.b16 %v3365
    %v3736 = vunpack.c.h.b16 %v3365
    %v3737 = vunpack.c.l.b16 %v3366
    %v3738 = vunpack.c.h.b16 %v3366
    %v3739 = vunpack.c.l.b16 %v3367
    %v3740 = vunpack.c.h.b16 %v3367
    %v3741 = vunpack.c.l.b16 %v3368
    %v3742 = vunpack.c.h.b16 %v3368
    %v3743 = vunpack.c.l.b16 %v3369
    %v3744 = vunpack.c.h.b16 %v3369
    %v3745 = vunpack.c.l.b16 %v3370
    %v3746 = vunpack.c.h.b16 %v3370
    %v3747 = vunpack.c.l.b16 %v3371
    %v3748 = vunpack.c.h.b16 %v3371
    %v3749 = vunpack.c.l.b16 %v3372
    %v3750 = vunpack.c.h.b16 %v3372
    %v3751 = vunpack.c.l.b16 %v3373
    %v3752 = vunpack.c.h.b16 %v3373
    %v3753 = vunpack.c.l.b16 %v3374
    %v3754 = vunpack.c.h.b16 %v3374
    %v3755 = vunpack.c.l.b16 %v3375
    %v3756 = vunpack.c.h.b16 %v3375
    %v3757 = vunpack.c.l.b16 %v3376
    %v3758 = vunpack.c.h.b16 %v3376
    %v3759 = vunpack.c.l.b16 %v3377
    %v3760 = vunpack.c.h.b16 %v3377
    %v3761 = vunpack.c.l.b16 %v3378
    %v3762 = vunpack.c.h.b16 %v3378
    %v3763 = vunpack.c.l.b16 %v3379
    %v3764 = vunpack.c.h.b16 %v3379
    %v3765 = vunpack.c.l.b16 %v3380
    %v3766 = vunpack.c.h.b16 %v3380
    %v3767 = vunpack.c.l.b16 %v3381
    %v3768 = vunpack.c.h.b16 %v3381
    %v3769 = vunpack.c.l.b16 %v3382
    %v3770 = vunpack.c.h.b16 %v3382
    %v3771 = vunpack.c.l.b16 %v3383
    %v3772 = vunpack.c.h.b16 %v3383
    %v3773 = vunpack.c.l.b16 %v3384
    %v3774 = vunpack.c.h.b16 %v3384
    %v3775 = vunpack.c.l.b16 %v3385
    %v3776 = vunpack.c.h.b16 %v3385
    %v3777 = vunpack.c.l.b16 %v3386
    %v3778 = vunpack.c.h.b16 %v3386
    %v3779 = vunpack.c.l.b16 %v3387
    %v3780 = vunpack.c.h.b16 %v3387
    %v3781 = vunpack.c.l.b16 %v3388
    %v3782 = vunpack.c.h.b16 %v3388
    %v3783 = vunpack.c.l.b16 %v3389
    %v3784 = vunpack.c.h.b16 %v3389
    %v3785 = vunpack.c.l.b16 %v3390
    %v3786 = vunpack.c.h.b16 %v3390
    %v3787 = vunpack.c.l.b16 %v3391
    %v3788 = vunpack.c.h.b16 %v3391
    %v3789 = vunpack.c.l.b16 %v3392
    %v3790 = vunpack.c.h.b16 %v3392
    %v3791 = vunpack.c.l.b16 %v3393
    %v3792 = vunpack.c.h.b16 %v3393
    %v3793 = vunpack.c.l.b16 %v3394
    %v3794 = vunpack.c.h.b16 %v3394
    %v3795 = vpack.c.b16 %v3543, %v3539
    %v3796 = vpack.c.b16 %v3544, %v3540
    %v3797 = vpack.c.b16 %v3545, %v3541
    %v3798 = vpack.c.b16 %v3546, %v3542
    %v3799 = vpack.c.b16 %v3551, %v3547
    %v3800 = vpack.c.b16 %v3552, %v3548
    %v3801 = vpack.c.b16 %v3553, %v3549
    %v3802 = vpack.c.b16 %v3554, %v3550
    %v3803 = vpack.c.b16 %v3559, %v3555
    %v3804 = vpack.c.b16 %v3560, %v3556
    %v3805 = vpack.c.b16 %v3561, %v3557
    %v3806 = vpack.c.b16 %v3562, %v3558
    %v3807 = vpack.c.b16 %v3567, %v3563
    %v3808 = vpack.c.b16 %v3568, %v3564
    %v3809 = vpack.c.b16 %v3569, %v3565
    %v3810 = vpack.c.b16 %v3570, %v3566
    %v3811 = vpack.c.b16 %v3575, %v3571
    %v3812 = vpack.c.b16 %v3576, %v3572
    %v3813 = vpack.c.b16 %v3577, %v3573
    %v3814 = vpack.c.b16 %v3578, %v3574
    %v3815 = vpack.c.b16 %v3583, %v3579
    %v3816 = vpack.c.b16 %v3584, %v3580
    %v3817 = vpack.c.b16 %v3585, %v3581
    %v3818 = vpack.c.b16 %v3586, %v3582
    %v3819 = vpack.c.b16 %v3591, %v3587
    %v3820 = vpack.c.b16 %v3592, %v3588
    %v3821 = vpack.c.b16 %v3593, %v3589
    %v3822 = vpack.c.b16 %v3594, %v3590
    %v3823 = vpack.c.b16 %v3599, %v3595
    %v3824 = vpack.c.b16 %v3600, %v3596
    %v3825 = vpack.c.b16 %v3601, %v3597
    %v3826 = vpack.c.b16 %v3602, %v3598
    %v3827 = vpack.c.b16 %v3607, %v3603
    %v3828 = vpack.c.b16 %v3608, %v3604
    %v3829 = vpack.c.b16 %v3609, %v3605
    %v3830 = vpack.c.b16 %v3610, %v3606
    %v3831 = vpack.c.b16 %v3615, %v3611
    %v3832 = vpack.c.b16 %v3616, %v3612
    %v3833 = vpack.c.b16 %v3617, %v3613
    %v3834 = vpack.c.b16 %v3618, %v3614
    %v3835 = vpack.c.b16 %v3623, %v3619
    %v3836 = vpack.c.b16 %v3624, %v3620
    %v3837 = vpack.c.b16 %v3625, %v3621
    %v3838 = vpack.c.b16 %v3626, %v3622
    %v3839 = vpack.c.b16 %v3631, %v3627
    %v3840 = vpack.c.b16 %v3632, %v3628
    %v3841 = vpack.c.b16 %v3633, %v3629
    %v3842 = vpack.c.b16 %v3634, %v3630
    %v3843 = vpack.c.b16 %v3639, %v3635
    %v3844 = vpack.c.b16 %v3640, %v3636
    %v3845 = vpack.c.b16 %v3641, %v3637
    %v3846 = vpack.c.b16 %v3642, %v3638
    %v3847 = vpack.c.b16 %v3647, %v3643
    %v3848 = vpack.c.b16 %v3648, %v3644
    %v3849 = vpack.c.b16 %v3649, %v3645
    %v3850 = vpack.c.b16 %v3650, %v3646
    %v3851 = vpack.c.b16 %v3655, %v3651
    %v3852 = vpack.c.b16 %v3656, %v3652
    %v3853 = vpack.c.b16 %v3657, %v3653
    %v3854 = vpack.c.b16 %v3658, %v3654
    %v3855 = vpack.c.b16 %v3663, %v3659
    %v3856 = vpack.c.b16 %v3664, %v3660
    %v3857 = vpack.c.b16 %v3665, %v3661
    %v3858 = vpack.c.b16 %v3666, %v3662
    %v3859 = vpack.c.b16 %v3671, %v3667
    %v3860 = vpack.c.b16 %v3672, %v3668
    %v3861 = vpack.c.b16 %v3673, %v3669
    %v3862 = vpack.c.b16 %v3674, %v3670
    %v3863 = vpack.c.b16 %v3679, %v3675
    %v3864 = vpack.c.b16 %v3680, %v3676
    %v3865 = vpack.c.b16 %v3681, %v3677
    %v3866 = vpack.c.b16 %v3682, %v3678
    %v3867 = vpack.c.b16 %v3687, %v3683
    %v3868 = vpack.c.b16 %v3688, %v3684
    %v3869 = vpack.c.b16 %v3689, %v3685
    %v3870 = vpack.c.b16 %v3690, %v3686
    %v3871 = vpack.c.b16 %v3695, %v3691
    %v3872 = vpack.c.b16 %v3696, %v3692
    %v3873 = vpack.c.b16 %v3697, %v3693
    %v3874 = vpack.c.b16 %v3698, %v3694
    %v3875 = vpack.c.b16 %v3703, %v3699
    %v3876 = vpack.c.b16 %v3704, %v3700
    %v3877 = vpack.c.b16 %v3705, %v3701
    %v3878 = vpack.c.b16 %v3706, %v3702
    %v3879 = vpack.c.b16 %v3711, %v3707
    %v3880 = vpack.c.b16 %v3712, %v3708
    %v3881 = vpack.c.b16 %v3713, %v3709
    %v3882 = vpack.c.b16 %v3714, %v3710
    %v3883 = vpack.c.b16 %v3719, %v3715
    %v3884 = vpack.c.b16 %v3720, %v3716
    %v3885 = vpack.c.b16 %v3721, %v3717
    %v3886 = vpack.c.b16 %v3722, %v3718
    %v3887 = vpack.c.b16 %v3727, %v3723
    %v3888 = vpack.c.b16 %v3728, %v3724
    %v3889 = vpack.c.b16 %v3729, %v3725
    %v3890 = vpack.c.b16 %v3730, %v3726
    %v3891 = vpack.c.b16 %v3735, %v3731
    %v3892 = vpack.c.b16 %v3736, %v3732
    %v3893 = vpack.c.b16 %v3737, %v3733
    %v3894 = vpack.c.b16 %v3738, %v3734
    %v3895 = vpack.c.b16 %v3743, %v3739
    %v3896 = vpack.c.b16 %v3744, %v3740
    %v3897 = vpack.c.b16 %v3745, %v3741
    %v3898 = vpack.c.b16 %v3746, %v3742
    %v3899 = vpack.c.b16 %v3751, %v3747
    %v3900 = vpack.c.b16 %v3752, %v3748
    %v3901 = vpack.c.b16 %v3753, %v3749
    %v3902 = vpack.c.b16 %v3754, %v3750
    %v3903 = vpack.c.b16 %v3759, %v3755
    %v3904 = vpack.c.b16 %v3760, %v3756
    %v3905 = vpack.c.b16 %v3761, %v3757
    %v3906 = vpack.c.b16 %v3762, %v3758
    %v3907 = vpack.c.b16 %v3767, %v3763
    %v3908 = vpack.c.b16 %v3768, %v3764
    %v3909 = vpack.c.b16 %v3769, %v3765
    %v3910 = vpack.c.b16 %v3770, %v3766
    %v3911 = vpack.c.b16 %v3775, %v3771
    %v3912 = vpack.c.b16 %v3776, %v3772
    %v3913 = vpack.c.b16 %v3777, %v3773
    %v3914 = vpack.c.b16 %v3778, %v3774
    %v3915 = vpack.c.b16 %v3783, %v3779
    %v3916 = vpack.c.b16 %v3784, %v3780
    %v3917 = vpack.c.b16 %v3785, %v3781
    %v3918 = vpack.c.b16 %v3786, %v3782
    %v3919 = vpack.c.b16 %v3791, %v3787
    %v3920 = vpack.c.b16 %v3792, %v3788
    %v3921 = vpack.c.b16 %v3793, %v3789
    %v3922 = vpack.c.b16 %v3794, %v3790
    %4051 = vmatprep.subr.bf16.mxu0 %v3824
    %4052 = vmatpush1.bf16.msra.mxu0 %v3823
    %4053 = vmatprep.subr.bf16.mxu0 %v3820
    %4054 = vmatpush1.bf16.msra.mxu0 %v3819
    %4055 = vmatprep.subr.bf16.mxu0 %v3816
    %4056 = vmatpush1.bf16.msra.mxu0 %v3815
    %4057 = vmatprep.subr.bf16.mxu0 %v3812
    %4058 = vmatpush1.bf16.msra.mxu0 %v3811
    %4059 = vmatprep.subr.bf16.mxu0 %v3808
    %4060 = vmatpush1.bf16.msra.mxu0 %v3807
    %4061 = vmatprep.subr.bf16.mxu0 %v3804
    %4062 = vmatpush1.bf16.msra.mxu0 %v3803
    %4063 = vmatprep.subr.bf16.mxu0 %v3800
    %4064 = vmatpush1.bf16.msra.mxu0 %v3799
    %4065 = vmatprep.subr.bf16.mxu0 %v3796
    %4066 = vmatpush1.bf16.msra.mxu0 %v3795
    %4067 = vmatprep.subr.bf16.mxu0 %v3856
    %4068 = vmatpush2.bf16.msra.mxu0 %v3855
    %4069 = vmatprep.subr.bf16.mxu0 %v3852
    %4070 = vmatpush2.bf16.msra.mxu0 %v3851
    %4071 = vmatprep.subr.bf16.mxu0 %v3848
    %4072 = vmatpush2.bf16.msra.mxu0 %v3847
    %4073 = vmatprep.subr.bf16.mxu0 %v3844
    %4074 = vmatpush2.bf16.msra.mxu0 %v3843
    %4075 = vmatprep.subr.bf16.mxu0 %v3840
    %4076 = vmatpush2.bf16.msra.mxu0 %v3839
    %4077 = vmatprep.subr.bf16.mxu0 %v3836
    %4078 = vmatpush2.bf16.msra.mxu0 %v3835
    %4079 = vmatprep.subr.bf16.mxu0 %v3832
    %4080 = vmatpush2.bf16.msra.mxu0 %v3831
    %4081 = vmatprep.subr.bf16.mxu0 %v3828
    %4082 = vmatpush2.bf16.msra.mxu0 %v3827
    %4083 = vmatprep.mubr.bf16.mxu0 %v3263
    %4084 = vmatmul.mubr.bf16.gmra.mxu0 %v3262
    %v4085 = vpop.f32.mrf.mxu0
    %v4086 = vadd.f32 %v3398, %v4085
    %v4087 = vpop.f32.mrf.mxu0
    %v4088 = vadd.f32 %v3402, %v4087
    %v4089 = vpop.f32.mrf.mxu0
    %v4090 = vpop.f32.mrf.mxu0
    %4091 = vdwg.mxu0
    %4092 = vmatprep.subr.bf16.mxu0 %v3888
    %4093 = vmatpush1.bf16.msra.mxu0 %v3887
    %4094 = vmatprep.subr.bf16.mxu0 %v3884
    %4095 = vmatpush1.bf16.msra.mxu0 %v3883
    %4096 = vmatprep.subr.bf16.mxu0 %v3880
    %4097 = vmatpush1.bf16.msra.mxu0 %v3879
    %4098 = vmatprep.subr.bf16.mxu0 %v3876
    %4099 = vmatpush1.bf16.msra.mxu0 %v3875
    %4100 = vmatprep.subr.bf16.mxu0 %v3872
    %4101 = vmatpush1.bf16.msra.mxu0 %v3871
    %4102 = vmatprep.subr.bf16.mxu0 %v3868
    %4103 = vmatpush1.bf16.msra.mxu0 %v3867
    %4104 = vmatprep.subr.bf16.mxu0 %v3864
    %4105 = vmatpush1.bf16.msra.mxu0 %v3863
    %4106 = vmatprep.subr.bf16.mxu0 %v3860
    %4107 = vmatpush1.bf16.msra.mxu0 %v3859
    %4108 = vmatprep.subr.bf16.mxu0 %v3920
    %4109 = vmatpush2.bf16.msra.mxu0 %v3919
    %4110 = vmatprep.subr.bf16.mxu0 %v3916
    %4111 = vmatpush2.bf16.msra.mxu0 %v3915
    %4112 = vmatprep.subr.bf16.mxu0 %v3912
    %4113 = vmatpush2.bf16.msra.mxu0 %v3911
    %4114 = vmatprep.subr.bf16.mxu0 %v3908
    %4115 = vmatpush2.bf16.msra.mxu0 %v3907
    %4116 = vmatprep.subr.bf16.mxu0 %v3904
    %4117 = vmatpush2.bf16.msra.mxu0 %v3903
    %4118 = vmatprep.subr.bf16.mxu0 %v3900
    %4119 = vmatpush2.bf16.msra.mxu0 %v3899
    %4120 = vmatprep.subr.bf16.mxu0 %v3896
    %4121 = vmatpush2.bf16.msra.mxu0 %v3895
    %4122 = vmatprep.subr.bf16.mxu0 %v3892
    %4123 = vmatpush2.bf16.msra.mxu0 %v3891
    %4124 = vmatprep.mubr.bf16.mxu0 %v3265
    %4125 = vmatmul.mubr.bf16.gmra.mxu0 %v3264
    %v4126 = vpop.f32.mrf.mxu0
    %v4127 = vadd.f32 %v4086, %v4126
    %v4128 = vpop.f32.mrf.mxu0
    %v4129 = vadd.f32 %v4088, %v4128
    %v4130 = vpop.f32.mrf.mxu0
    %v4131 = vpop.f32.mrf.mxu0
    %4132 = vdwg.mxu0
    %4133 = vmatprep.subr.bf16.mxu0 %v3826
    %4134 = vmatpush1.bf16.msra.mxu0 %v3825
    %4135 = vmatprep.subr.bf16.mxu0 %v3822
    %4136 = vmatpush1.bf16.msra.mxu0 %v3821
    %4137 = vmatprep.subr.bf16.mxu0 %v3818
    %4138 = vmatpush1.bf16.msra.mxu0 %v3817
    %4139 = vmatprep.subr.bf16.mxu0 %v3814
    %4140 = vmatpush1.bf16.msra.mxu0 %v3813
    %4141 = vmatprep.subr.bf16.mxu0 %v3810
    %4142 = vmatpush1.bf16.msra.mxu0 %v3809
    %4143 = vmatprep.subr.bf16.mxu0 %v3806
    %4144 = vmatpush1.bf16.msra.mxu0 %v3805
    %4145 = vmatprep.subr.bf16.mxu0 %v3802
    %4146 = vmatpush1.bf16.msra.mxu0 %v3801
    %4147 = vmatprep.subr.bf16.mxu0 %v3798
    %4148 = vmatpush1.bf16.msra.mxu0 %v3797
    %4149 = vmatprep.subr.bf16.mxu0 %v3858
    %4150 = vmatpush2.bf16.msra.mxu0 %v3857
    %4151 = vmatprep.subr.bf16.mxu0 %v3854
    %4152 = vmatpush2.bf16.msra.mxu0 %v3853
    %4153 = vmatprep.subr.bf16.mxu0 %v3850
    %4154 = vmatpush2.bf16.msra.mxu0 %v3849
    %4155 = vmatprep.subr.bf16.mxu0 %v3846
    %4156 = vmatpush2.bf16.msra.mxu0 %v3845
    %4157 = vmatprep.subr.bf16.mxu0 %v3842
    %4158 = vmatpush2.bf16.msra.mxu0 %v3841
    %4159 = vmatprep.subr.bf16.mxu0 %v3838
    %4160 = vmatpush2.bf16.msra.mxu0 %v3837
    %4161 = vmatprep.subr.bf16.mxu0 %v3834
    %4162 = vmatpush2.bf16.msra.mxu0 %v3833
    %4163 = vmatprep.subr.bf16.mxu0 %v3830
    %4164 = vmatpush2.bf16.msra.mxu0 %v3829
    %4165 = vmatprep.mubr.bf16.mxu0 %v3263
    %4166 = vmatmul.mubr.bf16.gmra.mxu0 %v3262
    %v4167 = vpop.f32.mrf.mxu0
    %v4168 = vadd.f32 %v3406, %v4167
    %v4169 = vpop.f32.mrf.mxu0
    %v4170 = vadd.f32 %v3410, %v4169
    %v4171 = vpop.f32.mrf.mxu0
    %v4172 = vpop.f32.mrf.mxu0
    %4173 = vdwg.mxu0
    %4174 = vmatprep.subr.bf16.mxu0 %v3890
    %4175 = vmatpush1.bf16.msra.mxu0 %v3889
    %4176 = vmatprep.subr.bf16.mxu0 %v3886
    %4177 = vmatpush1.bf16.msra.mxu0 %v3885
    %4178 = vmatprep.subr.bf16.mxu0 %v3882
    %4179 = vmatpush1.bf16.msra.mxu0 %v3881
    %4180 = vmatprep.subr.bf16.mxu0 %v3878
    %4181 = vmatpush1.bf16.msra.mxu0 %v3877
    %4182 = vmatprep.subr.bf16.mxu0 %v3874
    %4183 = vmatpush1.bf16.msra.mxu0 %v3873
    %4184 = vmatprep.subr.bf16.mxu0 %v3870
    %4185 = vmatpush1.bf16.msra.mxu0 %v3869
    %4186 = vmatprep.subr.bf16.mxu0 %v3866
    %4187 = vmatpush1.bf16.msra.mxu0 %v3865
    %4188 = vmatprep.subr.bf16.mxu0 %v3862
    %4189 = vmatpush1.bf16.msra.mxu0 %v3861
    %4190 = vmatprep.subr.bf16.mxu0 %v3922
    %4191 = vmatpush2.bf16.msra.mxu0 %v3921
    %4192 = vmatprep.subr.bf16.mxu0 %v3918
    %4193 = vmatpush2.bf16.msra.mxu0 %v3917
    %4194 = vmatprep.subr.bf16.mxu0 %v3914
    %4195 = vmatpush2.bf16.msra.mxu0 %v3913
    %4196 = vmatprep.subr.bf16.mxu0 %v3910
    %4197 = vmatpush2.bf16.msra.mxu0 %v3909
    %4198 = vmatprep.subr.bf16.mxu0 %v3906
    %4199 = vmatpush2.bf16.msra.mxu0 %v3905
    %4200 = vmatprep.subr.bf16.mxu0 %v3902
    %4201 = vmatpush2.bf16.msra.mxu0 %v3901
    %4202 = vmatprep.subr.bf16.mxu0 %v3898
    %4203 = vmatpush2.bf16.msra.mxu0 %v3897
    %4204 = vmatprep.subr.bf16.mxu0 %v3894
    %4205 = vmatpush2.bf16.msra.mxu0 %v3893
    %4206 = vmatprep.mubr.bf16.mxu0 %v3265
    %4207 = vmatmul.mubr.bf16.gmra.mxu0 %v3264
    %v4208 = vpop.f32.mrf.mxu0
    %v4209 = vadd.f32 %v4168, %v4208
    %v4210 = vpop.f32.mrf.mxu0
    %v4211 = vadd.f32 %v4170, %v4210
    %v4212 = vpop.f32.mrf.mxu0
    %v4213 = vpop.f32.mrf.mxu0
    %4214 = vdwg.mxu0
    %v4215 = vmul.f32 %v4127, 0.2
    %v4216 = vmul.f32 %v4129, 0.2
    %v4217 = vmul.f32 %v4209, 0.2
    %v4218 = vmul.f32 %v4211, 0.2
    %v4219 = vmax.f32 %v4127, %v4215
    %v4220 = vmax.f32 %v4129, %v4216
    %v4221 = vmax.f32 %v4209, %v4217
    %v4222 = vmax.f32 %v4211, %v4218
    %v4223 = vpack.c.bf16 %v4219, %v4219
    %v4224 = vpack.c.bf16 %v4220, %v4220
    %v4225 = vpack.c.bf16 %v4221, %v4221
    %v4226 = vpack.c.bf16 %v4222, %v4222
    %s4227 = scalar_lea.vmem [#allocation7], 4096
    %v4228 = vld [vmem:[%s4227] sm:$0xff]
    %v4229 = vld [vmem:[%s4227 + $0x8] sm:$0xff]
    %v4230 = vld [vmem:[%s4227 + $0x10] sm:$0xff]
    %v4231 = vld [vmem:[%s4227 + $0x18] sm:$0xff]
    %v4232 = vld [vmem:[%s4227 + $0x20] sm:$0xff]
    %v4233 = vld [vmem:[%s4227 + $0x28] sm:$0xff]
    %v4234 = vld [vmem:[%s4227 + $0x30] sm:$0xff]
    %v4235 = vld [vmem:[%s4227 + $0x38] sm:$0xff]
    %v4236 = vld [vmem:[%s4227 + $0x40] sm:$0xff]
    %v4237 = vld [vmem:[%s4227 + $0x48] sm:$0xff]
    %v4238 = vld [vmem:[%s4227 + $0x50] sm:$0xff]
    %v4239 = vld [vmem:[%s4227 + $0x58] sm:$0xff]
    %v4240 = vld [vmem:[%s4227 + $0x60] sm:$0xff]
    %v4241 = vld [vmem:[%s4227 + $0x68] sm:$0xff]
    %v4242 = vld [vmem:[%s4227 + $0x70] sm:$0xff]
    %v4243 = vld [vmem:[%s4227 + $0x78] sm:$0xff]
    %v4244 = vld [vmem:[%s4227 + $0x80] sm:$0xff]
    %v4245 = vld [vmem:[%s4227 + $0x88] sm:$0xff]
    %v4246 = vld [vmem:[%s4227 + $0x90] sm:$0xff]
    %v4247 = vld [vmem:[%s4227 + $0x98] sm:$0xff]
    %v4248 = vld [vmem:[%s4227 + $0xa0] sm:$0xff]
    %v4249 = vld [vmem:[%s4227 + $0xa8] sm:$0xff]
    %v4250 = vld [vmem:[%s4227 + $0xb0] sm:$0xff]
    %v4251 = vld [vmem:[%s4227 + $0xb8] sm:$0xff]
    %v4252 = vld [vmem:[%s4227 + $0xc0] sm:$0xff]
    %v4253 = vld [vmem:[%s4227 + $0xc8] sm:$0xff]
    %v4254 = vld [vmem:[%s4227 + $0xd0] sm:$0xff]
    %v4255 = vld [vmem:[%s4227 + $0xd8] sm:$0xff]
    %v4256 = vld [vmem:[%s4227 + $0xe0] sm:$0xff]
    %v4257 = vld [vmem:[%s4227 + $0xe8] sm:$0xff]
    %v4258 = vld [vmem:[%s4227 + $0xf0] sm:$0xff]
    %v4259 = vld [vmem:[%s4227 + $0xf8] sm:$0xff]
    %v4260 = vld [vmem:[%s4227 + $0x100] sm:$0xff]
    %v4261 = vld [vmem:[%s4227 + $0x108] sm:$0xff]
    %v4262 = vld [vmem:[%s4227 + $0x110] sm:$0xff]
    %v4263 = vld [vmem:[%s4227 + $0x118] sm:$0xff]
    %v4264 = vld [vmem:[%s4227 + $0x120] sm:$0xff]
    %v4265 = vld [vmem:[%s4227 + $0x128] sm:$0xff]
    %v4266 = vld [vmem:[%s4227 + $0x130] sm:$0xff]
    %v4267 = vld [vmem:[%s4227 + $0x138] sm:$0xff]
    %v4268 = vld [vmem:[%s4227 + $0x140] sm:$0xff]
    %v4269 = vld [vmem:[%s4227 + $0x148] sm:$0xff]
    %v4270 = vld [vmem:[%s4227 + $0x150] sm:$0xff]
    %v4271 = vld [vmem:[%s4227 + $0x158] sm:$0xff]
    %v4272 = vld [vmem:[%s4227 + $0x160] sm:$0xff]
    %v4273 = vld [vmem:[%s4227 + $0x168] sm:$0xff]
    %v4274 = vld [vmem:[%s4227 + $0x170] sm:$0xff]
    %v4275 = vld [vmem:[%s4227 + $0x178] sm:$0xff]
    %v4276 = vld [vmem:[%s4227 + $0x180] sm:$0xff]
    %v4277 = vld [vmem:[%s4227 + $0x188] sm:$0xff]
    %v4278 = vld [vmem:[%s4227 + $0x190] sm:$0xff]
    %v4279 = vld [vmem:[%s4227 + $0x198] sm:$0xff]
    %v4280 = vld [vmem:[%s4227 + $0x1a0] sm:$0xff]
    %v4281 = vld [vmem:[%s4227 + $0x1a8] sm:$0xff]
    %v4282 = vld [vmem:[%s4227 + $0x1b0] sm:$0xff]
    %v4283 = vld [vmem:[%s4227 + $0x1b8] sm:$0xff]
    %v4284 = vld [vmem:[%s4227 + $0x1c0] sm:$0xff]
    %v4285 = vld [vmem:[%s4227 + $0x1c8] sm:$0xff]
    %v4286 = vld [vmem:[%s4227 + $0x1d0] sm:$0xff]
    %v4287 = vld [vmem:[%s4227 + $0x1d8] sm:$0xff]
    %v4288 = vld [vmem:[%s4227 + $0x1e0] sm:$0xff]
    %v4289 = vld [vmem:[%s4227 + $0x1e8] sm:$0xff]
    %v4290 = vld [vmem:[%s4227 + $0x1f0] sm:$0xff]
    %v4291 = vld [vmem:[%s4227 + $0x1f8] sm:$0xff]
    %v4292 = vld [vmem:[%s4227 + $0x200] sm:$0xff]
    %v4293 = vld [vmem:[%s4227 + $0x208] sm:$0xff]
    %v4294 = vld [vmem:[%s4227 + $0x210] sm:$0xff]
    %v4295 = vld [vmem:[%s4227 + $0x218] sm:$0xff]
    %v4296 = vld [vmem:[%s4227 + $0x220] sm:$0xff]
    %v4297 = vld [vmem:[%s4227 + $0x228] sm:$0xff]
    %v4298 = vld [vmem:[%s4227 + $0x230] sm:$0xff]
    %v4299 = vld [vmem:[%s4227 + $0x238] sm:$0xff]
    %v4300 = vld [vmem:[%s4227 + $0x240] sm:$0xff]
    %v4301 = vld [vmem:[%s4227 + $0x248] sm:$0xff]
    %v4302 = vld [vmem:[%s4227 + $0x250] sm:$0xff]
    %v4303 = vld [vmem:[%s4227 + $0x258] sm:$0xff]
    %v4304 = vld [vmem:[%s4227 + $0x260] sm:$0xff]
    %v4305 = vld [vmem:[%s4227 + $0x268] sm:$0xff]
    %v4306 = vld [vmem:[%s4227 + $0x270] sm:$0xff]
    %v4307 = vld [vmem:[%s4227 + $0x278] sm:$0xff]
    %v4308 = vld [vmem:[%s4227 + $0x280] sm:$0xff]
    %v4309 = vld [vmem:[%s4227 + $0x288] sm:$0xff]
    %v4310 = vld [vmem:[%s4227 + $0x290] sm:$0xff]
    %v4311 = vld [vmem:[%s4227 + $0x298] sm:$0xff]
    %v4312 = vld [vmem:[%s4227 + $0x2a0] sm:$0xff]
    %v4313 = vld [vmem:[%s4227 + $0x2a8] sm:$0xff]
    %v4314 = vld [vmem:[%s4227 + $0x2b0] sm:$0xff]
    %v4315 = vld [vmem:[%s4227 + $0x2b8] sm:$0xff]
    %v4316 = vld [vmem:[%s4227 + $0x2c0] sm:$0xff]
    %v4317 = vld [vmem:[%s4227 + $0x2c8] sm:$0xff]
    %v4318 = vld [vmem:[%s4227 + $0x2d0] sm:$0xff]
    %v4319 = vld [vmem:[%s4227 + $0x2d8] sm:$0xff]
    %v4320 = vld [vmem:[%s4227 + $0x2e0] sm:$0xff]
    %v4321 = vld [vmem:[%s4227 + $0x2e8] sm:$0xff]
    %v4322 = vld [vmem:[%s4227 + $0x2f0] sm:$0xff]
    %v4323 = vld [vmem:[%s4227 + $0x2f8] sm:$0xff]
    %v4324 = vld [vmem:[%s4227 + $0x300] sm:$0xff]
    %v4325 = vld [vmem:[%s4227 + $0x308] sm:$0xff]
    %v4326 = vld [vmem:[%s4227 + $0x310] sm:$0xff]
    %v4327 = vld [vmem:[%s4227 + $0x318] sm:$0xff]
    %v4328 = vld [vmem:[%s4227 + $0x320] sm:$0xff]
    %v4329 = vld [vmem:[%s4227 + $0x328] sm:$0xff]
    %v4330 = vld [vmem:[%s4227 + $0x330] sm:$0xff]
    %v4331 = vld [vmem:[%s4227 + $0x338] sm:$0xff]
    %v4332 = vld [vmem:[%s4227 + $0x340] sm:$0xff]
    %v4333 = vld [vmem:[%s4227 + $0x348] sm:$0xff]
    %v4334 = vld [vmem:[%s4227 + $0x350] sm:$0xff]
    %v4335 = vld [vmem:[%s4227 + $0x358] sm:$0xff]
    %v4336 = vld [vmem:[%s4227 + $0x360] sm:$0xff]
    %v4337 = vld [vmem:[%s4227 + $0x368] sm:$0xff]
    %v4338 = vld [vmem:[%s4227 + $0x370] sm:$0xff]
    %v4339 = vld [vmem:[%s4227 + $0x378] sm:$0xff]
    %v4340 = vld [vmem:[%s4227 + $0x380] sm:$0xff]
    %v4341 = vld [vmem:[%s4227 + $0x388] sm:$0xff]
    %v4342 = vld [vmem:[%s4227 + $0x390] sm:$0xff]
    %v4343 = vld [vmem:[%s4227 + $0x398] sm:$0xff]
    %v4344 = vld [vmem:[%s4227 + $0x3a0] sm:$0xff]
    %v4345 = vld [vmem:[%s4227 + $0x3a8] sm:$0xff]
    %v4346 = vld [vmem:[%s4227 + $0x3b0] sm:$0xff]
    %v4347 = vld [vmem:[%s4227 + $0x3b8] sm:$0xff]
    %v4348 = vld [vmem:[%s4227 + $0x3c0] sm:$0xff]
    %v4349 = vld [vmem:[%s4227 + $0x3c8] sm:$0xff]
    %v4350 = vld [vmem:[%s4227 + $0x3d0] sm:$0xff]
    %v4351 = vld [vmem:[%s4227 + $0x3d8] sm:$0xff]
    %v4352 = vld [vmem:[%s4227 + $0x3e0] sm:$0xff]
    %v4353 = vld [vmem:[%s4227 + $0x3e8] sm:$0xff]
    %v4354 = vld [vmem:[%s4227 + $0x3f0] sm:$0xff]
    %v4355 = vld [vmem:[%s4227 + $0x3f8] sm:$0xff]
    %v4356 = vlaneseq
    %v4357 = vshrl.u32 %v4356, 7
    %v4358 = vsub.s32 5, %v4357
    %v4359 = vrot.slane %v77, %v4358
    %v4360 = vlaneseq
    %v4361 = vshrl.u32 %v4360, 7
    %v4362 = vsub.s32 5, %v4361
    %v4363 = vrot.slane %v78, %v4362
    %v4364 = vlaneseq
    %v4365 = vshrl.u32 %v4364, 7
    %v4366 = vsub.s32 5, %v4365
    %v4367 = vrot.slane %v79, %v4366
    %v4368 = vlaneseq
    %v4369 = vshrl.u32 %v4368, 7
    %v4370 = vsub.s32 5, %v4369
    %v4371 = vrot.slane %v80, %v4370
    %v4500 = vunpack.c.l.b16 %v4228
    %v4501 = vunpack.c.h.b16 %v4228
    %v4502 = vunpack.c.l.b16 %v4229
    %v4503 = vunpack.c.h.b16 %v4229
    %v4504 = vunpack.c.l.b16 %v4230
    %v4505 = vunpack.c.h.b16 %v4230
    %v4506 = vunpack.c.l.b16 %v4231
    %v4507 = vunpack.c.h.b16 %v4231
    %v4508 = vunpack.c.l.b16 %v4232
    %v4509 = vunpack.c.h.b16 %v4232
    %v4510 = vunpack.c.l.b16 %v4233
    %v4511 = vunpack.c.h.b16 %v4233
    %v4512 = vunpack.c.l.b16 %v4234
    %v4513 = vunpack.c.h.b16 %v4234
    %v4514 = vunpack.c.l.b16 %v4235
    %v4515 = vunpack.c.h.b16 %v4235
    %v4516 = vunpack.c.l.b16 %v4236
    %v4517 = vunpack.c.h.b16 %v4236
    %v4518 = vunpack.c.l.b16 %v4237
    %v4519 = vunpack.c.h.b16 %v4237
    %v4520 = vunpack.c.l.b16 %v4238
    %v4521 = vunpack.c.h.b16 %v4238
    %v4522 = vunpack.c.l.b16 %v4239
    %v4523 = vunpack.c.h.b16 %v4239
    %v4524 = vunpack.c.l.b16 %v4240
    %v4525 = vunpack.c.h.b16 %v4240
    %v4526 = vunpack.c.l.b16 %v4241
    %v4527 = vunpack.c.h.b16 %v4241
    %v4528 = vunpack.c.l.b16 %v4242
    %v4529 = vunpack.c.h.b16 %v4242
    %v4530 = vunpack.c.l.b16 %v4243
    %v4531 = vunpack.c.h.b16 %v4243
    %v4532 = vunpack.c.l.b16 %v4244
    %v4533 = vunpack.c.h.b16 %v4244
    %v4534 = vunpack.c.l.b16 %v4245
    %v4535 = vunpack.c.h.b16 %v4245
    %v4536 = vunpack.c.l.b16 %v4246
    %v4537 = vunpack.c.h.b16 %v4246
    %v4538 = vunpack.c.l.b16 %v4247
    %v4539 = vunpack.c.h.b16 %v4247
    %v4540 = vunpack.c.l.b16 %v4248
    %v4541 = vunpack.c.h.b16 %v4248
    %v4542 = vunpack.c.l.b16 %v4249
    %v4543 = vunpack.c.h.b16 %v4249
    %v4544 = vunpack.c.l.b16 %v4250
    %v4545 = vunpack.c.h.b16 %v4250
    %v4546 = vunpack.c.l.b16 %v4251
    %v4547 = vunpack.c.h.b16 %v4251
    %v4548 = vunpack.c.l.b16 %v4252
    %v4549 = vunpack.c.h.b16 %v4252
    %v4550 = vunpack.c.l.b16 %v4253
    %v4551 = vunpack.c.h.b16 %v4253
    %v4552 = vunpack.c.l.b16 %v4254
    %v4553 = vunpack.c.h.b16 %v4254
    %v4554 = vunpack.c.l.b16 %v4255
    %v4555 = vunpack.c.h.b16 %v4255
    %v4556 = vunpack.c.l.b16 %v4256
    %v4557 = vunpack.c.h.b16 %v4256
    %v4558 = vunpack.c.l.b16 %v4257
    %v4559 = vunpack.c.h.b16 %v4257
    %v4560 = vunpack.c.l.b16 %v4258
    %v4561 = vunpack.c.h.b16 %v4258
    %v4562 = vunpack.c.l.b16 %v4259
    %v4563 = vunpack.c.h.b16 %v4259
    %v4564 = vunpack.c.l.b16 %v4260
    %v4565 = vunpack.c.h.b16 %v4260
    %v4566 = vunpack.c.l.b16 %v4261
    %v4567 = vunpack.c.h.b16 %v4261
    %v4568 = vunpack.c.l.b16 %v4262
    %v4569 = vunpack.c.h.b16 %v4262
    %v4570 = vunpack.c.l.b16 %v4263
    %v4571 = vunpack.c.h.b16 %v4263
    %v4572 = vunpack.c.l.b16 %v4264
    %v4573 = vunpack.c.h.b16 %v4264
    %v4574 = vunpack.c.l.b16 %v4265
    %v4575 = vunpack.c.h.b16 %v4265
    %v4576 = vunpack.c.l.b16 %v4266
    %v4577 = vunpack.c.h.b16 %v4266
    %v4578 = vunpack.c.l.b16 %v4267
    %v4579 = vunpack.c.h.b16 %v4267
    %v4580 = vunpack.c.l.b16 %v4268
    %v4581 = vunpack.c.h.b16 %v4268
    %v4582 = vunpack.c.l.b16 %v4269
    %v4583 = vunpack.c.h.b16 %v4269
    %v4584 = vunpack.c.l.b16 %v4270
    %v4585 = vunpack.c.h.b16 %v4270
    %v4586 = vunpack.c.l.b16 %v4271
    %v4587 = vunpack.c.h.b16 %v4271
    %v4588 = vunpack.c.l.b16 %v4272
    %v4589 = vunpack.c.h.b16 %v4272
    %v4590 = vunpack.c.l.b16 %v4273
    %v4591 = vunpack.c.h.b16 %v4273
    %v4592 = vunpack.c.l.b16 %v4274
    %v4593 = vunpack.c.h.b16 %v4274
    %v4594 = vunpack.c.l.b16 %v4275
    %v4595 = vunpack.c.h.b16 %v4275
    %v4596 = vunpack.c.l.b16 %v4276
    %v4597 = vunpack.c.h.b16 %v4276
    %v4598 = vunpack.c.l.b16 %v4277
    %v4599 = vunpack.c.h.b16 %v4277
    %v4600 = vunpack.c.l.b16 %v4278
    %v4601 = vunpack.c.h.b16 %v4278
    %v4602 = vunpack.c.l.b16 %v4279
    %v4603 = vunpack.c.h.b16 %v4279
    %v4604 = vunpack.c.l.b16 %v4280
    %v4605 = vunpack.c.h.b16 %v4280
    %v4606 = vunpack.c.l.b16 %v4281
    %v4607 = vunpack.c.h.b16 %v4281
    %v4608 = vunpack.c.l.b16 %v4282
    %v4609 = vunpack.c.h.b16 %v4282
    %v4610 = vunpack.c.l.b16 %v4283
    %v4611 = vunpack.c.h.b16 %v4283
    %v4612 = vunpack.c.l.b16 %v4284
    %v4613 = vunpack.c.h.b16 %v4284
    %v4614 = vunpack.c.l.b16 %v4285
    %v4615 = vunpack.c.h.b16 %v4285
    %v4616 = vunpack.c.l.b16 %v4286
    %v4617 = vunpack.c.h.b16 %v4286
    %v4618 = vunpack.c.l.b16 %v4287
    %v4619 = vunpack.c.h.b16 %v4287
    %v4620 = vunpack.c.l.b16 %v4288
    %v4621 = vunpack.c.h.b16 %v4288
    %v4622 = vunpack.c.l.b16 %v4289
    %v4623 = vunpack.c.h.b16 %v4289
    %v4624 = vunpack.c.l.b16 %v4290
    %v4625 = vunpack.c.h.b16 %v4290
    %v4626 = vunpack.c.l.b16 %v4291
    %v4627 = vunpack.c.h.b16 %v4291
    %v4628 = vunpack.c.l.b16 %v4292
    %v4629 = vunpack.c.h.b16 %v4292
    %v4630 = vunpack.c.l.b16 %v4293
    %v4631 = vunpack.c.h.b16 %v4293
    %v4632 = vunpack.c.l.b16 %v4294
    %v4633 = vunpack.c.h.b16 %v4294
    %v4634 = vunpack.c.l.b16 %v4295
    %v4635 = vunpack.c.h.b16 %v4295
    %v4636 = vunpack.c.l.b16 %v4296
    %v4637 = vunpack.c.h.b16 %v4296
    %v4638 = vunpack.c.l.b16 %v4297
    %v4639 = vunpack.c.h.b16 %v4297
    %v4640 = vunpack.c.l.b16 %v4298
    %v4641 = vunpack.c.h.b16 %v4298
    %v4642 = vunpack.c.l.b16 %v4299
    %v4643 = vunpack.c.h.b16 %v4299
    %v4644 = vunpack.c.l.b16 %v4300
    %v4645 = vunpack.c.h.b16 %v4300
    %v4646 = vunpack.c.l.b16 %v4301
    %v4647 = vunpack.c.h.b16 %v4301
    %v4648 = vunpack.c.l.b16 %v4302
    %v4649 = vunpack.c.h.b16 %v4302
    %v4650 = vunpack.c.l.b16 %v4303
    %v4651 = vunpack.c.h.b16 %v4303
    %v4652 = vunpack.c.l.b16 %v4304
    %v4653 = vunpack.c.h.b16 %v4304
    %v4654 = vunpack.c.l.b16 %v4305
    %v4655 = vunpack.c.h.b16 %v4305
    %v4656 = vunpack.c.l.b16 %v4306
    %v4657 = vunpack.c.h.b16 %v4306
    %v4658 = vunpack.c.l.b16 %v4307
    %v4659 = vunpack.c.h.b16 %v4307
    %v4660 = vunpack.c.l.b16 %v4308
    %v4661 = vunpack.c.h.b16 %v4308
    %v4662 = vunpack.c.l.b16 %v4309
    %v4663 = vunpack.c.h.b16 %v4309
    %v4664 = vunpack.c.l.b16 %v4310
    %v4665 = vunpack.c.h.b16 %v4310
    %v4666 = vunpack.c.l.b16 %v4311
    %v4667 = vunpack.c.h.b16 %v4311
    %v4668 = vunpack.c.l.b16 %v4312
    %v4669 = vunpack.c.h.b16 %v4312
    %v4670 = vunpack.c.l.b16 %v4313
    %v4671 = vunpack.c.h.b16 %v4313
    %v4672 = vunpack.c.l.b16 %v4314
    %v4673 = vunpack.c.h.b16 %v4314
    %v4674 = vunpack.c.l.b16 %v4315
    %v4675 = vunpack.c.h.b16 %v4315
    %v4676 = vunpack.c.l.b16 %v4316
    %v4677 = vunpack.c.h.b16 %v4316
    %v4678 = vunpack.c.l.b16 %v4317
    %v4679 = vunpack.c.h.b16 %v4317
    %v4680 = vunpack.c.l.b16 %v4318
    %v4681 = vunpack.c.h.b16 %v4318
    %v4682 = vunpack.c.l.b16 %v4319
    %v4683 = vunpack.c.h.b16 %v4319
    %v4684 = vunpack.c.l.b16 %v4320
    %v4685 = vunpack.c.h.b16 %v4320
    %v4686 = vunpack.c.l.b16 %v4321
    %v4687 = vunpack.c.h.b16 %v4321
    %v4688 = vunpack.c.l.b16 %v4322
    %v4689 = vunpack.c.h.b16 %v4322
    %v4690 = vunpack.c.l.b16 %v4323
    %v4691 = vunpack.c.h.b16 %v4323
    %v4692 = vunpack.c.l.b16 %v4324
    %v4693 = vunpack.c.h.b16 %v4324
    %v4694 = vunpack.c.l.b16 %v4325
    %v4695 = vunpack.c.h.b16 %v4325
    %v4696 = vunpack.c.l.b16 %v4326
    %v4697 = vunpack.c.h.b16 %v4326
    %v4698 = vunpack.c.l.b16 %v4327
    %v4699 = vunpack.c.h.b16 %v4327
    %v4700 = vunpack.c.l.b16 %v4328
    %v4701 = vunpack.c.h.b16 %v4328
    %v4702 = vunpack.c.l.b16 %v4329
    %v4703 = vunpack.c.h.b16 %v4329
    %v4704 = vunpack.c.l.b16 %v4330
    %v4705 = vunpack.c.h.b16 %v4330
    %v4706 = vunpack.c.l.b16 %v4331
    %v4707 = vunpack.c.h.b16 %v4331
    %v4708 = vunpack.c.l.b16 %v4332
    %v4709 = vunpack.c.h.b16 %v4332
    %v4710 = vunpack.c.l.b16 %v4333
    %v4711 = vunpack.c.h.b16 %v4333
    %v4712 = vunpack.c.l.b16 %v4334
    %v4713 = vunpack.c.h.b16 %v4334
    %v4714 = vunpack.c.l.b16 %v4335
    %v4715 = vunpack.c.h.b16 %v4335
    %v4716 = vunpack.c.l.b16 %v4336
    %v4717 = vunpack.c.h.b16 %v4336
    %v4718 = vunpack.c.l.b16 %v4337
    %v4719 = vunpack.c.h.b16 %v4337
    %v4720 = vunpack.c.l.b16 %v4338
    %v4721 = vunpack.c.h.b16 %v4338
    %v4722 = vunpack.c.l.b16 %v4339
    %v4723 = vunpack.c.h.b16 %v4339
    %v4724 = vunpack.c.l.b16 %v4340
    %v4725 = vunpack.c.h.b16 %v4340
    %v4726 = vunpack.c.l.b16 %v4341
    %v4727 = vunpack.c.h.b16 %v4341
    %v4728 = vunpack.c.l.b16 %v4342
    %v4729 = vunpack.c.h.b16 %v4342
    %v4730 = vunpack.c.l.b16 %v4343
    %v4731 = vunpack.c.h.b16 %v4343
    %v4732 = vunpack.c.l.b16 %v4344
    %v4733 = vunpack.c.h.b16 %v4344
    %v4734 = vunpack.c.l.b16 %v4345
    %v4735 = vunpack.c.h.b16 %v4345
    %v4736 = vunpack.c.l.b16 %v4346
    %v4737 = vunpack.c.h.b16 %v4346
    %v4738 = vunpack.c.l.b16 %v4347
    %v4739 = vunpack.c.h.b16 %v4347
    %v4740 = vunpack.c.l.b16 %v4348
    %v4741 = vunpack.c.h.b16 %v4348
    %v4742 = vunpack.c.l.b16 %v4349
    %v4743 = vunpack.c.h.b16 %v4349
    %v4744 = vunpack.c.l.b16 %v4350
    %v4745 = vunpack.c.h.b16 %v4350
    %v4746 = vunpack.c.l.b16 %v4351
    %v4747 = vunpack.c.h.b16 %v4351
    %v4748 = vunpack.c.l.b16 %v4352
    %v4749 = vunpack.c.h.b16 %v4352
    %v4750 = vunpack.c.l.b16 %v4353
    %v4751 = vunpack.c.h.b16 %v4353
    %v4752 = vunpack.c.l.b16 %v4354
    %v4753 = vunpack.c.h.b16 %v4354
    %v4754 = vunpack.c.l.b16 %v4355
    %v4755 = vunpack.c.h.b16 %v4355
    %v4756 = vpack.c.b16 %v4504, %v4500
    %v4757 = vpack.c.b16 %v4505, %v4501
    %v4758 = vpack.c.b16 %v4506, %v4502
    %v4759 = vpack.c.b16 %v4507, %v4503
    %v4760 = vpack.c.b16 %v4512, %v4508
    %v4761 = vpack.c.b16 %v4513, %v4509
    %v4762 = vpack.c.b16 %v4514, %v4510
    %v4763 = vpack.c.b16 %v4515, %v4511
    %v4764 = vpack.c.b16 %v4520, %v4516
    %v4765 = vpack.c.b16 %v4521, %v4517
    %v4766 = vpack.c.b16 %v4522, %v4518
    %v4767 = vpack.c.b16 %v4523, %v4519
    %v4768 = vpack.c.b16 %v4528, %v4524
    %v4769 = vpack.c.b16 %v4529, %v4525
    %v4770 = vpack.c.b16 %v4530, %v4526
    %v4771 = vpack.c.b16 %v4531, %v4527
    %v4772 = vpack.c.b16 %v4536, %v4532
    %v4773 = vpack.c.b16 %v4537, %v4533
    %v4774 = vpack.c.b16 %v4538, %v4534
    %v4775 = vpack.c.b16 %v4539, %v4535
    %v4776 = vpack.c.b16 %v4544, %v4540
    %v4777 = vpack.c.b16 %v4545, %v4541
    %v4778 = vpack.c.b16 %v4546, %v4542
    %v4779 = vpack.c.b16 %v4547, %v4543
    %v4780 = vpack.c.b16 %v4552, %v4548
    %v4781 = vpack.c.b16 %v4553, %v4549
    %v4782 = vpack.c.b16 %v4554, %v4550
    %v4783 = vpack.c.b16 %v4555, %v4551
    %v4784 = vpack.c.b16 %v4560, %v4556
    %v4785 = vpack.c.b16 %v4561, %v4557
    %v4786 = vpack.c.b16 %v4562, %v4558
    %v4787 = vpack.c.b16 %v4563, %v4559
    %v4788 = vpack.c.b16 %v4568, %v4564
    %v4789 = vpack.c.b16 %v4569, %v4565
    %v4790 = vpack.c.b16 %v4570, %v4566
    %v4791 = vpack.c.b16 %v4571, %v4567
    %v4792 = vpack.c.b16 %v4576, %v4572
    %v4793 = vpack.c.b16 %v4577, %v4573
    %v4794 = vpack.c.b16 %v4578, %v4574
    %v4795 = vpack.c.b16 %v4579, %v4575
    %v4796 = vpack.c.b16 %v4584, %v4580
    %v4797 = vpack.c.b16 %v4585, %v4581
    %v4798 = vpack.c.b16 %v4586, %v4582
    %v4799 = vpack.c.b16 %v4587, %v4583
    %v4800 = vpack.c.b16 %v4592, %v4588
    %v4801 = vpack.c.b16 %v4593, %v4589
    %v4802 = vpack.c.b16 %v4594, %v4590
    %v4803 = vpack.c.b16 %v4595, %v4591
    %v4804 = vpack.c.b16 %v4600, %v4596
    %v4805 = vpack.c.b16 %v4601, %v4597
    %v4806 = vpack.c.b16 %v4602, %v4598
    %v4807 = vpack.c.b16 %v4603, %v4599
    %v4808 = vpack.c.b16 %v4608, %v4604
    %v4809 = vpack.c.b16 %v4609, %v4605
    %v4810 = vpack.c.b16 %v4610, %v4606
    %v4811 = vpack.c.b16 %v4611, %v4607
    %v4812 = vpack.c.b16 %v4616, %v4612
    %v4813 = vpack.c.b16 %v4617, %v4613
    %v4814 = vpack.c.b16 %v4618, %v4614
    %v4815 = vpack.c.b16 %v4619, %v4615
    %v4816 = vpack.c.b16 %v4624, %v4620
    %v4817 = vpack.c.b16 %v4625, %v4621
    %v4818 = vpack.c.b16 %v4626, %v4622
    %v4819 = vpack.c.b16 %v4627, %v4623
    %v4820 = vpack.c.b16 %v4632, %v4628
    %v4821 = vpack.c.b16 %v4633, %v4629
    %v4822 = vpack.c.b16 %v4634, %v4630
    %v4823 = vpack.c.b16 %v4635, %v4631
    %v4824 = vpack.c.b16 %v4640, %v4636
    %v4825 = vpack.c.b16 %v4641, %v4637
    %v4826 = vpack.c.b16 %v4642, %v4638
    %v4827 = vpack.c.b16 %v4643, %v4639
    %v4828 = vpack.c.b16 %v4648, %v4644
    %v4829 = vpack.c.b16 %v4649, %v4645
    %v4830 = vpack.c.b16 %v4650, %v4646
    %v4831 = vpack.c.b16 %v4651, %v4647
    %v4832 = vpack.c.b16 %v4656, %v4652
    %v4833 = vpack.c.b16 %v4657, %v4653
    %v4834 = vpack.c.b16 %v4658, %v4654
    %v4835 = vpack.c.b16 %v4659, %v4655
    %v4836 = vpack.c.b16 %v4664, %v4660
    %v4837 = vpack.c.b16 %v4665, %v4661
    %v4838 = vpack.c.b16 %v4666, %v4662
    %v4839 = vpack.c.b16 %v4667, %v4663
    %v4840 = vpack.c.b16 %v4672, %v4668
    %v4841 = vpack.c.b16 %v4673, %v4669
    %v4842 = vpack.c.b16 %v4674, %v4670
    %v4843 = vpack.c.b16 %v4675, %v4671
    %v4844 = vpack.c.b16 %v4680, %v4676
    %v4845 = vpack.c.b16 %v4681, %v4677
    %v4846 = vpack.c.b16 %v4682, %v4678
    %v4847 = vpack.c.b16 %v4683, %v4679
    %v4848 = vpack.c.b16 %v4688, %v4684
    %v4849 = vpack.c.b16 %v4689, %v4685
    %v4850 = vpack.c.b16 %v4690, %v4686
    %v4851 = vpack.c.b16 %v4691, %v4687
    %v4852 = vpack.c.b16 %v4696, %v4692
    %v4853 = vpack.c.b16 %v4697, %v4693
    %v4854 = vpack.c.b16 %v4698, %v4694
    %v4855 = vpack.c.b16 %v4699, %v4695
    %v4856 = vpack.c.b16 %v4704, %v4700
    %v4857 = vpack.c.b16 %v4705, %v4701
    %v4858 = vpack.c.b16 %v4706, %v4702
    %v4859 = vpack.c.b16 %v4707, %v4703
    %v4860 = vpack.c.b16 %v4712, %v4708
    %v4861 = vpack.c.b16 %v4713, %v4709
    %v4862 = vpack.c.b16 %v4714, %v4710
    %v4863 = vpack.c.b16 %v4715, %v4711
    %v4864 = vpack.c.b16 %v4720, %v4716
    %v4865 = vpack.c.b16 %v4721, %v4717
    %v4866 = vpack.c.b16 %v4722, %v4718
    %v4867 = vpack.c.b16 %v4723, %v4719
    %v4868 = vpack.c.b16 %v4728, %v4724
    %v4869 = vpack.c.b16 %v4729, %v4725
    %v4870 = vpack.c.b16 %v4730, %v4726
    %v4871 = vpack.c.b16 %v4731, %v4727
    %v4872 = vpack.c.b16 %v4736, %v4732
    %v4873 = vpack.c.b16 %v4737, %v4733
    %v4874 = vpack.c.b16 %v4738, %v4734
    %v4875 = vpack.c.b16 %v4739, %v4735
    %v4876 = vpack.c.b16 %v4744, %v4740
    %v4877 = vpack.c.b16 %v4745, %v4741
    %v4878 = vpack.c.b16 %v4746, %v4742
    %v4879 = vpack.c.b16 %v4747, %v4743
    %v4880 = vpack.c.b16 %v4752, %v4748
    %v4881 = vpack.c.b16 %v4753, %v4749
    %v4882 = vpack.c.b16 %v4754, %v4750
    %v4883 = vpack.c.b16 %v4755, %v4751
    %5012 = vmatprep.subr.bf16.mxu0 %v4785
    %5013 = vmatpush1.bf16.msra.mxu0 %v4784
    %5014 = vmatprep.subr.bf16.mxu0 %v4781
    %5015 = vmatpush1.bf16.msra.mxu0 %v4780
    %5016 = vmatprep.subr.bf16.mxu0 %v4777
    %5017 = vmatpush1.bf16.msra.mxu0 %v4776
    %5018 = vmatprep.subr.bf16.mxu0 %v4773
    %5019 = vmatpush1.bf16.msra.mxu0 %v4772
    %5020 = vmatprep.subr.bf16.mxu0 %v4769
    %5021 = vmatpush1.bf16.msra.mxu0 %v4768
    %5022 = vmatprep.subr.bf16.mxu0 %v4765
    %5023 = vmatpush1.bf16.msra.mxu0 %v4764
    %5024 = vmatprep.subr.bf16.mxu0 %v4761
    %5025 = vmatpush1.bf16.msra.mxu0 %v4760
    %5026 = vmatprep.subr.bf16.mxu0 %v4757
    %5027 = vmatpush1.bf16.msra.mxu0 %v4756
    %5028 = vmatprep.subr.bf16.mxu0 %v4817
    %5029 = vmatpush2.bf16.msra.mxu0 %v4816
    %5030 = vmatprep.subr.bf16.mxu0 %v4813
    %5031 = vmatpush2.bf16.msra.mxu0 %v4812
    %5032 = vmatprep.subr.bf16.mxu0 %v4809
    %5033 = vmatpush2.bf16.msra.mxu0 %v4808
    %5034 = vmatprep.subr.bf16.mxu0 %v4805
    %5035 = vmatpush2.bf16.msra.mxu0 %v4804
    %5036 = vmatprep.subr.bf16.mxu0 %v4801
    %5037 = vmatpush2.bf16.msra.mxu0 %v4800
    %5038 = vmatprep.subr.bf16.mxu0 %v4797
    %5039 = vmatpush2.bf16.msra.mxu0 %v4796
    %5040 = vmatprep.subr.bf16.mxu0 %v4793
    %5041 = vmatpush2.bf16.msra.mxu0 %v4792
    %5042 = vmatprep.subr.bf16.mxu0 %v4789
    %5043 = vmatpush2.bf16.msra.mxu0 %v4788
    %5044 = vmatprep.mubr.bf16.mxu0 %v4224
    %5045 = vmatmul.mubr.bf16.gmra.mxu0 %v4223
    %v5046 = vpop.f32.mrf.mxu0
    %v5047 = vadd.f32 %v4359, %v5046
    %v5048 = vpop.f32.mrf.mxu0
    %v5049 = vadd.f32 %v4363, %v5048
    %v5050 = vpop.f32.mrf.mxu0
    %v5051 = vpop.f32.mrf.mxu0
    %5052 = vdwg.mxu0
    %5053 = vmatprep.subr.bf16.mxu0 %v4849
    %5054 = vmatpush1.bf16.msra.mxu0 %v4848
    %5055 = vmatprep.subr.bf16.mxu0 %v4845
    %5056 = vmatpush1.bf16.msra.mxu0 %v4844
    %5057 = vmatprep.subr.bf16.mxu0 %v4841
    %5058 = vmatpush1.bf16.msra.mxu0 %v4840
    %5059 = vmatprep.subr.bf16.mxu0 %v4837
    %5060 = vmatpush1.bf16.msra.mxu0 %v4836
    %5061 = vmatprep.subr.bf16.mxu0 %v4833
    %5062 = vmatpush1.bf16.msra.mxu0 %v4832
    %5063 = vmatprep.subr.bf16.mxu0 %v4829
    %5064 = vmatpush1.bf16.msra.mxu0 %v4828
    %5065 = vmatprep.subr.bf16.mxu0 %v4825
    %5066 = vmatpush1.bf16.msra.mxu0 %v4824
    %5067 = vmatprep.subr.bf16.mxu0 %v4821
    %5068 = vmatpush1.bf16.msra.mxu0 %v4820
    %5069 = vmatprep.subr.bf16.mxu0 %v4881
    %5070 = vmatpush2.bf16.msra.mxu0 %v4880
    %5071 = vmatprep.subr.bf16.mxu0 %v4877
    %5072 = vmatpush2.bf16.msra.mxu0 %v4876
    %5073 = vmatprep.subr.bf16.mxu0 %v4873
    %5074 = vmatpush2.bf16.msra.mxu0 %v4872
    %5075 = vmatprep.subr.bf16.mxu0 %v4869
    %5076 = vmatpush2.bf16.msra.mxu0 %v4868
    %5077 = vmatprep.subr.bf16.mxu0 %v4865
    %5078 = vmatpush2.bf16.msra.mxu0 %v4864
    %5079 = vmatprep.subr.bf16.mxu0 %v4861
    %5080 = vmatpush2.bf16.msra.mxu0 %v4860
    %5081 = vmatprep.subr.bf16.mxu0 %v4857
    %5082 = vmatpush2.bf16.msra.mxu0 %v4856
    %5083 = vmatprep.subr.bf16.mxu0 %v4853
    %5084 = vmatpush2.bf16.msra.mxu0 %v4852
    %5085 = vmatprep.mubr.bf16.mxu0 %v4226
    %5086 = vmatmul.mubr.bf16.gmra.mxu0 %v4225
    %v5087 = vpop.f32.mrf.mxu0
    %v5088 = vadd.f32 %v5047, %v5087
    %v5089 = vpop.f32.mrf.mxu0
    %v5090 = vadd.f32 %v5049, %v5089
    %v5091 = vpop.f32.mrf.mxu0
    %v5092 = vpop.f32.mrf.mxu0
    %5093 = vdwg.mxu0
    %5094 = vmatprep.subr.bf16.mxu0 %v4787
    %5095 = vmatpush1.bf16.msra.mxu0 %v4786
    %5096 = vmatprep.subr.bf16.mxu0 %v4783
    %5097 = vmatpush1.bf16.msra.mxu0 %v4782
    %5098 = vmatprep.subr.bf16.mxu0 %v4779
    %5099 = vmatpush1.bf16.msra.mxu0 %v4778
    %5100 = vmatprep.subr.bf16.mxu0 %v4775
    %5101 = vmatpush1.bf16.msra.mxu0 %v4774
    %5102 = vmatprep.subr.bf16.mxu0 %v4771
    %5103 = vmatpush1.bf16.msra.mxu0 %v4770
    %5104 = vmatprep.subr.bf16.mxu0 %v4767
    %5105 = vmatpush1.bf16.msra.mxu0 %v4766
    %5106 = vmatprep.subr.bf16.mxu0 %v4763
    %5107 = vmatpush1.bf16.msra.mxu0 %v4762
    %5108 = vmatprep.subr.bf16.mxu0 %v4759
    %5109 = vmatpush1.bf16.msra.mxu0 %v4758
    %5110 = vmatprep.subr.bf16.mxu0 %v4819
    %5111 = vmatpush2.bf16.msra.mxu0 %v4818
    %5112 = vmatprep.subr.bf16.mxu0 %v4815
    %5113 = vmatpush2.bf16.msra.mxu0 %v4814
    %5114 = vmatprep.subr.bf16.mxu0 %v4811
    %5115 = vmatpush2.bf16.msra.mxu0 %v4810
    %5116 = vmatprep.subr.bf16.mxu0 %v4807
    %5117 = vmatpush2.bf16.msra.mxu0 %v4806
    %5118 = vmatprep.subr.bf16.mxu0 %v4803
    %5119 = vmatpush2.bf16.msra.mxu0 %v4802
    %5120 = vmatprep.subr.bf16.mxu0 %v4799
    %5121 = vmatpush2.bf16.msra.mxu0 %v4798
    %5122 = vmatprep.subr.bf16.mxu0 %v4795
    %5123 = vmatpush2.bf16.msra.mxu0 %v4794
    %5124 = vmatprep.subr.bf16.mxu0 %v4791
    %5125 = vmatpush2.bf16.msra.mxu0 %v4790
    %5126 = vmatprep.mubr.bf16.mxu0 %v4224
    %5127 = vmatmul.mubr.bf16.gmra.mxu0 %v4223
    %v5128 = vpop.f32.mrf.mxu0
    %v5129 = vadd.f32 %v4367, %v5128
    %v5130 = vpop.f32.mrf.mxu0
    %v5131 = vadd.f32 %v4371, %v5130
    %v5132 = vpop.f32.mrf.mxu0
    %v5133 = vpop.f32.mrf.mxu0
    %5134 = vdwg.mxu0
    %5135 = vmatprep.subr.bf16.mxu0 %v4851
    %5136 = vmatpush1.bf16.msra.mxu0 %v4850
    %5137 = vmatprep.subr.bf16.mxu0 %v4847
    %5138 = vmatpush1.bf16.msra.mxu0 %v4846
    %5139 = vmatprep.subr.bf16.mxu0 %v4843
    %5140 = vmatpush1.bf16.msra.mxu0 %v4842
    %5141 = vmatprep.subr.bf16.mxu0 %v4839
    %5142 = vmatpush1.bf16.msra.mxu0 %v4838
    %5143 = vmatprep.subr.bf16.mxu0 %v4835
    %5144 = vmatpush1.bf16.msra.mxu0 %v4834
    %5145 = vmatprep.subr.bf16.mxu0 %v4831
    %5146 = vmatpush1.bf16.msra.mxu0 %v4830
    %5147 = vmatprep.subr.bf16.mxu0 %v4827
    %5148 = vmatpush1.bf16.msra.mxu0 %v4826
    %5149 = vmatprep.subr.bf16.mxu0 %v4823
    %5150 = vmatpush1.bf16.msra.mxu0 %v4822
    %5151 = vmatprep.subr.bf16.mxu0 %v4883
    %5152 = vmatpush2.bf16.msra.mxu0 %v4882
    %5153 = vmatprep.subr.bf16.mxu0 %v4879
    %5154 = vmatpush2.bf16.msra.mxu0 %v4878
    %5155 = vmatprep.subr.bf16.mxu0 %v4875
    %5156 = vmatpush2.bf16.msra.mxu0 %v4874
    %5157 = vmatprep.subr.bf16.mxu0 %v4871
    %5158 = vmatpush2.bf16.msra.mxu0 %v4870
    %5159 = vmatprep.subr.bf16.mxu0 %v4867
    %5160 = vmatpush2.bf16.msra.mxu0 %v4866
    %5161 = vmatprep.subr.bf16.mxu0 %v4863
    %5162 = vmatpush2.bf16.msra.mxu0 %v4862
    %5163 = vmatprep.subr.bf16.mxu0 %v4859
    %5164 = vmatpush2.bf16.msra.mxu0 %v4858
    %5165 = vmatprep.subr.bf16.mxu0 %v4855
    %5166 = vmatpush2.bf16.msra.mxu0 %v4854
    %5167 = vmatprep.mubr.bf16.mxu0 %v4226
    %5168 = vmatmul.mubr.bf16.gmra.mxu0 %v4225
    %v5169 = vpop.f32.mrf.mxu0
    %v5170 = vadd.f32 %v5129, %v5169
    %v5171 = vpop.f32.mrf.mxu0
    %v5172 = vadd.f32 %v5131, %v5171
    %v5173 = vpop.f32.mrf.mxu0
    %v5174 = vpop.f32.mrf.mxu0
    %5175 = vdwg.mxu0
    %v5176 = vmul.f32 %v5088, 0.2
    %v5177 = vmul.f32 %v5090, 0.2
    %v5178 = vmul.f32 %v5170, 0.2
    %v5179 = vmul.f32 %v5172, 0.2
    %v5180 = vmax.f32 %v5088, %v5176
    %v5181 = vmax.f32 %v5090, %v5177
    %v5182 = vmax.f32 %v5170, %v5178
    %v5183 = vmax.f32 %v5172, %v5179
    %v5184 = vpack.c.bf16 %v5180, %v5180
    %v5185 = vpack.c.bf16 %v5181, %v5181
    %v5186 = vpack.c.bf16 %v5182, %v5182
    %v5187 = vpack.c.bf16 %v5183, %v5183
    %s5188 = scalar_lea.vmem [#allocation7], 5120
    %v5189 = vld [vmem:[%s5188] sm:$0xff]
    %v5190 = vld [vmem:[%s5188 + $0x8] sm:$0xff]
    %v5191 = vld [vmem:[%s5188 + $0x10] sm:$0xff]
    %v5192 = vld [vmem:[%s5188 + $0x18] sm:$0xff]
    %v5193 = vld [vmem:[%s5188 + $0x20] sm:$0xff]
    %v5194 = vld [vmem:[%s5188 + $0x28] sm:$0xff]
    %v5195 = vld [vmem:[%s5188 + $0x30] sm:$0xff]
    %v5196 = vld [vmem:[%s5188 + $0x38] sm:$0xff]
    %v5197 = vld [vmem:[%s5188 + $0x40] sm:$0xff]
    %v5198 = vld [vmem:[%s5188 + $0x48] sm:$0xff]
    %v5199 = vld [vmem:[%s5188 + $0x50] sm:$0xff]
    %v5200 = vld [vmem:[%s5188 + $0x58] sm:$0xff]
    %v5201 = vld [vmem:[%s5188 + $0x60] sm:$0xff]
    %v5202 = vld [vmem:[%s5188 + $0x68] sm:$0xff]
    %v5203 = vld [vmem:[%s5188 + $0x70] sm:$0xff]
    %v5204 = vld [vmem:[%s5188 + $0x78] sm:$0xff]
    %v5205 = vld [vmem:[%s5188 + $0x80] sm:$0xff]
    %v5206 = vld [vmem:[%s5188 + $0x88] sm:$0xff]
    %v5207 = vld [vmem:[%s5188 + $0x90] sm:$0xff]
    %v5208 = vld [vmem:[%s5188 + $0x98] sm:$0xff]
    %v5209 = vld [vmem:[%s5188 + $0xa0] sm:$0xff]
    %v5210 = vld [vmem:[%s5188 + $0xa8] sm:$0xff]
    %v5211 = vld [vmem:[%s5188 + $0xb0] sm:$0xff]
    %v5212 = vld [vmem:[%s5188 + $0xb8] sm:$0xff]
    %v5213 = vld [vmem:[%s5188 + $0xc0] sm:$0xff]
    %v5214 = vld [vmem:[%s5188 + $0xc8] sm:$0xff]
    %v5215 = vld [vmem:[%s5188 + $0xd0] sm:$0xff]
    %v5216 = vld [vmem:[%s5188 + $0xd8] sm:$0xff]
    %v5217 = vld [vmem:[%s5188 + $0xe0] sm:$0xff]
    %v5218 = vld [vmem:[%s5188 + $0xe8] sm:$0xff]
    %v5219 = vld [vmem:[%s5188 + $0xf0] sm:$0xff]
    %v5220 = vld [vmem:[%s5188 + $0xf8] sm:$0xff]
    %v5221 = vld [vmem:[%s5188 + $0x100] sm:$0xff]
    %v5222 = vld [vmem:[%s5188 + $0x108] sm:$0xff]
    %v5223 = vld [vmem:[%s5188 + $0x110] sm:$0xff]
    %v5224 = vld [vmem:[%s5188 + $0x118] sm:$0xff]
    %v5225 = vld [vmem:[%s5188 + $0x120] sm:$0xff]
    %v5226 = vld [vmem:[%s5188 + $0x128] sm:$0xff]
    %v5227 = vld [vmem:[%s5188 + $0x130] sm:$0xff]
    %v5228 = vld [vmem:[%s5188 + $0x138] sm:$0xff]
    %v5229 = vld [vmem:[%s5188 + $0x140] sm:$0xff]
    %v5230 = vld [vmem:[%s5188 + $0x148] sm:$0xff]
    %v5231 = vld [vmem:[%s5188 + $0x150] sm:$0xff]
    %v5232 = vld [vmem:[%s5188 + $0x158] sm:$0xff]
    %v5233 = vld [vmem:[%s5188 + $0x160] sm:$0xff]
    %v5234 = vld [vmem:[%s5188 + $0x168] sm:$0xff]
    %v5235 = vld [vmem:[%s5188 + $0x170] sm:$0xff]
    %v5236 = vld [vmem:[%s5188 + $0x178] sm:$0xff]
    %v5237 = vld [vmem:[%s5188 + $0x180] sm:$0xff]
    %v5238 = vld [vmem:[%s5188 + $0x188] sm:$0xff]
    %v5239 = vld [vmem:[%s5188 + $0x190] sm:$0xff]
    %v5240 = vld [vmem:[%s5188 + $0x198] sm:$0xff]
    %v5241 = vld [vmem:[%s5188 + $0x1a0] sm:$0xff]
    %v5242 = vld [vmem:[%s5188 + $0x1a8] sm:$0xff]
    %v5243 = vld [vmem:[%s5188 + $0x1b0] sm:$0xff]
    %v5244 = vld [vmem:[%s5188 + $0x1b8] sm:$0xff]
    %v5245 = vld [vmem:[%s5188 + $0x1c0] sm:$0xff]
    %v5246 = vld [vmem:[%s5188 + $0x1c8] sm:$0xff]
    %v5247 = vld [vmem:[%s5188 + $0x1d0] sm:$0xff]
    %v5248 = vld [vmem:[%s5188 + $0x1d8] sm:$0xff]
    %v5249 = vld [vmem:[%s5188 + $0x1e0] sm:$0xff]
    %v5250 = vld [vmem:[%s5188 + $0x1e8] sm:$0xff]
    %v5251 = vld [vmem:[%s5188 + $0x1f0] sm:$0xff]
    %v5252 = vld [vmem:[%s5188 + $0x1f8] sm:$0xff]
    %v5253 = vld [vmem:[%s5188 + $0x200] sm:$0xff]
    %v5254 = vld [vmem:[%s5188 + $0x208] sm:$0xff]
    %v5255 = vld [vmem:[%s5188 + $0x210] sm:$0xff]
    %v5256 = vld [vmem:[%s5188 + $0x218] sm:$0xff]
    %v5257 = vld [vmem:[%s5188 + $0x220] sm:$0xff]
    %v5258 = vld [vmem:[%s5188 + $0x228] sm:$0xff]
    %v5259 = vld [vmem:[%s5188 + $0x230] sm:$0xff]
    %v5260 = vld [vmem:[%s5188 + $0x238] sm:$0xff]
    %v5261 = vld [vmem:[%s5188 + $0x240] sm:$0xff]
    %v5262 = vld [vmem:[%s5188 + $0x248] sm:$0xff]
    %v5263 = vld [vmem:[%s5188 + $0x250] sm:$0xff]
    %v5264 = vld [vmem:[%s5188 + $0x258] sm:$0xff]
    %v5265 = vld [vmem:[%s5188 + $0x260] sm:$0xff]
    %v5266 = vld [vmem:[%s5188 + $0x268] sm:$0xff]
    %v5267 = vld [vmem:[%s5188 + $0x270] sm:$0xff]
    %v5268 = vld [vmem:[%s5188 + $0x278] sm:$0xff]
    %v5269 = vld [vmem:[%s5188 + $0x280] sm:$0xff]
    %v5270 = vld [vmem:[%s5188 + $0x288] sm:$0xff]
    %v5271 = vld [vmem:[%s5188 + $0x290] sm:$0xff]
    %v5272 = vld [vmem:[%s5188 + $0x298] sm:$0xff]
    %v5273 = vld [vmem:[%s5188 + $0x2a0] sm:$0xff]
    %v5274 = vld [vmem:[%s5188 + $0x2a8] sm:$0xff]
    %v5275 = vld [vmem:[%s5188 + $0x2b0] sm:$0xff]
    %v5276 = vld [vmem:[%s5188 + $0x2b8] sm:$0xff]
    %v5277 = vld [vmem:[%s5188 + $0x2c0] sm:$0xff]
    %v5278 = vld [vmem:[%s5188 + $0x2c8] sm:$0xff]
    %v5279 = vld [vmem:[%s5188 + $0x2d0] sm:$0xff]
    %v5280 = vld [vmem:[%s5188 + $0x2d8] sm:$0xff]
    %v5281 = vld [vmem:[%s5188 + $0x2e0] sm:$0xff]
    %v5282 = vld [vmem:[%s5188 + $0x2e8] sm:$0xff]
    %v5283 = vld [vmem:[%s5188 + $0x2f0] sm:$0xff]
    %v5284 = vld [vmem:[%s5188 + $0x2f8] sm:$0xff]
    %v5285 = vld [vmem:[%s5188 + $0x300] sm:$0xff]
    %v5286 = vld [vmem:[%s5188 + $0x308] sm:$0xff]
    %v5287 = vld [vmem:[%s5188 + $0x310] sm:$0xff]
    %v5288 = vld [vmem:[%s5188 + $0x318] sm:$0xff]
    %v5289 = vld [vmem:[%s5188 + $0x320] sm:$0xff]
    %v5290 = vld [vmem:[%s5188 + $0x328] sm:$0xff]
    %v5291 = vld [vmem:[%s5188 + $0x330] sm:$0xff]
    %v5292 = vld [vmem:[%s5188 + $0x338] sm:$0xff]
    %v5293 = vld [vmem:[%s5188 + $0x340] sm:$0xff]
    %v5294 = vld [vmem:[%s5188 + $0x348] sm:$0xff]
    %v5295 = vld [vmem:[%s5188 + $0x350] sm:$0xff]
    %v5296 = vld [vmem:[%s5188 + $0x358] sm:$0xff]
    %v5297 = vld [vmem:[%s5188 + $0x360] sm:$0xff]
    %v5298 = vld [vmem:[%s5188 + $0x368] sm:$0xff]
    %v5299 = vld [vmem:[%s5188 + $0x370] sm:$0xff]
    %v5300 = vld [vmem:[%s5188 + $0x378] sm:$0xff]
    %v5301 = vld [vmem:[%s5188 + $0x380] sm:$0xff]
    %v5302 = vld [vmem:[%s5188 + $0x388] sm:$0xff]
    %v5303 = vld [vmem:[%s5188 + $0x390] sm:$0xff]
    %v5304 = vld [vmem:[%s5188 + $0x398] sm:$0xff]
    %v5305 = vld [vmem:[%s5188 + $0x3a0] sm:$0xff]
    %v5306 = vld [vmem:[%s5188 + $0x3a8] sm:$0xff]
    %v5307 = vld [vmem:[%s5188 + $0x3b0] sm:$0xff]
    %v5308 = vld [vmem:[%s5188 + $0x3b8] sm:$0xff]
    %v5309 = vld [vmem:[%s5188 + $0x3c0] sm:$0xff]
    %v5310 = vld [vmem:[%s5188 + $0x3c8] sm:$0xff]
    %v5311 = vld [vmem:[%s5188 + $0x3d0] sm:$0xff]
    %v5312 = vld [vmem:[%s5188 + $0x3d8] sm:$0xff]
    %v5313 = vld [vmem:[%s5188 + $0x3e0] sm:$0xff]
    %v5314 = vld [vmem:[%s5188 + $0x3e8] sm:$0xff]
    %v5315 = vld [vmem:[%s5188 + $0x3f0] sm:$0xff]
    %v5316 = vld [vmem:[%s5188 + $0x3f8] sm:$0xff]
    %v5317 = vlaneseq
    %v5318 = vshrl.u32 %v5317, 7
    %v5319 = vsub.s32 6, %v5318
    %v5320 = vrot.slane %v77, %v5319
    %v5321 = vlaneseq
    %v5322 = vshrl.u32 %v5321, 7
    %v5323 = vsub.s32 6, %v5322
    %v5324 = vrot.slane %v78, %v5323
    %v5325 = vlaneseq
    %v5326 = vshrl.u32 %v5325, 7
    %v5327 = vsub.s32 6, %v5326
    %v5328 = vrot.slane %v79, %v5327
    %v5329 = vlaneseq
    %v5330 = vshrl.u32 %v5329, 7
    %v5331 = vsub.s32 6, %v5330
    %v5332 = vrot.slane %v80, %v5331
    %v5461 = vunpack.c.l.b16 %v5189
    %v5462 = vunpack.c.h.b16 %v5189
    %v5463 = vunpack.c.l.b16 %v5190
    %v5464 = vunpack.c.h.b16 %v5190
    %v5465 = vunpack.c.l.b16 %v5191
    %v5466 = vunpack.c.h.b16 %v5191
    %v5467 = vunpack.c.l.b16 %v5192
    %v5468 = vunpack.c.h.b16 %v5192
    %v5469 = vunpack.c.l.b16 %v5193
    %v5470 = vunpack.c.h.b16 %v5193
    %v5471 = vunpack.c.l.b16 %v5194
    %v5472 = vunpack.c.h.b16 %v5194
    %v5473 = vunpack.c.l.b16 %v5195
    %v5474 = vunpack.c.h.b16 %v5195
    %v5475 = vunpack.c.l.b16 %v5196
    %v5476 = vunpack.c.h.b16 %v5196
    %v5477 = vunpack.c.l.b16 %v5197
    %v5478 = vunpack.c.h.b16 %v5197
    %v5479 = vunpack.c.l.b16 %v5198
    %v5480 = vunpack.c.h.b16 %v5198
    %v5481 = vunpack.c.l.b16 %v5199
    %v5482 = vunpack.c.h.b16 %v5199
    %v5483 = vunpack.c.l.b16 %v5200
    %v5484 = vunpack.c.h.b16 %v5200
    %v5485 = vunpack.c.l.b16 %v5201
    %v5486 = vunpack.c.h.b16 %v5201
    %v5487 = vunpack.c.l.b16 %v5202
    %v5488 = vunpack.c.h.b16 %v5202
    %v5489 = vunpack.c.l.b16 %v5203
    %v5490 = vunpack.c.h.b16 %v5203
    %v5491 = vunpack.c.l.b16 %v5204
    %v5492 = vunpack.c.h.b16 %v5204
    %v5493 = vunpack.c.l.b16 %v5205
    %v5494 = vunpack.c.h.b16 %v5205
    %v5495 = vunpack.c.l.b16 %v5206
    %v5496 = vunpack.c.h.b16 %v5206
    %v5497 = vunpack.c.l.b16 %v5207
    %v5498 = vunpack.c.h.b16 %v5207
    %v5499 = vunpack.c.l.b16 %v5208
    %v5500 = vunpack.c.h.b16 %v5208
    %v5501 = vunpack.c.l.b16 %v5209
    %v5502 = vunpack.c.h.b16 %v5209
    %v5503 = vunpack.c.l.b16 %v5210
    %v5504 = vunpack.c.h.b16 %v5210
    %v5505 = vunpack.c.l.b16 %v5211
    %v5506 = vunpack.c.h.b16 %v5211
    %v5507 = vunpack.c.l.b16 %v5212
    %v5508 = vunpack.c.h.b16 %v5212
    %v5509 = vunpack.c.l.b16 %v5213
    %v5510 = vunpack.c.h.b16 %v5213
    %v5511 = vunpack.c.l.b16 %v5214
    %v5512 = vunpack.c.h.b16 %v5214
    %v5513 = vunpack.c.l.b16 %v5215
    %v5514 = vunpack.c.h.b16 %v5215
    %v5515 = vunpack.c.l.b16 %v5216
    %v5516 = vunpack.c.h.b16 %v5216
    %v5517 = vunpack.c.l.b16 %v5217
    %v5518 = vunpack.c.h.b16 %v5217
    %v5519 = vunpack.c.l.b16 %v5218
    %v5520 = vunpack.c.h.b16 %v5218
    %v5521 = vunpack.c.l.b16 %v5219
    %v5522 = vunpack.c.h.b16 %v5219
    %v5523 = vunpack.c.l.b16 %v5220
    %v5524 = vunpack.c.h.b16 %v5220
    %v5525 = vunpack.c.l.b16 %v5221
    %v5526 = vunpack.c.h.b16 %v5221
    %v5527 = vunpack.c.l.b16 %v5222
    %v5528 = vunpack.c.h.b16 %v5222
    %v5529 = vunpack.c.l.b16 %v5223
    %v5530 = vunpack.c.h.b16 %v5223
    %v5531 = vunpack.c.l.b16 %v5224
    %v5532 = vunpack.c.h.b16 %v5224
    %v5533 = vunpack.c.l.b16 %v5225
    %v5534 = vunpack.c.h.b16 %v5225
    %v5535 = vunpack.c.l.b16 %v5226
    %v5536 = vunpack.c.h.b16 %v5226
    %v5537 = vunpack.c.l.b16 %v5227
    %v5538 = vunpack.c.h.b16 %v5227
    %v5539 = vunpack.c.l.b16 %v5228
    %v5540 = vunpack.c.h.b16 %v5228
    %v5541 = vunpack.c.l.b16 %v5229
    %v5542 = vunpack.c.h.b16 %v5229
    %v5543 = vunpack.c.l.b16 %v5230
    %v5544 = vunpack.c.h.b16 %v5230
    %v5545 = vunpack.c.l.b16 %v5231
    %v5546 = vunpack.c.h.b16 %v5231
    %v5547 = vunpack.c.l.b16 %v5232
    %v5548 = vunpack.c.h.b16 %v5232
    %v5549 = vunpack.c.l.b16 %v5233
    %v5550 = vunpack.c.h.b16 %v5233
    %v5551 = vunpack.c.l.b16 %v5234
    %v5552 = vunpack.c.h.b16 %v5234
    %v5553 = vunpack.c.l.b16 %v5235
    %v5554 = vunpack.c.h.b16 %v5235
    %v5555 = vunpack.c.l.b16 %v5236
    %v5556 = vunpack.c.h.b16 %v5236
    %v5557 = vunpack.c.l.b16 %v5237
    %v5558 = vunpack.c.h.b16 %v5237
    %v5559 = vunpack.c.l.b16 %v5238
    %v5560 = vunpack.c.h.b16 %v5238
    %v5561 = vunpack.c.l.b16 %v5239
    %v5562 = vunpack.c.h.b16 %v5239
    %v5563 = vunpack.c.l.b16 %v5240
    %v5564 = vunpack.c.h.b16 %v5240
    %v5565 = vunpack.c.l.b16 %v5241
    %v5566 = vunpack.c.h.b16 %v5241
    %v5567 = vunpack.c.l.b16 %v5242
    %v5568 = vunpack.c.h.b16 %v5242
    %v5569 = vunpack.c.l.b16 %v5243
    %v5570 = vunpack.c.h.b16 %v5243
    %v5571 = vunpack.c.l.b16 %v5244
    %v5572 = vunpack.c.h.b16 %v5244
    %v5573 = vunpack.c.l.b16 %v5245
    %v5574 = vunpack.c.h.b16 %v5245
    %v5575 = vunpack.c.l.b16 %v5246
    %v5576 = vunpack.c.h.b16 %v5246
    %v5577 = vunpack.c.l.b16 %v5247
    %v5578 = vunpack.c.h.b16 %v5247
    %v5579 = vunpack.c.l.b16 %v5248
    %v5580 = vunpack.c.h.b16 %v5248
    %v5581 = vunpack.c.l.b16 %v5249
    %v5582 = vunpack.c.h.b16 %v5249
    %v5583 = vunpack.c.l.b16 %v5250
    %v5584 = vunpack.c.h.b16 %v5250
    %v5585 = vunpack.c.l.b16 %v5251
    %v5586 = vunpack.c.h.b16 %v5251
    %v5587 = vunpack.c.l.b16 %v5252
    %v5588 = vunpack.c.h.b16 %v5252
    %v5589 = vunpack.c.l.b16 %v5253
    %v5590 = vunpack.c.h.b16 %v5253
    %v5591 = vunpack.c.l.b16 %v5254
    %v5592 = vunpack.c.h.b16 %v5254
    %v5593 = vunpack.c.l.b16 %v5255
    %v5594 = vunpack.c.h.b16 %v5255
    %v5595 = vunpack.c.l.b16 %v5256
    %v5596 = vunpack.c.h.b16 %v5256
    %v5597 = vunpack.c.l.b16 %v5257
    %v5598 = vunpack.c.h.b16 %v5257
    %v5599 = vunpack.c.l.b16 %v5258
    %v5600 = vunpack.c.h.b16 %v5258
    %v5601 = vunpack.c.l.b16 %v5259
    %v5602 = vunpack.c.h.b16 %v5259
    %v5603 = vunpack.c.l.b16 %v5260
    %v5604 = vunpack.c.h.b16 %v5260
    %v5605 = vunpack.c.l.b16 %v5261
    %v5606 = vunpack.c.h.b16 %v5261
    %v5607 = vunpack.c.l.b16 %v5262
    %v5608 = vunpack.c.h.b16 %v5262
    %v5609 = vunpack.c.l.b16 %v5263
    %v5610 = vunpack.c.h.b16 %v5263
    %v5611 = vunpack.c.l.b16 %v5264
    %v5612 = vunpack.c.h.b16 %v5264
    %v5613 = vunpack.c.l.b16 %v5265
    %v5614 = vunpack.c.h.b16 %v5265
    %v5615 = vunpack.c.l.b16 %v5266
    %v5616 = vunpack.c.h.b16 %v5266
    %v5617 = vunpack.c.l.b16 %v5267
    %v5618 = vunpack.c.h.b16 %v5267
    %v5619 = vunpack.c.l.b16 %v5268
    %v5620 = vunpack.c.h.b16 %v5268
    %v5621 = vunpack.c.l.b16 %v5269
    %v5622 = vunpack.c.h.b16 %v5269
    %v5623 = vunpack.c.l.b16 %v5270
    %v5624 = vunpack.c.h.b16 %v5270
    %v5625 = vunpack.c.l.b16 %v5271
    %v5626 = vunpack.c.h.b16 %v5271
    %v5627 = vunpack.c.l.b16 %v5272
    %v5628 = vunpack.c.h.b16 %v5272
    %v5629 = vunpack.c.l.b16 %v5273
    %v5630 = vunpack.c.h.b16 %v5273
    %v5631 = vunpack.c.l.b16 %v5274
    %v5632 = vunpack.c.h.b16 %v5274
    %v5633 = vunpack.c.l.b16 %v5275
    %v5634 = vunpack.c.h.b16 %v5275
    %v5635 = vunpack.c.l.b16 %v5276
    %v5636 = vunpack.c.h.b16 %v5276
    %v5637 = vunpack.c.l.b16 %v5277
    %v5638 = vunpack.c.h.b16 %v5277
    %v5639 = vunpack.c.l.b16 %v5278
    %v5640 = vunpack.c.h.b16 %v5278
    %v5641 = vunpack.c.l.b16 %v5279
    %v5642 = vunpack.c.h.b16 %v5279
    %v5643 = vunpack.c.l.b16 %v5280
    %v5644 = vunpack.c.h.b16 %v5280
    %v5645 = vunpack.c.l.b16 %v5281
    %v5646 = vunpack.c.h.b16 %v5281
    %v5647 = vunpack.c.l.b16 %v5282
    %v5648 = vunpack.c.h.b16 %v5282
    %v5649 = vunpack.c.l.b16 %v5283
    %v5650 = vunpack.c.h.b16 %v5283
    %v5651 = vunpack.c.l.b16 %v5284
    %v5652 = vunpack.c.h.b16 %v5284
    %v5653 = vunpack.c.l.b16 %v5285
    %v5654 = vunpack.c.h.b16 %v5285
    %v5655 = vunpack.c.l.b16 %v5286
    %v5656 = vunpack.c.h.b16 %v5286
    %v5657 = vunpack.c.l.b16 %v5287
    %v5658 = vunpack.c.h.b16 %v5287
    %v5659 = vunpack.c.l.b16 %v5288
    %v5660 = vunpack.c.h.b16 %v5288
    %v5661 = vunpack.c.l.b16 %v5289
    %v5662 = vunpack.c.h.b16 %v5289
    %v5663 = vunpack.c.l.b16 %v5290
    %v5664 = vunpack.c.h.b16 %v5290
    %v5665 = vunpack.c.l.b16 %v5291
    %v5666 = vunpack.c.h.b16 %v5291
    %v5667 = vunpack.c.l.b16 %v5292
    %v5668 = vunpack.c.h.b16 %v5292
    %v5669 = vunpack.c.l.b16 %v5293
    %v5670 = vunpack.c.h.b16 %v5293
    %v5671 = vunpack.c.l.b16 %v5294
    %v5672 = vunpack.c.h.b16 %v5294
    %v5673 = vunpack.c.l.b16 %v5295
    %v5674 = vunpack.c.h.b16 %v5295
    %v5675 = vunpack.c.l.b16 %v5296
    %v5676 = vunpack.c.h.b16 %v5296
    %v5677 = vunpack.c.l.b16 %v5297
    %v5678 = vunpack.c.h.b16 %v5297
    %v5679 = vunpack.c.l.b16 %v5298
    %v5680 = vunpack.c.h.b16 %v5298
    %v5681 = vunpack.c.l.b16 %v5299
    %v5682 = vunpack.c.h.b16 %v5299
    %v5683 = vunpack.c.l.b16 %v5300
    %v5684 = vunpack.c.h.b16 %v5300
    %v5685 = vunpack.c.l.b16 %v5301
    %v5686 = vunpack.c.h.b16 %v5301
    %v5687 = vunpack.c.l.b16 %v5302
    %v5688 = vunpack.c.h.b16 %v5302
    %v5689 = vunpack.c.l.b16 %v5303
    %v5690 = vunpack.c.h.b16 %v5303
    %v5691 = vunpack.c.l.b16 %v5304
    %v5692 = vunpack.c.h.b16 %v5304
    %v5693 = vunpack.c.l.b16 %v5305
    %v5694 = vunpack.c.h.b16 %v5305
    %v5695 = vunpack.c.l.b16 %v5306
    %v5696 = vunpack.c.h.b16 %v5306
    %v5697 = vunpack.c.l.b16 %v5307
    %v5698 = vunpack.c.h.b16 %v5307
    %v5699 = vunpack.c.l.b16 %v5308
    %v5700 = vunpack.c.h.b16 %v5308
    %v5701 = vunpack.c.l.b16 %v5309
    %v5702 = vunpack.c.h.b16 %v5309
    %v5703 = vunpack.c.l.b16 %v5310
    %v5704 = vunpack.c.h.b16 %v5310
    %v5705 = vunpack.c.l.b16 %v5311
    %v5706 = vunpack.c.h.b16 %v5311
    %v5707 = vunpack.c.l.b16 %v5312
    %v5708 = vunpack.c.h.b16 %v5312
    %v5709 = vunpack.c.l.b16 %v5313
    %v5710 = vunpack.c.h.b16 %v5313
    %v5711 = vunpack.c.l.b16 %v5314
    %v5712 = vunpack.c.h.b16 %v5314
    %v5713 = vunpack.c.l.b16 %v5315
    %v5714 = vunpack.c.h.b16 %v5315
    %v5715 = vunpack.c.l.b16 %v5316
    %v5716 = vunpack.c.h.b16 %v5316
    %v5717 = vpack.c.b16 %v5465, %v5461
    %v5718 = vpack.c.b16 %v5466, %v5462
    %v5719 = vpack.c.b16 %v5467, %v5463
    %v5720 = vpack.c.b16 %v5468, %v5464
    %v5721 = vpack.c.b16 %v5473, %v5469
    %v5722 = vpack.c.b16 %v5474, %v5470
    %v5723 = vpack.c.b16 %v5475, %v5471
    %v5724 = vpack.c.b16 %v5476, %v5472
    %v5725 = vpack.c.b16 %v5481, %v5477
    %v5726 = vpack.c.b16 %v5482, %v5478
    %v5727 = vpack.c.b16 %v5483, %v5479
    %v5728 = vpack.c.b16 %v5484, %v5480
    %v5729 = vpack.c.b16 %v5489, %v5485
    %v5730 = vpack.c.b16 %v5490, %v5486
    %v5731 = vpack.c.b16 %v5491, %v5487
    %v5732 = vpack.c.b16 %v5492, %v5488
    %v5733 = vpack.c.b16 %v5497, %v5493
    %v5734 = vpack.c.b16 %v5498, %v5494
    %v5735 = vpack.c.b16 %v5499, %v5495
    %v5736 = vpack.c.b16 %v5500, %v5496
    %v5737 = vpack.c.b16 %v5505, %v5501
    %v5738 = vpack.c.b16 %v5506, %v5502
    %v5739 = vpack.c.b16 %v5507, %v5503
    %v5740 = vpack.c.b16 %v5508, %v5504
    %v5741 = vpack.c.b16 %v5513, %v5509
    %v5742 = vpack.c.b16 %v5514, %v5510
    %v5743 = vpack.c.b16 %v5515, %v5511
    %v5744 = vpack.c.b16 %v5516, %v5512
    %v5745 = vpack.c.b16 %v5521, %v5517
    %v5746 = vpack.c.b16 %v5522, %v5518
    %v5747 = vpack.c.b16 %v5523, %v5519
    %v5748 = vpack.c.b16 %v5524, %v5520
    %v5749 = vpack.c.b16 %v5529, %v5525
    %v5750 = vpack.c.b16 %v5530, %v5526
    %v5751 = vpack.c.b16 %v5531, %v5527
    %v5752 = vpack.c.b16 %v5532, %v5528
    %v5753 = vpack.c.b16 %v5537, %v5533
    %v5754 = vpack.c.b16 %v5538, %v5534
    %v5755 = vpack.c.b16 %v5539, %v5535
    %v5756 = vpack.c.b16 %v5540, %v5536
    %v5757 = vpack.c.b16 %v5545, %v5541
    %v5758 = vpack.c.b16 %v5546, %v5542
    %v5759 = vpack.c.b16 %v5547, %v5543
    %v5760 = vpack.c.b16 %v5548, %v5544
    %v5761 = vpack.c.b16 %v5553, %v5549
    %v5762 = vpack.c.b16 %v5554, %v5550
    %v5763 = vpack.c.b16 %v5555, %v5551
    %v5764 = vpack.c.b16 %v5556, %v5552
    %v5765 = vpack.c.b16 %v5561, %v5557
    %v5766 = vpack.c.b16 %v5562, %v5558
    %v5767 = vpack.c.b16 %v5563, %v5559
    %v5768 = vpack.c.b16 %v5564, %v5560
    %v5769 = vpack.c.b16 %v5569, %v5565
    %v5770 = vpack.c.b16 %v5570, %v5566
    %v5771 = vpack.c.b16 %v5571, %v5567
    %v5772 = vpack.c.b16 %v5572, %v5568
    %v5773 = vpack.c.b16 %v5577, %v5573
    %v5774 = vpack.c.b16 %v5578, %v5574
    %v5775 = vpack.c.b16 %v5579, %v5575
    %v5776 = vpack.c.b16 %v5580, %v5576
    %v5777 = vpack.c.b16 %v5585, %v5581
    %v5778 = vpack.c.b16 %v5586, %v5582
    %v5779 = vpack.c.b16 %v5587, %v5583
    %v5780 = vpack.c.b16 %v5588, %v5584
    %v5781 = vpack.c.b16 %v5593, %v5589
    %v5782 = vpack.c.b16 %v5594, %v5590
    %v5783 = vpack.c.b16 %v5595, %v5591
    %v5784 = vpack.c.b16 %v5596, %v5592
    %v5785 = vpack.c.b16 %v5601, %v5597
    %v5786 = vpack.c.b16 %v5602, %v5598
    %v5787 = vpack.c.b16 %v5603, %v5599
    %v5788 = vpack.c.b16 %v5604, %v5600
    %v5789 = vpack.c.b16 %v5609, %v5605
    %v5790 = vpack.c.b16 %v5610, %v5606
    %v5791 = vpack.c.b16 %v5611, %v5607
    %v5792 = vpack.c.b16 %v5612, %v5608
    %v5793 = vpack.c.b16 %v5617, %v5613
    %v5794 = vpack.c.b16 %v5618, %v5614
    %v5795 = vpack.c.b16 %v5619, %v5615
    %v5796 = vpack.c.b16 %v5620, %v5616
    %v5797 = vpack.c.b16 %v5625, %v5621
    %v5798 = vpack.c.b16 %v5626, %v5622
    %v5799 = vpack.c.b16 %v5627, %v5623
    %v5800 = vpack.c.b16 %v5628, %v5624
    %v5801 = vpack.c.b16 %v5633, %v5629
    %v5802 = vpack.c.b16 %v5634, %v5630
    %v5803 = vpack.c.b16 %v5635, %v5631
    %v5804 = vpack.c.b16 %v5636, %v5632
    %v5805 = vpack.c.b16 %v5641, %v5637
    %v5806 = vpack.c.b16 %v5642, %v5638
    %v5807 = vpack.c.b16 %v5643, %v5639
    %v5808 = vpack.c.b16 %v5644, %v5640
    %v5809 = vpack.c.b16 %v5649, %v5645
    %v5810 = vpack.c.b16 %v5650, %v5646
    %v5811 = vpack.c.b16 %v5651, %v5647
    %v5812 = vpack.c.b16 %v5652, %v5648
    %v5813 = vpack.c.b16 %v5657, %v5653
    %v5814 = vpack.c.b16 %v5658, %v5654
    %v5815 = vpack.c.b16 %v5659, %v5655
    %v5816 = vpack.c.b16 %v5660, %v5656
    %v5817 = vpack.c.b16 %v5665, %v5661
    %v5818 = vpack.c.b16 %v5666, %v5662
    %v5819 = vpack.c.b16 %v5667, %v5663
    %v5820 = vpack.c.b16 %v5668, %v5664
    %v5821 = vpack.c.b16 %v5673, %v5669
    %v5822 = vpack.c.b16 %v5674, %v5670
    %v5823 = vpack.c.b16 %v5675, %v5671
    %v5824 = vpack.c.b16 %v5676, %v5672
    %v5825 = vpack.c.b16 %v5681, %v5677
    %v5826 = vpack.c.b16 %v5682, %v5678
    %v5827 = vpack.c.b16 %v5683, %v5679
    %v5828 = vpack.c.b16 %v5684, %v5680
    %v5829 = vpack.c.b16 %v5689, %v5685
    %v5830 = vpack.c.b16 %v5690, %v5686
    %v5831 = vpack.c.b16 %v5691, %v5687
    %v5832 = vpack.c.b16 %v5692, %v5688
    %v5833 = vpack.c.b16 %v5697, %v5693
    %v5834 = vpack.c.b16 %v5698, %v5694
    %v5835 = vpack.c.b16 %v5699, %v5695
    %v5836 = vpack.c.b16 %v5700, %v5696
    %v5837 = vpack.c.b16 %v5705, %v5701
    %v5838 = vpack.c.b16 %v5706, %v5702
    %v5839 = vpack.c.b16 %v5707, %v5703
    %v5840 = vpack.c.b16 %v5708, %v5704
    %v5841 = vpack.c.b16 %v5713, %v5709
    %v5842 = vpack.c.b16 %v5714, %v5710
    %v5843 = vpack.c.b16 %v5715, %v5711
    %v5844 = vpack.c.b16 %v5716, %v5712
    %5973 = vmatprep.subr.bf16.mxu0 %v5746
    %5974 = vmatpush1.bf16.msra.mxu0 %v5745
    %5975 = vmatprep.subr.bf16.mxu0 %v5742
    %5976 = vmatpush1.bf16.msra.mxu0 %v5741
    %5977 = vmatprep.subr.bf16.mxu0 %v5738
    %5978 = vmatpush1.bf16.msra.mxu0 %v5737
    %5979 = vmatprep.subr.bf16.mxu0 %v5734
    %5980 = vmatpush1.bf16.msra.mxu0 %v5733
    %5981 = vmatprep.subr.bf16.mxu0 %v5730
    %5982 = vmatpush1.bf16.msra.mxu0 %v5729
    %5983 = vmatprep.subr.bf16.mxu0 %v5726
    %5984 = vmatpush1.bf16.msra.mxu0 %v5725
    %5985 = vmatprep.subr.bf16.mxu0 %v5722
    %5986 = vmatpush1.bf16.msra.mxu0 %v5721
    %5987 = vmatprep.subr.bf16.mxu0 %v5718
    %5988 = vmatpush1.bf16.msra.mxu0 %v5717
    %5989 = vmatprep.subr.bf16.mxu0 %v5778
    %5990 = vmatpush2.bf16.msra.mxu0 %v5777
    %5991 = vmatprep.subr.bf16.mxu0 %v5774
    %5992 = vmatpush2.bf16.msra.mxu0 %v5773
    %5993 = vmatprep.subr.bf16.mxu0 %v5770
    %5994 = vmatpush2.bf16.msra.mxu0 %v5769
    %5995 = vmatprep.subr.bf16.mxu0 %v5766
    %5996 = vmatpush2.bf16.msra.mxu0 %v5765
    %5997 = vmatprep.subr.bf16.mxu0 %v5762
    %5998 = vmatpush2.bf16.msra.mxu0 %v5761
    %5999 = vmatprep.subr.bf16.mxu0 %v5758
    %6000 = vmatpush2.bf16.msra.mxu0 %v5757
    %6001 = vmatprep.subr.bf16.mxu0 %v5754
    %6002 = vmatpush2.bf16.msra.mxu0 %v5753
    %6003 = vmatprep.subr.bf16.mxu0 %v5750
    %6004 = vmatpush2.bf16.msra.mxu0 %v5749
    %6005 = vmatprep.mubr.bf16.mxu0 %v5185
    %6006 = vmatmul.mubr.bf16.gmra.mxu0 %v5184
    %v6007 = vpop.f32.mrf.mxu0
    %v6008 = vadd.f32 %v5320, %v6007
    %v6009 = vpop.f32.mrf.mxu0
    %v6010 = vadd.f32 %v5324, %v6009
    %v6011 = vpop.f32.mrf.mxu0
    %v6012 = vpop.f32.mrf.mxu0
    %6013 = vdwg.mxu0
    %6014 = vmatprep.subr.bf16.mxu0 %v5810
    %6015 = vmatpush1.bf16.msra.mxu0 %v5809
    %6016 = vmatprep.subr.bf16.mxu0 %v5806
    %6017 = vmatpush1.bf16.msra.mxu0 %v5805
    %6018 = vmatprep.subr.bf16.mxu0 %v5802
    %6019 = vmatpush1.bf16.msra.mxu0 %v5801
    %6020 = vmatprep.subr.bf16.mxu0 %v5798
    %6021 = vmatpush1.bf16.msra.mxu0 %v5797
    %6022 = vmatprep.subr.bf16.mxu0 %v5794
    %6023 = vmatpush1.bf16.msra.mxu0 %v5793
    %6024 = vmatprep.subr.bf16.mxu0 %v5790
    %6025 = vmatpush1.bf16.msra.mxu0 %v5789
    %6026 = vmatprep.subr.bf16.mxu0 %v5786
    %6027 = vmatpush1.bf16.msra.mxu0 %v5785
    %6028 = vmatprep.subr.bf16.mxu0 %v5782
    %6029 = vmatpush1.bf16.msra.mxu0 %v5781
    %6030 = vmatprep.subr.bf16.mxu0 %v5842
    %6031 = vmatpush2.bf16.msra.mxu0 %v5841
    %6032 = vmatprep.subr.bf16.mxu0 %v5838
    %6033 = vmatpush2.bf16.msra.mxu0 %v5837
    %6034 = vmatprep.subr.bf16.mxu0 %v5834
    %6035 = vmatpush2.bf16.msra.mxu0 %v5833
    %6036 = vmatprep.subr.bf16.mxu0 %v5830
    %6037 = vmatpush2.bf16.msra.mxu0 %v5829
    %6038 = vmatprep.subr.bf16.mxu0 %v5826
    %6039 = vmatpush2.bf16.msra.mxu0 %v5825
    %6040 = vmatprep.subr.bf16.mxu0 %v5822
    %6041 = vmatpush2.bf16.msra.mxu0 %v5821
    %6042 = vmatprep.subr.bf16.mxu0 %v5818
    %6043 = vmatpush2.bf16.msra.mxu0 %v5817
    %6044 = vmatprep.subr.bf16.mxu0 %v5814
    %6045 = vmatpush2.bf16.msra.mxu0 %v5813
    %6046 = vmatprep.mubr.bf16.mxu0 %v5187
    %6047 = vmatmul.mubr.bf16.gmra.mxu0 %v5186
    %v6048 = vpop.f32.mrf.mxu0
    %v6049 = vadd.f32 %v6008, %v6048
    %v6050 = vpop.f32.mrf.mxu0
    %v6051 = vadd.f32 %v6010, %v6050
    %v6052 = vpop.f32.mrf.mxu0
    %v6053 = vpop.f32.mrf.mxu0
    %6054 = vdwg.mxu0
    %6055 = vmatprep.subr.bf16.mxu0 %v5748
    %6056 = vmatpush1.bf16.msra.mxu0 %v5747
    %6057 = vmatprep.subr.bf16.mxu0 %v5744
    %6058 = vmatpush1.bf16.msra.mxu0 %v5743
    %6059 = vmatprep.subr.bf16.mxu0 %v5740
    %6060 = vmatpush1.bf16.msra.mxu0 %v5739
    %6061 = vmatprep.subr.bf16.mxu0 %v5736
    %6062 = vmatpush1.bf16.msra.mxu0 %v5735
    %6063 = vmatprep.subr.bf16.mxu0 %v5732
    %6064 = vmatpush1.bf16.msra.mxu0 %v5731
    %6065 = vmatprep.subr.bf16.mxu0 %v5728
    %6066 = vmatpush1.bf16.msra.mxu0 %v5727
    %6067 = vmatprep.subr.bf16.mxu0 %v5724
    %6068 = vmatpush1.bf16.msra.mxu0 %v5723
    %6069 = vmatprep.subr.bf16.mxu0 %v5720
    %6070 = vmatpush1.bf16.msra.mxu0 %v5719
    %6071 = vmatprep.subr.bf16.mxu0 %v5780
    %6072 = vmatpush2.bf16.msra.mxu0 %v5779
    %6073 = vmatprep.subr.bf16.mxu0 %v5776
    %6074 = vmatpush2.bf16.msra.mxu0 %v5775
    %6075 = vmatprep.subr.bf16.mxu0 %v5772
    %6076 = vmatpush2.bf16.msra.mxu0 %v5771
    %6077 = vmatprep.subr.bf16.mxu0 %v5768
    %6078 = vmatpush2.bf16.msra.mxu0 %v5767
    %6079 = vmatprep.subr.bf16.mxu0 %v5764
    %6080 = vmatpush2.bf16.msra.mxu0 %v5763
    %6081 = vmatprep.subr.bf16.mxu0 %v5760
    %6082 = vmatpush2.bf16.msra.mxu0 %v5759
    %6083 = vmatprep.subr.bf16.mxu0 %v5756
    %6084 = vmatpush2.bf16.msra.mxu0 %v5755
    %6085 = vmatprep.subr.bf16.mxu0 %v5752
    %6086 = vmatpush2.bf16.msra.mxu0 %v5751
    %6087 = vmatprep.mubr.bf16.mxu0 %v5185
    %6088 = vmatmul.mubr.bf16.gmra.mxu0 %v5184
    %v6089 = vpop.f32.mrf.mxu0
    %v6090 = vadd.f32 %v5328, %v6089
    %v6091 = vpop.f32.mrf.mxu0
    %v6092 = vadd.f32 %v5332, %v6091
    %v6093 = vpop.f32.mrf.mxu0
    %v6094 = vpop.f32.mrf.mxu0
    %6095 = vdwg.mxu0
    %6096 = vmatprep.subr.bf16.mxu0 %v5812
    %6097 = vmatpush1.bf16.msra.mxu0 %v5811
    %6098 = vmatprep.subr.bf16.mxu0 %v5808
    %6099 = vmatpush1.bf16.msra.mxu0 %v5807
    %6100 = vmatprep.subr.bf16.mxu0 %v5804
    %6101 = vmatpush1.bf16.msra.mxu0 %v5803
    %6102 = vmatprep.subr.bf16.mxu0 %v5800
    %6103 = vmatpush1.bf16.msra.mxu0 %v5799
    %6104 = vmatprep.subr.bf16.mxu0 %v5796
    %6105 = vmatpush1.bf16.msra.mxu0 %v5795
    %6106 = vmatprep.subr.bf16.mxu0 %v5792
    %6107 = vmatpush1.bf16.msra.mxu0 %v5791
    %6108 = vmatprep.subr.bf16.mxu0 %v5788
    %6109 = vmatpush1.bf16.msra.mxu0 %v5787
    %6110 = vmatprep.subr.bf16.mxu0 %v5784
    %6111 = vmatpush1.bf16.msra.mxu0 %v5783
    %6112 = vmatprep.subr.bf16.mxu0 %v5844
    %6113 = vmatpush2.bf16.msra.mxu0 %v5843
    %6114 = vmatprep.subr.bf16.mxu0 %v5840
    %6115 = vmatpush2.bf16.msra.mxu0 %v5839
    %6116 = vmatprep.subr.bf16.mxu0 %v5836
    %6117 = vmatpush2.bf16.msra.mxu0 %v5835
    %6118 = vmatprep.subr.bf16.mxu0 %v5832
    %6119 = vmatpush2.bf16.msra.mxu0 %v5831
    %6120 = vmatprep.subr.bf16.mxu0 %v5828
    %6121 = vmatpush2.bf16.msra.mxu0 %v5827
    %6122 = vmatprep.subr.bf16.mxu0 %v5824
    %6123 = vmatpush2.bf16.msra.mxu0 %v5823
    %6124 = vmatprep.subr.bf16.mxu0 %v5820
    %6125 = vmatpush2.bf16.msra.mxu0 %v5819
    %6126 = vmatprep.subr.bf16.mxu0 %v5816
    %6127 = vmatpush2.bf16.msra.mxu0 %v5815
    %6128 = vmatprep.mubr.bf16.mxu0 %v5187
    %6129 = vmatmul.mubr.bf16.gmra.mxu0 %v5186
    %v6130 = vpop.f32.mrf.mxu0
    %v6131 = vadd.f32 %v6090, %v6130
    %v6132 = vpop.f32.mrf.mxu0
    %v6133 = vadd.f32 %v6092, %v6132
    %v6134 = vpop.f32.mrf.mxu0
    %v6135 = vpop.f32.mrf.mxu0
    %6136 = vdwg.mxu0
    %v6137 = vmul.f32 %v6049, 0.2
    %v6138 = vmul.f32 %v6051, 0.2
    %v6139 = vmul.f32 %v6131, 0.2
    %v6140 = vmul.f32 %v6133, 0.2
    %v6141 = vmax.f32 %v6049, %v6137
    %v6142 = vmax.f32 %v6051, %v6138
    %v6143 = vmax.f32 %v6131, %v6139
    %v6144 = vmax.f32 %v6133, %v6140
    %v6145 = vpack.c.bf16 %v6141, %v6141
    %v6146 = vpack.c.bf16 %v6142, %v6142
    %v6147 = vpack.c.bf16 %v6143, %v6143
    %v6148 = vpack.c.bf16 %v6144, %v6144
    %s6149 = scalar_lea.vmem [#allocation7], 6144
    %v6150 = vld [vmem:[%s6149] sm:$0xff]
    %v6151 = vld [vmem:[%s6149 + $0x8] sm:$0xff]
    %v6152 = vld [vmem:[%s6149 + $0x10] sm:$0xff]
    %v6153 = vld [vmem:[%s6149 + $0x18] sm:$0xff]
    %v6154 = vld [vmem:[%s6149 + $0x20] sm:$0xff]
    %v6155 = vld [vmem:[%s6149 + $0x28] sm:$0xff]
    %v6156 = vld [vmem:[%s6149 + $0x30] sm:$0xff]
    %v6157 = vld [vmem:[%s6149 + $0x38] sm:$0xff]
    %v6158 = vld [vmem:[%s6149 + $0x40] sm:$0xff]
    %v6159 = vld [vmem:[%s6149 + $0x48] sm:$0xff]
    %v6160 = vld [vmem:[%s6149 + $0x50] sm:$0xff]
    %v6161 = vld [vmem:[%s6149 + $0x58] sm:$0xff]
    %v6162 = vld [vmem:[%s6149 + $0x60] sm:$0xff]
    %v6163 = vld [vmem:[%s6149 + $0x68] sm:$0xff]
    %v6164 = vld [vmem:[%s6149 + $0x70] sm:$0xff]
    %v6165 = vld [vmem:[%s6149 + $0x78] sm:$0xff]
    %v6166 = vld [vmem:[%s6149 + $0x80] sm:$0xff]
    %v6167 = vld [vmem:[%s6149 + $0x88] sm:$0xff]
    %v6168 = vld [vmem:[%s6149 + $0x90] sm:$0xff]
    %v6169 = vld [vmem:[%s6149 + $0x98] sm:$0xff]
    %v6170 = vld [vmem:[%s6149 + $0xa0] sm:$0xff]
    %v6171 = vld [vmem:[%s6149 + $0xa8] sm:$0xff]
    %v6172 = vld [vmem:[%s6149 + $0xb0] sm:$0xff]
    %v6173 = vld [vmem:[%s6149 + $0xb8] sm:$0xff]
    %v6174 = vld [vmem:[%s6149 + $0xc0] sm:$0xff]
    %v6175 = vld [vmem:[%s6149 + $0xc8] sm:$0xff]
    %v6176 = vld [vmem:[%s6149 + $0xd0] sm:$0xff]
    %v6177 = vld [vmem:[%s6149 + $0xd8] sm:$0xff]
    %v6178 = vld [vmem:[%s6149 + $0xe0] sm:$0xff]
    %v6179 = vld [vmem:[%s6149 + $0xe8] sm:$0xff]
    %v6180 = vld [vmem:[%s6149 + $0xf0] sm:$0xff]
    %v6181 = vld [vmem:[%s6149 + $0xf8] sm:$0xff]
    %v6182 = vld [vmem:[%s6149 + $0x100] sm:$0xff]
    %v6183 = vld [vmem:[%s6149 + $0x108] sm:$0xff]
    %v6184 = vld [vmem:[%s6149 + $0x110] sm:$0xff]
    %v6185 = vld [vmem:[%s6149 + $0x118] sm:$0xff]
    %v6186 = vld [vmem:[%s6149 + $0x120] sm:$0xff]
    %v6187 = vld [vmem:[%s6149 + $0x128] sm:$0xff]
    %v6188 = vld [vmem:[%s6149 + $0x130] sm:$0xff]
    %v6189 = vld [vmem:[%s6149 + $0x138] sm:$0xff]
    %v6190 = vld [vmem:[%s6149 + $0x140] sm:$0xff]
    %v6191 = vld [vmem:[%s6149 + $0x148] sm:$0xff]
    %v6192 = vld [vmem:[%s6149 + $0x150] sm:$0xff]
    %v6193 = vld [vmem:[%s6149 + $0x158] sm:$0xff]
    %v6194 = vld [vmem:[%s6149 + $0x160] sm:$0xff]
    %v6195 = vld [vmem:[%s6149 + $0x168] sm:$0xff]
    %v6196 = vld [vmem:[%s6149 + $0x170] sm:$0xff]
    %v6197 = vld [vmem:[%s6149 + $0x178] sm:$0xff]
    %v6198 = vld [vmem:[%s6149 + $0x180] sm:$0xff]
    %v6199 = vld [vmem:[%s6149 + $0x188] sm:$0xff]
    %v6200 = vld [vmem:[%s6149 + $0x190] sm:$0xff]
    %v6201 = vld [vmem:[%s6149 + $0x198] sm:$0xff]
    %v6202 = vld [vmem:[%s6149 + $0x1a0] sm:$0xff]
    %v6203 = vld [vmem:[%s6149 + $0x1a8] sm:$0xff]
    %v6204 = vld [vmem:[%s6149 + $0x1b0] sm:$0xff]
    %v6205 = vld [vmem:[%s6149 + $0x1b8] sm:$0xff]
    %v6206 = vld [vmem:[%s6149 + $0x1c0] sm:$0xff]
    %v6207 = vld [vmem:[%s6149 + $0x1c8] sm:$0xff]
    %v6208 = vld [vmem:[%s6149 + $0x1d0] sm:$0xff]
    %v6209 = vld [vmem:[%s6149 + $0x1d8] sm:$0xff]
    %v6210 = vld [vmem:[%s6149 + $0x1e0] sm:$0xff]
    %v6211 = vld [vmem:[%s6149 + $0x1e8] sm:$0xff]
    %v6212 = vld [vmem:[%s6149 + $0x1f0] sm:$0xff]
    %v6213 = vld [vmem:[%s6149 + $0x1f8] sm:$0xff]
    %v6214 = vld [vmem:[%s6149 + $0x200] sm:$0xff]
    %v6215 = vld [vmem:[%s6149 + $0x208] sm:$0xff]
    %v6216 = vld [vmem:[%s6149 + $0x210] sm:$0xff]
    %v6217 = vld [vmem:[%s6149 + $0x218] sm:$0xff]
    %v6218 = vld [vmem:[%s6149 + $0x220] sm:$0xff]
    %v6219 = vld [vmem:[%s6149 + $0x228] sm:$0xff]
    %v6220 = vld [vmem:[%s6149 + $0x230] sm:$0xff]
    %v6221 = vld [vmem:[%s6149 + $0x238] sm:$0xff]
    %v6222 = vld [vmem:[%s6149 + $0x240] sm:$0xff]
    %v6223 = vld [vmem:[%s6149 + $0x248] sm:$0xff]
    %v6224 = vld [vmem:[%s6149 + $0x250] sm:$0xff]
    %v6225 = vld [vmem:[%s6149 + $0x258] sm:$0xff]
    %v6226 = vld [vmem:[%s6149 + $0x260] sm:$0xff]
    %v6227 = vld [vmem:[%s6149 + $0x268] sm:$0xff]
    %v6228 = vld [vmem:[%s6149 + $0x270] sm:$0xff]
    %v6229 = vld [vmem:[%s6149 + $0x278] sm:$0xff]
    %v6230 = vld [vmem:[%s6149 + $0x280] sm:$0xff]
    %v6231 = vld [vmem:[%s6149 + $0x288] sm:$0xff]
    %v6232 = vld [vmem:[%s6149 + $0x290] sm:$0xff]
    %v6233 = vld [vmem:[%s6149 + $0x298] sm:$0xff]
    %v6234 = vld [vmem:[%s6149 + $0x2a0] sm:$0xff]
    %v6235 = vld [vmem:[%s6149 + $0x2a8] sm:$0xff]
    %v6236 = vld [vmem:[%s6149 + $0x2b0] sm:$0xff]
    %v6237 = vld [vmem:[%s6149 + $0x2b8] sm:$0xff]
    %v6238 = vld [vmem:[%s6149 + $0x2c0] sm:$0xff]
    %v6239 = vld [vmem:[%s6149 + $0x2c8] sm:$0xff]
    %v6240 = vld [vmem:[%s6149 + $0x2d0] sm:$0xff]
    %v6241 = vld [vmem:[%s6149 + $0x2d8] sm:$0xff]
    %v6242 = vld [vmem:[%s6149 + $0x2e0] sm:$0xff]
    %v6243 = vld [vmem:[%s6149 + $0x2e8] sm:$0xff]
    %v6244 = vld [vmem:[%s6149 + $0x2f0] sm:$0xff]
    %v6245 = vld [vmem:[%s6149 + $0x2f8] sm:$0xff]
    %v6246 = vld [vmem:[%s6149 + $0x300] sm:$0xff]
    %v6247 = vld [vmem:[%s6149 + $0x308] sm:$0xff]
    %v6248 = vld [vmem:[%s6149 + $0x310] sm:$0xff]
    %v6249 = vld [vmem:[%s6149 + $0x318] sm:$0xff]
    %v6250 = vld [vmem:[%s6149 + $0x320] sm:$0xff]
    %v6251 = vld [vmem:[%s6149 + $0x328] sm:$0xff]
    %v6252 = vld [vmem:[%s6149 + $0x330] sm:$0xff]
    %v6253 = vld [vmem:[%s6149 + $0x338] sm:$0xff]
    %v6254 = vld [vmem:[%s6149 + $0x340] sm:$0xff]
    %v6255 = vld [vmem:[%s6149 + $0x348] sm:$0xff]
    %v6256 = vld [vmem:[%s6149 + $0x350] sm:$0xff]
    %v6257 = vld [vmem:[%s6149 + $0x358] sm:$0xff]
    %v6258 = vld [vmem:[%s6149 + $0x360] sm:$0xff]
    %v6259 = vld [vmem:[%s6149 + $0x368] sm:$0xff]
    %v6260 = vld [vmem:[%s6149 + $0x370] sm:$0xff]
    %v6261 = vld [vmem:[%s6149 + $0x378] sm:$0xff]
    %v6262 = vld [vmem:[%s6149 + $0x380] sm:$0xff]
    %v6263 = vld [vmem:[%s6149 + $0x388] sm:$0xff]
    %v6264 = vld [vmem:[%s6149 + $0x390] sm:$0xff]
    %v6265 = vld [vmem:[%s6149 + $0x398] sm:$0xff]
    %v6266 = vld [vmem:[%s6149 + $0x3a0] sm:$0xff]
    %v6267 = vld [vmem:[%s6149 + $0x3a8] sm:$0xff]
    %v6268 = vld [vmem:[%s6149 + $0x3b0] sm:$0xff]
    %v6269 = vld [vmem:[%s6149 + $0x3b8] sm:$0xff]
    %v6270 = vld [vmem:[%s6149 + $0x3c0] sm:$0xff]
    %v6271 = vld [vmem:[%s6149 + $0x3c8] sm:$0xff]
    %v6272 = vld [vmem:[%s6149 + $0x3d0] sm:$0xff]
    %v6273 = vld [vmem:[%s6149 + $0x3d8] sm:$0xff]
    %v6274 = vld [vmem:[%s6149 + $0x3e0] sm:$0xff]
    %v6275 = vld [vmem:[%s6149 + $0x3e8] sm:$0xff]
    %v6276 = vld [vmem:[%s6149 + $0x3f0] sm:$0xff]
    %v6277 = vld [vmem:[%s6149 + $0x3f8] sm:$0xff]
    %v6278 = vlaneseq
    %v6279 = vshrl.u32 %v6278, 7
    %v6280 = vsub.s32 7, %v6279
    %v6281 = vrot.slane %v77, %v6280
    %v6282 = vlaneseq
    %v6283 = vshrl.u32 %v6282, 7
    %v6284 = vsub.s32 7, %v6283
    %v6285 = vrot.slane %v78, %v6284
    %v6286 = vlaneseq
    %v6287 = vshrl.u32 %v6286, 7
    %v6288 = vsub.s32 7, %v6287
    %v6289 = vrot.slane %v79, %v6288
    %v6290 = vlaneseq
    %v6291 = vshrl.u32 %v6290, 7
    %v6292 = vsub.s32 7, %v6291
    %v6293 = vrot.slane %v80, %v6292
    %v6422 = vunpack.c.l.b16 %v6150
    %v6423 = vunpack.c.h.b16 %v6150
    %v6424 = vunpack.c.l.b16 %v6151
    %v6425 = vunpack.c.h.b16 %v6151
    %v6426 = vunpack.c.l.b16 %v6152
    %v6427 = vunpack.c.h.b16 %v6152
    %v6428 = vunpack.c.l.b16 %v6153
    %v6429 = vunpack.c.h.b16 %v6153
    %v6430 = vunpack.c.l.b16 %v6154
    %v6431 = vunpack.c.h.b16 %v6154
    %v6432 = vunpack.c.l.b16 %v6155
    %v6433 = vunpack.c.h.b16 %v6155
    %v6434 = vunpack.c.l.b16 %v6156
    %v6435 = vunpack.c.h.b16 %v6156
    %v6436 = vunpack.c.l.b16 %v6157
    %v6437 = vunpack.c.h.b16 %v6157
    %v6438 = vunpack.c.l.b16 %v6158
    %v6439 = vunpack.c.h.b16 %v6158
    %v6440 = vunpack.c.l.b16 %v6159
    %v6441 = vunpack.c.h.b16 %v6159
    %v6442 = vunpack.c.l.b16 %v6160
    %v6443 = vunpack.c.h.b16 %v6160
    %v6444 = vunpack.c.l.b16 %v6161
    %v6445 = vunpack.c.h.b16 %v6161
    %v6446 = vunpack.c.l.b16 %v6162
    %v6447 = vunpack.c.h.b16 %v6162
    %v6448 = vunpack.c.l.b16 %v6163
    %v6449 = vunpack.c.h.b16 %v6163
    %v6450 = vunpack.c.l.b16 %v6164
    %v6451 = vunpack.c.h.b16 %v6164
    %v6452 = vunpack.c.l.b16 %v6165
    %v6453 = vunpack.c.h.b16 %v6165
    %v6454 = vunpack.c.l.b16 %v6166
    %v6455 = vunpack.c.h.b16 %v6166
    %v6456 = vunpack.c.l.b16 %v6167
    %v6457 = vunpack.c.h.b16 %v6167
    %v6458 = vunpack.c.l.b16 %v6168
    %v6459 = vunpack.c.h.b16 %v6168
    %v6460 = vunpack.c.l.b16 %v6169
    %v6461 = vunpack.c.h.b16 %v6169
    %v6462 = vunpack.c.l.b16 %v6170
    %v6463 = vunpack.c.h.b16 %v6170
    %v6464 = vunpack.c.l.b16 %v6171
    %v6465 = vunpack.c.h.b16 %v6171
    %v6466 = vunpack.c.l.b16 %v6172
    %v6467 = vunpack.c.h.b16 %v6172
    %v6468 = vunpack.c.l.b16 %v6173
    %v6469 = vunpack.c.h.b16 %v6173
    %v6470 = vunpack.c.l.b16 %v6174
    %v6471 = vunpack.c.h.b16 %v6174
    %v6472 = vunpack.c.l.b16 %v6175
    %v6473 = vunpack.c.h.b16 %v6175
    %v6474 = vunpack.c.l.b16 %v6176
    %v6475 = vunpack.c.h.b16 %v6176
    %v6476 = vunpack.c.l.b16 %v6177
    %v6477 = vunpack.c.h.b16 %v6177
    %v6478 = vunpack.c.l.b16 %v6178
    %v6479 = vunpack.c.h.b16 %v6178
    %v6480 = vunpack.c.l.b16 %v6179
    %v6481 = vunpack.c.h.b16 %v6179
    %v6482 = vunpack.c.l.b16 %v6180
    %v6483 = vunpack.c.h.b16 %v6180
    %v6484 = vunpack.c.l.b16 %v6181
    %v6485 = vunpack.c.h.b16 %v6181
    %v6486 = vunpack.c.l.b16 %v6182
    %v6487 = vunpack.c.h.b16 %v6182
    %v6488 = vunpack.c.l.b16 %v6183
    %v6489 = vunpack.c.h.b16 %v6183
    %v6490 = vunpack.c.l.b16 %v6184
    %v6491 = vunpack.c.h.b16 %v6184
    %v6492 = vunpack.c.l.b16 %v6185
    %v6493 = vunpack.c.h.b16 %v6185
    %v6494 = vunpack.c.l.b16 %v6186
    %v6495 = vunpack.c.h.b16 %v6186
    %v6496 = vunpack.c.l.b16 %v6187
    %v6497 = vunpack.c.h.b16 %v6187
    %v6498 = vunpack.c.l.b16 %v6188
    %v6499 = vunpack.c.h.b16 %v6188
    %v6500 = vunpack.c.l.b16 %v6189
    %v6501 = vunpack.c.h.b16 %v6189
    %v6502 = vunpack.c.l.b16 %v6190
    %v6503 = vunpack.c.h.b16 %v6190
    %v6504 = vunpack.c.l.b16 %v6191
    %v6505 = vunpack.c.h.b16 %v6191
    %v6506 = vunpack.c.l.b16 %v6192
    %v6507 = vunpack.c.h.b16 %v6192
    %v6508 = vunpack.c.l.b16 %v6193
    %v6509 = vunpack.c.h.b16 %v6193
    %v6510 = vunpack.c.l.b16 %v6194
    %v6511 = vunpack.c.h.b16 %v6194
    %v6512 = vunpack.c.l.b16 %v6195
    %v6513 = vunpack.c.h.b16 %v6195
    %v6514 = vunpack.c.l.b16 %v6196
    %v6515 = vunpack.c.h.b16 %v6196
    %v6516 = vunpack.c.l.b16 %v6197
    %v6517 = vunpack.c.h.b16 %v6197
    %v6518 = vunpack.c.l.b16 %v6198
    %v6519 = vunpack.c.h.b16 %v6198
    %v6520 = vunpack.c.l.b16 %v6199
    %v6521 = vunpack.c.h.b16 %v6199
    %v6522 = vunpack.c.l.b16 %v6200
    %v6523 = vunpack.c.h.b16 %v6200
    %v6524 = vunpack.c.l.b16 %v6201
    %v6525 = vunpack.c.h.b16 %v6201
    %v6526 = vunpack.c.l.b16 %v6202
    %v6527 = vunpack.c.h.b16 %v6202
    %v6528 = vunpack.c.l.b16 %v6203
    %v6529 = vunpack.c.h.b16 %v6203
    %v6530 = vunpack.c.l.b16 %v6204
    %v6531 = vunpack.c.h.b16 %v6204
    %v6532 = vunpack.c.l.b16 %v6205
    %v6533 = vunpack.c.h.b16 %v6205
    %v6534 = vunpack.c.l.b16 %v6206
    %v6535 = vunpack.c.h.b16 %v6206
    %v6536 = vunpack.c.l.b16 %v6207
    %v6537 = vunpack.c.h.b16 %v6207
    %v6538 = vunpack.c.l.b16 %v6208
    %v6539 = vunpack.c.h.b16 %v6208
    %v6540 = vunpack.c.l.b16 %v6209
    %v6541 = vunpack.c.h.b16 %v6209
    %v6542 = vunpack.c.l.b16 %v6210
    %v6543 = vunpack.c.h.b16 %v6210
    %v6544 = vunpack.c.l.b16 %v6211
    %v6545 = vunpack.c.h.b16 %v6211
    %v6546 = vunpack.c.l.b16 %v6212
    %v6547 = vunpack.c.h.b16 %v6212
    %v6548 = vunpack.c.l.b16 %v6213
    %v6549 = vunpack.c.h.b16 %v6213
    %v6550 = vunpack.c.l.b16 %v6214
    %v6551 = vunpack.c.h.b16 %v6214
    %v6552 = vunpack.c.l.b16 %v6215
    %v6553 = vunpack.c.h.b16 %v6215
    %v6554 = vunpack.c.l.b16 %v6216
    %v6555 = vunpack.c.h.b16 %v6216
    %v6556 = vunpack.c.l.b16 %v6217
    %v6557 = vunpack.c.h.b16 %v6217
    %v6558 = vunpack.c.l.b16 %v6218
    %v6559 = vunpack.c.h.b16 %v6218
    %v6560 = vunpack.c.l.b16 %v6219
    %v6561 = vunpack.c.h.b16 %v6219
    %v6562 = vunpack.c.l.b16 %v6220
    %v6563 = vunpack.c.h.b16 %v6220
    %v6564 = vunpack.c.l.b16 %v6221
    %v6565 = vunpack.c.h.b16 %v6221
    %v6566 = vunpack.c.l.b16 %v6222
    %v6567 = vunpack.c.h.b16 %v6222
    %v6568 = vunpack.c.l.b16 %v6223
    %v6569 = vunpack.c.h.b16 %v6223
    %v6570 = vunpack.c.l.b16 %v6224
    %v6571 = vunpack.c.h.b16 %v6224
    %v6572 = vunpack.c.l.b16 %v6225
    %v6573 = vunpack.c.h.b16 %v6225
    %v6574 = vunpack.c.l.b16 %v6226
    %v6575 = vunpack.c.h.b16 %v6226
    %v6576 = vunpack.c.l.b16 %v6227
    %v6577 = vunpack.c.h.b16 %v6227
    %v6578 = vunpack.c.l.b16 %v6228
    %v6579 = vunpack.c.h.b16 %v6228
    %v6580 = vunpack.c.l.b16 %v6229
    %v6581 = vunpack.c.h.b16 %v6229
    %v6582 = vunpack.c.l.b16 %v6230
    %v6583 = vunpack.c.h.b16 %v6230
    %v6584 = vunpack.c.l.b16 %v6231
    %v6585 = vunpack.c.h.b16 %v6231
    %v6586 = vunpack.c.l.b16 %v6232
    %v6587 = vunpack.c.h.b16 %v6232
    %v6588 = vunpack.c.l.b16 %v6233
    %v6589 = vunpack.c.h.b16 %v6233
    %v6590 = vunpack.c.l.b16 %v6234
    %v6591 = vunpack.c.h.b16 %v6234
    %v6592 = vunpack.c.l.b16 %v6235
    %v6593 = vunpack.c.h.b16 %v6235
    %v6594 = vunpack.c.l.b16 %v6236
    %v6595 = vunpack.c.h.b16 %v6236
    %v6596 = vunpack.c.l.b16 %v6237
    %v6597 = vunpack.c.h.b16 %v6237
    %v6598 = vunpack.c.l.b16 %v6238
    %v6599 = vunpack.c.h.b16 %v6238
    %v6600 = vunpack.c.l.b16 %v6239
    %v6601 = vunpack.c.h.b16 %v6239
    %v6602 = vunpack.c.l.b16 %v6240
    %v6603 = vunpack.c.h.b16 %v6240
    %v6604 = vunpack.c.l.b16 %v6241
    %v6605 = vunpack.c.h.b16 %v6241
    %v6606 = vunpack.c.l.b16 %v6242
    %v6607 = vunpack.c.h.b16 %v6242
    %v6608 = vunpack.c.l.b16 %v6243
    %v6609 = vunpack.c.h.b16 %v6243
    %v6610 = vunpack.c.l.b16 %v6244
    %v6611 = vunpack.c.h.b16 %v6244
    %v6612 = vunpack.c.l.b16 %v6245
    %v6613 = vunpack.c.h.b16 %v6245
    %v6614 = vunpack.c.l.b16 %v6246
    %v6615 = vunpack.c.h.b16 %v6246
    %v6616 = vunpack.c.l.b16 %v6247
    %v6617 = vunpack.c.h.b16 %v6247
    %v6618 = vunpack.c.l.b16 %v6248
    %v6619 = vunpack.c.h.b16 %v6248
    %v6620 = vunpack.c.l.b16 %v6249
    %v6621 = vunpack.c.h.b16 %v6249
    %v6622 = vunpack.c.l.b16 %v6250
    %v6623 = vunpack.c.h.b16 %v6250
    %v6624 = vunpack.c.l.b16 %v6251
    %v6625 = vunpack.c.h.b16 %v6251
    %v6626 = vunpack.c.l.b16 %v6252
    %v6627 = vunpack.c.h.b16 %v6252
    %v6628 = vunpack.c.l.b16 %v6253
    %v6629 = vunpack.c.h.b16 %v6253
    %v6630 = vunpack.c.l.b16 %v6254
    %v6631 = vunpack.c.h.b16 %v6254
    %v6632 = vunpack.c.l.b16 %v6255
    %v6633 = vunpack.c.h.b16 %v6255
    %v6634 = vunpack.c.l.b16 %v6256
    %v6635 = vunpack.c.h.b16 %v6256
    %v6636 = vunpack.c.l.b16 %v6257
    %v6637 = vunpack.c.h.b16 %v6257
    %v6638 = vunpack.c.l.b16 %v6258
    %v6639 = vunpack.c.h.b16 %v6258
    %v6640 = vunpack.c.l.b16 %v6259
    %v6641 = vunpack.c.h.b16 %v6259
    %v6642 = vunpack.c.l.b16 %v6260
    %v6643 = vunpack.c.h.b16 %v6260
    %v6644 = vunpack.c.l.b16 %v6261
    %v6645 = vunpack.c.h.b16 %v6261
    %v6646 = vunpack.c.l.b16 %v6262
    %v6647 = vunpack.c.h.b16 %v6262
    %v6648 = vunpack.c.l.b16 %v6263
    %v6649 = vunpack.c.h.b16 %v6263
    %v6650 = vunpack.c.l.b16 %v6264
    %v6651 = vunpack.c.h.b16 %v6264
    %v6652 = vunpack.c.l.b16 %v6265
    %v6653 = vunpack.c.h.b16 %v6265
    %v6654 = vunpack.c.l.b16 %v6266
    %v6655 = vunpack.c.h.b16 %v6266
    %v6656 = vunpack.c.l.b16 %v6267
    %v6657 = vunpack.c.h.b16 %v6267
    %v6658 = vunpack.c.l.b16 %v6268
    %v6659 = vunpack.c.h.b16 %v6268
    %v6660 = vunpack.c.l.b16 %v6269
    %v6661 = vunpack.c.h.b16 %v6269
    %v6662 = vunpack.c.l.b16 %v6270
    %v6663 = vunpack.c.h.b16 %v6270
    %v6664 = vunpack.c.l.b16 %v6271
    %v6665 = vunpack.c.h.b16 %v6271
    %v6666 = vunpack.c.l.b16 %v6272
    %v6667 = vunpack.c.h.b16 %v6272
    %v6668 = vunpack.c.l.b16 %v6273
    %v6669 = vunpack.c.h.b16 %v6273
    %v6670 = vunpack.c.l.b16 %v6274
    %v6671 = vunpack.c.h.b16 %v6274
    %v6672 = vunpack.c.l.b16 %v6275
    %v6673 = vunpack.c.h.b16 %v6275
    %v6674 = vunpack.c.l.b16 %v6276
    %v6675 = vunpack.c.h.b16 %v6276
    %v6676 = vunpack.c.l.b16 %v6277
    %v6677 = vunpack.c.h.b16 %v6277
    %v6678 = vpack.c.b16 %v6426, %v6422
    %v6679 = vpack.c.b16 %v6427, %v6423
    %v6680 = vpack.c.b16 %v6428, %v6424
    %v6681 = vpack.c.b16 %v6429, %v6425
    %v6682 = vpack.c.b16 %v6434, %v6430
    %v6683 = vpack.c.b16 %v6435, %v6431
    %v6684 = vpack.c.b16 %v6436, %v6432
    %v6685 = vpack.c.b16 %v6437, %v6433
    %v6686 = vpack.c.b16 %v6442, %v6438
    %v6687 = vpack.c.b16 %v6443, %v6439
    %v6688 = vpack.c.b16 %v6444, %v6440
    %v6689 = vpack.c.b16 %v6445, %v6441
    %v6690 = vpack.c.b16 %v6450, %v6446
    %v6691 = vpack.c.b16 %v6451, %v6447
    %v6692 = vpack.c.b16 %v6452, %v6448
    %v6693 = vpack.c.b16 %v6453, %v6449
    %v6694 = vpack.c.b16 %v6458, %v6454
    %v6695 = vpack.c.b16 %v6459, %v6455
    %v6696 = vpack.c.b16 %v6460, %v6456
    %v6697 = vpack.c.b16 %v6461, %v6457
    %v6698 = vpack.c.b16 %v6466, %v6462
    %v6699 = vpack.c.b16 %v6467, %v6463
    %v6700 = vpack.c.b16 %v6468, %v6464
    %v6701 = vpack.c.b16 %v6469, %v6465
    %v6702 = vpack.c.b16 %v6474, %v6470
    %v6703 = vpack.c.b16 %v6475, %v6471
    %v6704 = vpack.c.b16 %v6476, %v6472
    %v6705 = vpack.c.b16 %v6477, %v6473
    %v6706 = vpack.c.b16 %v6482, %v6478
    %v6707 = vpack.c.b16 %v6483, %v6479
    %v6708 = vpack.c.b16 %v6484, %v6480
    %v6709 = vpack.c.b16 %v6485, %v6481
    %v6710 = vpack.c.b16 %v6490, %v6486
    %v6711 = vpack.c.b16 %v6491, %v6487
    %v6712 = vpack.c.b16 %v6492, %v6488
    %v6713 = vpack.c.b16 %v6493, %v6489
    %v6714 = vpack.c.b16 %v6498, %v6494
    %v6715 = vpack.c.b16 %v6499, %v6495
    %v6716 = vpack.c.b16 %v6500, %v6496
    %v6717 = vpack.c.b16 %v6501, %v6497
    %v6718 = vpack.c.b16 %v6506, %v6502
    %v6719 = vpack.c.b16 %v6507, %v6503
    %v6720 = vpack.c.b16 %v6508, %v6504
    %v6721 = vpack.c.b16 %v6509, %v6505
    %v6722 = vpack.c.b16 %v6514, %v6510
    %v6723 = vpack.c.b16 %v6515, %v6511
    %v6724 = vpack.c.b16 %v6516, %v6512
    %v6725 = vpack.c.b16 %v6517, %v6513
    %v6726 = vpack.c.b16 %v6522, %v6518
    %v6727 = vpack.c.b16 %v6523, %v6519
    %v6728 = vpack.c.b16 %v6524, %v6520
    %v6729 = vpack.c.b16 %v6525, %v6521
    %v6730 = vpack.c.b16 %v6530, %v6526
    %v6731 = vpack.c.b16 %v6531, %v6527
    %v6732 = vpack.c.b16 %v6532, %v6528
    %v6733 = vpack.c.b16 %v6533, %v6529
    %v6734 = vpack.c.b16 %v6538, %v6534
    %v6735 = vpack.c.b16 %v6539, %v6535
    %v6736 = vpack.c.b16 %v6540, %v6536
    %v6737 = vpack.c.b16 %v6541, %v6537
    %v6738 = vpack.c.b16 %v6546, %v6542
    %v6739 = vpack.c.b16 %v6547, %v6543
    %v6740 = vpack.c.b16 %v6548, %v6544
    %v6741 = vpack.c.b16 %v6549, %v6545
    %v6742 = vpack.c.b16 %v6554, %v6550
    %v6743 = vpack.c.b16 %v6555, %v6551
    %v6744 = vpack.c.b16 %v6556, %v6552
    %v6745 = vpack.c.b16 %v6557, %v6553
    %v6746 = vpack.c.b16 %v6562, %v6558
    %v6747 = vpack.c.b16 %v6563, %v6559
    %v6748 = vpack.c.b16 %v6564, %v6560
    %v6749 = vpack.c.b16 %v6565, %v6561
    %v6750 = vpack.c.b16 %v6570, %v6566
    %v6751 = vpack.c.b16 %v6571, %v6567
    %v6752 = vpack.c.b16 %v6572, %v6568
    %v6753 = vpack.c.b16 %v6573, %v6569
    %v6754 = vpack.c.b16 %v6578, %v6574
    %v6755 = vpack.c.b16 %v6579, %v6575
    %v6756 = vpack.c.b16 %v6580, %v6576
    %v6757 = vpack.c.b16 %v6581, %v6577
    %v6758 = vpack.c.b16 %v6586, %v6582
    %v6759 = vpack.c.b16 %v6587, %v6583
    %v6760 = vpack.c.b16 %v6588, %v6584
    %v6761 = vpack.c.b16 %v6589, %v6585
    %v6762 = vpack.c.b16 %v6594, %v6590
    %v6763 = vpack.c.b16 %v6595, %v6591
    %v6764 = vpack.c.b16 %v6596, %v6592
    %v6765 = vpack.c.b16 %v6597, %v6593
    %v6766 = vpack.c.b16 %v6602, %v6598
    %v6767 = vpack.c.b16 %v6603, %v6599
    %v6768 = vpack.c.b16 %v6604, %v6600
    %v6769 = vpack.c.b16 %v6605, %v6601
    %v6770 = vpack.c.b16 %v6610, %v6606
    %v6771 = vpack.c.b16 %v6611, %v6607
    %v6772 = vpack.c.b16 %v6612, %v6608
    %v6773 = vpack.c.b16 %v6613, %v6609
    %v6774 = vpack.c.b16 %v6618, %v6614
    %v6775 = vpack.c.b16 %v6619, %v6615
    %v6776 = vpack.c.b16 %v6620, %v6616
    %v6777 = vpack.c.b16 %v6621, %v6617
    %v6778 = vpack.c.b16 %v6626, %v6622
    %v6779 = vpack.c.b16 %v6627, %v6623
    %v6780 = vpack.c.b16 %v6628, %v6624
    %v6781 = vpack.c.b16 %v6629, %v6625
    %v6782 = vpack.c.b16 %v6634, %v6630
    %v6783 = vpack.c.b16 %v6635, %v6631
    %v6784 = vpack.c.b16 %v6636, %v6632
    %v6785 = vpack.c.b16 %v6637, %v6633
    %v6786 = vpack.c.b16 %v6642, %v6638
    %v6787 = vpack.c.b16 %v6643, %v6639
    %v6788 = vpack.c.b16 %v6644, %v6640
    %v6789 = vpack.c.b16 %v6645, %v6641
    %v6790 = vpack.c.b16 %v6650, %v6646
    %v6791 = vpack.c.b16 %v6651, %v6647
    %v6792 = vpack.c.b16 %v6652, %v6648
    %v6793 = vpack.c.b16 %v6653, %v6649
    %v6794 = vpack.c.b16 %v6658, %v6654
    %v6795 = vpack.c.b16 %v6659, %v6655
    %v6796 = vpack.c.b16 %v6660, %v6656
    %v6797 = vpack.c.b16 %v6661, %v6657
    %v6798 = vpack.c.b16 %v6666, %v6662
    %v6799 = vpack.c.b16 %v6667, %v6663
    %v6800 = vpack.c.b16 %v6668, %v6664
    %v6801 = vpack.c.b16 %v6669, %v6665
    %v6802 = vpack.c.b16 %v6674, %v6670
    %v6803 = vpack.c.b16 %v6675, %v6671
    %v6804 = vpack.c.b16 %v6676, %v6672
    %v6805 = vpack.c.b16 %v6677, %v6673
    %6934 = vmatprep.subr.bf16.mxu0 %v6707
    %6935 = vmatpush1.bf16.msra.mxu0 %v6706
    %6936 = vmatprep.subr.bf16.mxu0 %v6703
    %6937 = vmatpush1.bf16.msra.mxu0 %v6702
    %6938 = vmatprep.subr.bf16.mxu0 %v6699
    %6939 = vmatpush1.bf16.msra.mxu0 %v6698
    %6940 = vmatprep.subr.bf16.mxu0 %v6695
    %6941 = vmatpush1.bf16.msra.mxu0 %v6694
    %6942 = vmatprep.subr.bf16.mxu0 %v6691
    %6943 = vmatpush1.bf16.msra.mxu0 %v6690
    %6944 = vmatprep.subr.bf16.mxu0 %v6687
    %6945 = vmatpush1.bf16.msra.mxu0 %v6686
    %6946 = vmatprep.subr.bf16.mxu0 %v6683
    %6947 = vmatpush1.bf16.msra.mxu0 %v6682
    %6948 = vmatprep.subr.bf16.mxu0 %v6679
    %6949 = vmatpush1.bf16.msra.mxu0 %v6678
    %6950 = vmatprep.subr.bf16.mxu0 %v6739
    %6951 = vmatpush2.bf16.msra.mxu0 %v6738
    %6952 = vmatprep.subr.bf16.mxu0 %v6735
    %6953 = vmatpush2.bf16.msra.mxu0 %v6734
    %6954 = vmatprep.subr.bf16.mxu0 %v6731
    %6955 = vmatpush2.bf16.msra.mxu0 %v6730
    %6956 = vmatprep.subr.bf16.mxu0 %v6727
    %6957 = vmatpush2.bf16.msra.mxu0 %v6726
    %6958 = vmatprep.subr.bf16.mxu0 %v6723
    %6959 = vmatpush2.bf16.msra.mxu0 %v6722
    %6960 = vmatprep.subr.bf16.mxu0 %v6719
    %6961 = vmatpush2.bf16.msra.mxu0 %v6718
    %6962 = vmatprep.subr.bf16.mxu0 %v6715
    %6963 = vmatpush2.bf16.msra.mxu0 %v6714
    %6964 = vmatprep.subr.bf16.mxu0 %v6711
    %6965 = vmatpush2.bf16.msra.mxu0 %v6710
    %6966 = vmatprep.mubr.bf16.mxu0 %v6146
    %6967 = vmatmul.mubr.bf16.gmra.mxu0 %v6145
    %v6968 = vpop.f32.mrf.mxu0
    %v6969 = vadd.f32 %v6281, %v6968
    %v6970 = vpop.f32.mrf.mxu0
    %v6971 = vadd.f32 %v6285, %v6970
    %v6972 = vpop.f32.mrf.mxu0
    %v6973 = vpop.f32.mrf.mxu0
    %6974 = vdwg.mxu0
    %6975 = vmatprep.subr.bf16.mxu0 %v6771
    %6976 = vmatpush1.bf16.msra.mxu0 %v6770
    %6977 = vmatprep.subr.bf16.mxu0 %v6767
    %6978 = vmatpush1.bf16.msra.mxu0 %v6766
    %6979 = vmatprep.subr.bf16.mxu0 %v6763
    %6980 = vmatpush1.bf16.msra.mxu0 %v6762
    %6981 = vmatprep.subr.bf16.mxu0 %v6759
    %6982 = vmatpush1.bf16.msra.mxu0 %v6758
    %6983 = vmatprep.subr.bf16.mxu0 %v6755
    %6984 = vmatpush1.bf16.msra.mxu0 %v6754
    %6985 = vmatprep.subr.bf16.mxu0 %v6751
    %6986 = vmatpush1.bf16.msra.mxu0 %v6750
    %6987 = vmatprep.subr.bf16.mxu0 %v6747
    %6988 = vmatpush1.bf16.msra.mxu0 %v6746
    %6989 = vmatprep.subr.bf16.mxu0 %v6743
    %6990 = vmatpush1.bf16.msra.mxu0 %v6742
    %6991 = vmatprep.subr.bf16.mxu0 %v6803
    %6992 = vmatpush2.bf16.msra.mxu0 %v6802
    %6993 = vmatprep.subr.bf16.mxu0 %v6799
    %6994 = vmatpush2.bf16.msra.mxu0 %v6798
    %6995 = vmatprep.subr.bf16.mxu0 %v6795
    %6996 = vmatpush2.bf16.msra.mxu0 %v6794
    %6997 = vmatprep.subr.bf16.mxu0 %v6791
    %6998 = vmatpush2.bf16.msra.mxu0 %v6790
    %6999 = vmatprep.subr.bf16.mxu0 %v6787
    %7000 = vmatpush2.bf16.msra.mxu0 %v6786
    %7001 = vmatprep.subr.bf16.mxu0 %v6783
    %7002 = vmatpush2.bf16.msra.mxu0 %v6782
    %7003 = vmatprep.subr.bf16.mxu0 %v6779
    %7004 = vmatpush2.bf16.msra.mxu0 %v6778
    %7005 = vmatprep.subr.bf16.mxu0 %v6775
    %7006 = vmatpush2.bf16.msra.mxu0 %v6774
    %7007 = vmatprep.mubr.bf16.mxu0 %v6148
    %7008 = vmatmul.mubr.bf16.gmra.mxu0 %v6147
    %v7009 = vpop.f32.mrf.mxu0
    %v7010 = vadd.f32 %v6969, %v7009
    %v7011 = vpop.f32.mrf.mxu0
    %v7012 = vadd.f32 %v6971, %v7011
    %v7013 = vpop.f32.mrf.mxu0
    %v7014 = vpop.f32.mrf.mxu0
    %7015 = vdwg.mxu0
    %7016 = vmatprep.subr.bf16.mxu0 %v6709
    %7017 = vmatpush1.bf16.msra.mxu0 %v6708
    %7018 = vmatprep.subr.bf16.mxu0 %v6705
    %7019 = vmatpush1.bf16.msra.mxu0 %v6704
    %7020 = vmatprep.subr.bf16.mxu0 %v6701
    %7021 = vmatpush1.bf16.msra.mxu0 %v6700
    %7022 = vmatprep.subr.bf16.mxu0 %v6697
    %7023 = vmatpush1.bf16.msra.mxu0 %v6696
    %7024 = vmatprep.subr.bf16.mxu0 %v6693
    %7025 = vmatpush1.bf16.msra.mxu0 %v6692
    %7026 = vmatprep.subr.bf16.mxu0 %v6689
    %7027 = vmatpush1.bf16.msra.mxu0 %v6688
    %7028 = vmatprep.subr.bf16.mxu0 %v6685
    %7029 = vmatpush1.bf16.msra.mxu0 %v6684
    %7030 = vmatprep.subr.bf16.mxu0 %v6681
    %7031 = vmatpush1.bf16.msra.mxu0 %v6680
    %7032 = vmatprep.subr.bf16.mxu0 %v6741
    %7033 = vmatpush2.bf16.msra.mxu0 %v6740
    %7034 = vmatprep.subr.bf16.mxu0 %v6737
    %7035 = vmatpush2.bf16.msra.mxu0 %v6736
    %7036 = vmatprep.subr.bf16.mxu0 %v6733
    %7037 = vmatpush2.bf16.msra.mxu0 %v6732
    %7038 = vmatprep.subr.bf16.mxu0 %v6729
    %7039 = vmatpush2.bf16.msra.mxu0 %v6728
    %7040 = vmatprep.subr.bf16.mxu0 %v6725
    %7041 = vmatpush2.bf16.msra.mxu0 %v6724
    %7042 = vmatprep.subr.bf16.mxu0 %v6721
    %7043 = vmatpush2.bf16.msra.mxu0 %v6720
    %7044 = vmatprep.subr.bf16.mxu0 %v6717
    %7045 = vmatpush2.bf16.msra.mxu0 %v6716
    %7046 = vmatprep.subr.bf16.mxu0 %v6713
    %7047 = vmatpush2.bf16.msra.mxu0 %v6712
    %7048 = vmatprep.mubr.bf16.mxu0 %v6146
    %7049 = vmatmul.mubr.bf16.gmra.mxu0 %v6145
    %v7050 = vpop.f32.mrf.mxu0
    %v7051 = vadd.f32 %v6289, %v7050
    %v7052 = vpop.f32.mrf.mxu0
    %v7053 = vadd.f32 %v6293, %v7052
    %v7054 = vpop.f32.mrf.mxu0
    %v7055 = vpop.f32.mrf.mxu0
    %7056 = vdwg.mxu0
    %7057 = vmatprep.subr.bf16.mxu0 %v6773
    %7058 = vmatpush1.bf16.msra.mxu0 %v6772
    %7059 = vmatprep.subr.bf16.mxu0 %v6769
    %7060 = vmatpush1.bf16.msra.mxu0 %v6768
    %7061 = vmatprep.subr.bf16.mxu0 %v6765
    %7062 = vmatpush1.bf16.msra.mxu0 %v6764
    %7063 = vmatprep.subr.bf16.mxu0 %v6761
    %7064 = vmatpush1.bf16.msra.mxu0 %v6760
    %7065 = vmatprep.subr.bf16.mxu0 %v6757
    %7066 = vmatpush1.bf16.msra.mxu0 %v6756
    %7067 = vmatprep.subr.bf16.mxu0 %v6753
    %7068 = vmatpush1.bf16.msra.mxu0 %v6752
    %7069 = vmatprep.subr.bf16.mxu0 %v6749
    %7070 = vmatpush1.bf16.msra.mxu0 %v6748
    %7071 = vmatprep.subr.bf16.mxu0 %v6745
    %7072 = vmatpush1.bf16.msra.mxu0 %v6744
    %7073 = vmatprep.subr.bf16.mxu0 %v6805
    %7074 = vmatpush2.bf16.msra.mxu0 %v6804
    %7075 = vmatprep.subr.bf16.mxu0 %v6801
    %7076 = vmatpush2.bf16.msra.mxu0 %v6800
    %7077 = vmatprep.subr.bf16.mxu0 %v6797
    %7078 = vmatpush2.bf16.msra.mxu0 %v6796
    %7079 = vmatprep.subr.bf16.mxu0 %v6793
    %7080 = vmatpush2.bf16.msra.mxu0 %v6792
    %7081 = vmatprep.subr.bf16.mxu0 %v6789
    %7082 = vmatpush2.bf16.msra.mxu0 %v6788
    %7083 = vmatprep.subr.bf16.mxu0 %v6785
    %7084 = vmatpush2.bf16.msra.mxu0 %v6784
    %7085 = vmatprep.subr.bf16.mxu0 %v6781
    %7086 = vmatpush2.bf16.msra.mxu0 %v6780
    %7087 = vmatprep.subr.bf16.mxu0 %v6777
    %7088 = vmatpush2.bf16.msra.mxu0 %v6776
    %7089 = vmatprep.mubr.bf16.mxu0 %v6148
    %7090 = vmatmul.mubr.bf16.gmra.mxu0 %v6147
    %v7091 = vpop.f32.mrf.mxu0
    %v7092 = vadd.f32 %v7051, %v7091
    %v7093 = vpop.f32.mrf.mxu0
    %v7094 = vadd.f32 %v7053, %v7093
    %v7095 = vpop.f32.mrf.mxu0
    %v7096 = vpop.f32.mrf.mxu0
    %7097 = vdwg.mxu0
    %v7098 = vmul.f32 %v7010, 0.2
    %v7099 = vmul.f32 %v7012, 0.2
    %v7100 = vmul.f32 %v7092, 0.2
    %v7101 = vmul.f32 %v7094, 0.2
    %v7102 = vmax.f32 %v7010, %v7098
    %v7103 = vmax.f32 %v7012, %v7099
    %v7104 = vmax.f32 %v7092, %v7100
    %v7105 = vmax.f32 %v7094, %v7101
    %7106 = vst [vmem:[#allocation10] sm:$0xff] %v7102
    %7107 = vst [vmem:[#allocation10 + $0x8] sm:$0xff] %v7103
    %7108 = vst [vmem:[#allocation10 + $0x10] sm:$0xff] %v7104
    %7109 = vst [vmem:[#allocation10 + $0x18] sm:$0xff] %v7105
    // Predicated region
    $region34: #{_mapping_forward_padded.1} parent=1 // pred_check
      _
    $region35: #{_mapping_forward_padded.1} parent=1 // pred_check_branch
      %7111 = sbr.rel (0) target = $region37
    $region36: #{_mapping_forward_padded.1} parent=1 // pred_region
      %s7113 = ssub.s32 512, 512
      %7114 = vsyncadd [#allocation4], %s7113
      %s7116 = sshll.u32 [#allocation10], 4
      %s7117 = int_to_ptr.vmem [resolvable:$true] %s7116
      %7119 = dma.vmem_to_hbm [thread:$0]  %s7117, 512, %s4, [#allocation4]
    $region37: #{_mapping_forward_padded.1} parent=1 // pred_fallthru
      _
    // Predicated region
    $region38: #{_mapping_forward_padded.1} parent=1 // pred_check
      _
    $region39: #{_mapping_forward_padded.1} parent=1 // pred_check_branch
      %7121 = sbr.rel (0) target = $region41
    $region40: #{_mapping_forward_padded.1} parent=1 // pred_region
      %7122 = dma.done [#allocation4], 512
    $region41: #{_mapping_forward_padded.1} parent=1 // pred_fallthru
      _
    %7123 = vsyncpa [#allocation3], 1
    %7124 = vsyncpa [#allocation6], 1
    %7125 = vsyncpa [#allocation9], 1
    %7126 = vsyncpa [#allocation4], 1

</llo_original>
